<compile_context>
chip_gen: v7x
topology: tpu7x:2x2x1
jax: 0.10.0
libtpu: 0.0.40
codegen_flags: <defaults>
</compile_context>

<pallas_src>
import functools
import math

import jax
import jax.numpy as jnp
import numpy as np
from jax.experimental import pallas as pl
from jax.experimental.pallas import tpu as pltpu

EPS = 1e-5  # nn.LayerNorm / nn.TransformerDecoderLayer default layer_norm_eps


# ----------------------------- in-kernel helpers -----------------------------

def _mm(x, w):
    # x: (rows, in), w: (in, out) bf16 (pre-transposed in the wrapper).
    # bf16 MXU inputs, f32 accumulation.
    return jax.lax.dot_general(x.astype(jnp.bfloat16), w.astype(jnp.bfloat16),
                               (((1,), (0,)), ((), ())),
                               preferred_element_type=jnp.float32)


def _layernorm(x, g, b):
    mean = jnp.mean(x, axis=-1, keepdims=True)
    var = jnp.mean(jnp.square(x - mean), axis=-1, keepdims=True)
    return (x - mean) * jax.lax.rsqrt(var + EPS) * g + b


def _attention(q2, k2, v2, batch, seq, n_heads):
    """Multi-head attention core on (B*S, D) activations.

    Heads run in an unrolled Python loop; each head is a batched-over-B einsum
    on (B, S, hd) lane slices.  No K/V replication, no block-mask matmuls:
    each head contracts only hd features, and the per-head softmax max and
    denominator are plain lane reductions (XLU), not MXU matmuls.
    """
    rows, dim = q2.shape
    hd = dim // n_heads
    scale = 1.0 / math.sqrt(hd)

    # (B*S, D) -> (B, S, D): pure major/sublane-tile regrouping (requires S % 8 == 0).
    q3 = (q2 * scale).reshape(batch, seq, dim)
    k3 = k2.reshape(batch, seq, dim)
    v3 = v2.reshape(batch, seq, dim)

    ctx_heads = []
    for h in range(n_heads):
        lo = h * hd
        qh = q3[:, :, lo:lo + hd].astype(jnp.bfloat16)           # (B, S, hd)
        kh = k3[:, :, lo:lo + hd].astype(jnp.bfloat16)
        vh = v3[:, :, lo:lo + hd].astype(jnp.bfloat16)
        s = jnp.einsum("bqd,bkd->bqk", qh, kh,
                       preferred_element_type=jnp.float32)       # (B, S, S)
        m = jnp.max(s, axis=-1, keepdims=True)                   # per-head max
        e = jnp.exp(s - m)
        den = jnp.sum(e, axis=-1, keepdims=True)                 # per-head sum (reduce)
        p = e * pl.reciprocal(den, approx=True)                  # EUP recip on reduced sums
        ctx_heads.append(jnp.einsum("bqk,bkd->bqd",
                                    p.astype(jnp.bfloat16), vh,
                                    preferred_element_type=jnp.float32))
    ctx = jnp.concatenate(ctx_heads, axis=-1)                    # (B, S, D) f32
    return ctx.reshape(rows, dim)


def _mha(q, k, v, wo, bo, batch, seq, n_heads):
    ctx = _attention(q, k, v, batch, seq, n_heads)
    return _mm(ctx, wo) + bo


# ------------------------------- kernel 1: layers ------------------------------

def _layers_kernel(batch, seq, n_heads, n_layers,
                   h0, sa_wqkv, sa_bqkv, sa_wo, sa_bo,
                   ca_wq, ca_bq, ca_wkv, ca_bkv, ca_wo, ca_bo,
                   ln1_g, ln1_b, ln2_g, ln2_b, ln3_g, ln3_b,
                   ff_w1, ff_b1, ff_w2, ff_b2,
                   norm_g, norm_b,
                   h_out_ref, x_sc):
    dim = x_sc.shape[-1]
    layer = pl.program_id(0)

    @pl.when(layer == 0)
    def _():
        x_sc[...] = h0[...]

    x = x_sc[...]          # (B*S, D) f32 residual stream, resident across layers
    mem = x                # memory == layer input (the module calls layer(h, h))

    # ---- self-attention + residual + norm1 (post-norm) ----
    qkv = _mm(x, sa_wqkv[...]) + sa_bqkv[...]                    # (B*S, 3D)
    sa = _mha(qkv[:, 0:dim], qkv[:, dim:2 * dim], qkv[:, 2 * dim:3 * dim],
              sa_wo[...], sa_bo[...], batch, seq, n_heads)
    x = _layernorm(x + sa, ln1_g[...], ln1_b[...])

    # ---- cross-attention (k, v from memory) + residual + norm2 ----
    q = _mm(x, ca_wq[...]) + ca_bq[...]
    kv = _mm(mem, ca_wkv[...]) + ca_bkv[...]                     # (B*S, 2D)
    ca = _mha(q, kv[:, 0:dim], kv[:, dim:2 * dim],
              ca_wo[...], ca_bo[...], batch, seq, n_heads)
    x = _layernorm(x + ca, ln2_g[...], ln2_b[...])

    # ---- feed-forward: linear2(relu(linear1(x))) + residual + norm3 ----
    h1 = jnp.maximum(_mm(x, ff_w1[...]) + ff_b1[...], 0.0)
    ff = _mm(h1, ff_w2[...]) + ff_b2[...]
    x = _layernorm(x + ff, ln3_g[...], ln3_b[...])

    x_sc[...] = x

    # ---- final LayerNorm fused into the last layer step ----
    @pl.when(layer == n_layers - 1)
    def _():
        h_out_ref[...] = _layernorm(x, norm_g[...], norm_b[...])


# --------------------------- kernel 2: vocab projection -------------------------

def _proj_kernel(h_ref, w_ref, b_ref, o_ref):
    o_ref[...] = _mm(h_ref[...], w_ref[...]) + b_ref[...]


# ------------------------------ pallas wrapper ---------------------------------

def prepare_weights(params):
    """One-time conversion: transpose to (in,out), stack per-layer on a leading
    L axis, cast matmul weights to bf16 (biases / LN params stay f32)."""
    bf16, f32 = jnp.bfloat16, jnp.float32
    dim = params["emb"].shape[1]

    def stack(fn, dtype):
        return jnp.stack([fn(lp) for lp in params["layers"]], axis=0).astype(dtype)

    return {
        "emb": params["emb"].astype(f32),
        "norm_g": params["norm_g"].astype(f32),
        "norm_b": params["norm_b"].astype(f32),
        "w_out": params["out_w"].T.astype(bf16),              # (D, V)
        "b_out": params["out_b"].astype(f32),                  # (1, V)
        "sa_wqkv": stack(lambda lp: lp["sa_in_w"].T, bf16),    # (L, D, 3D)
        "sa_bqkv": stack(lambda lp: lp["sa_in_b"], f32),       # (L, 1, 3D)
        "sa_wo": stack(lambda lp: lp["sa_out_w"].T, bf16),     # (L, D, D)
        "sa_bo": stack(lambda lp: lp["sa_out_b"], f32),        # (L, 1, D)
        "ca_wq": stack(lambda lp: lp["ca_in_w"][:dim].T, bf16),        # (L, D, D)
        "ca_bq": stack(lambda lp: lp["ca_in_b"][:, :dim], f32),        # (L, 1, D)
        "ca_wkv": stack(lambda lp: lp["ca_in_w"][dim:].T, bf16),       # (L, D, 2D)
        "ca_bkv": stack(lambda lp: lp["ca_in_b"][:, dim:], f32),       # (L, 1, 2D)
        "ca_wo": stack(lambda lp: lp["ca_out_w"].T, bf16),
        "ca_bo": stack(lambda lp: lp["ca_out_b"], f32),
        "ln1_g": stack(lambda lp: lp["ln1_g"], f32),
        "ln1_b": stack(lambda lp: lp["ln1_b"], f32),
        "ln2_g": stack(lambda lp: lp["ln2_g"], f32),
        "ln2_b": stack(lambda lp: lp["ln2_b"], f32),
        "ln3_g": stack(lambda lp: lp["ln3_g"], f32),
        "ln3_b": stack(lambda lp: lp["ln3_b"], f32),
        "ff_w1": stack(lambda lp: lp["ff_w1"].T, bf16),        # (L, D, FF)
        "ff_b1": stack(lambda lp: lp["ff_b1"], f32),           # (L, 1, FF)
        "ff_w2": stack(lambda lp: lp["ff_w2"].T, bf16),        # (L, FF, D)
        "ff_b2": stack(lambda lp: lp["ff_b2"], f32),           # (L, 1, D)
    }


def _nbytes(a):
    return int(a.size) * a.dtype.itemsize


def _vmem_limit(bytes_needed):
    # Explicit scoped-VMEM sizing (feedback): 2x the computed footprint, floored at
    # 32 MiB, capped at 48 MiB (safely below v7x's 64 MiB physical VMEM).
    return int(min(48 * 1024 * 1024, max(32 * 1024 * 1024, 2 * bytes_needed)))


def _pick_vocab_tile(vocab):
    # Lane-dense 128-multiple vocab tiles when possible; otherwise a single full block.
    if vocab % 128 != 0:
        return vocab
    for t in (2048, 1024, 512, 256, 128):
        if vocab % t == 0:
            return t
    return vocab


def transformer_forward(tokens_sb, p, n_heads):
    # tokens_sb: (S, B) int32; p: prepared (stacked / transposed / bf16) params.
    seq, batch = tokens_sb.shape
    dim = p["emb"].shape[1]
    vocab = p["w_out"].shape[1]
    n_layers = p["sa_wqkv"].shape[0]
    rows = batch * seq

    # Embedding gather (glue) directly in (B, S) row order — only the tiny int
    # token array is transposed, not the activations.
    h0 = jnp.take(p["emb"], tokens_sb.T, axis=0).reshape(rows, dim).astype(jnp.float32)

    def res_spec(shape):  # layer-independent: fetched once, stays resident
        n = len(shape)
        return pl.BlockSpec(shape, lambda l, _n=n: (0,) * _n)

    def layer_spec(shape):  # (L, a, b) stacked: one layer's slab streamed per step
        return pl.BlockSpec((None,) + tuple(shape[1:]), lambda l: (l, 0, 0))

    args = [
        h0,
        p["sa_wqkv"], p["sa_bqkv"], p["sa_wo"], p["sa_bo"],
        p["ca_wq"], p["ca_bq"], p["ca_wkv"], p["ca_bkv"], p["ca_wo"], p["ca_bo"],
        p["ln1_g"], p["ln1_b"], p["ln2_g"], p["ln2_b"], p["ln3_g"], p["ln3_b"],
        p["ff_w1"], p["ff_b1"], p["ff_w2"], p["ff_b2"],
        p["norm_g"], p["norm_b"],
    ]
    in_specs = [res_spec(h0.shape)]
    in_specs += [layer_spec(a.shape) for a in args[1:21]]
    in_specs += [res_spec(a.shape) for a in args[21:]]

    # ---- kernel 1: decoder layers + final LayerNorm ----
    per_layer_bytes = sum(_nbytes(a) for a in args[1:21]) // n_layers
    resident_bytes = sum(_nbytes(a) for a in (h0, p["norm_g"], p["norm_b"]))
    act_bytes = rows * dim * 4                      # output block + scratch (each)
    need1 = resident_bytes + 2 * act_bytes + 2 * per_layer_bytes

    h_out = pl.pallas_call(
        functools.partial(_layers_kernel, batch, seq, n_heads, n_layers),
        grid=(n_layers,),
        in_specs=in_specs,
        out_specs=pl.BlockSpec((rows, dim), lambda l: (0, 0)),
        out_shape=jax.ShapeDtypeStruct((rows, dim), jnp.float32),
        scratch_shapes=[pltpu.VMEM((rows, dim), jnp.float32)],
        compiler_params=pltpu.CompilerParams(
            dimension_semantics=("arbitrary",),
            vmem_limit_bytes=_vmem_limit(need1)),
    )(*args)

    # ---- kernel 2: vocab projection, tiled (parallel) over the vocab axis ----
    vtile = _pick_vocab_tile(vocab)
    need2 = rows * dim * 4 + 2 * (dim * vtile * 2 + vtile * 4 + rows * vtile * 4)
    logits = pl.pallas_call(
        _proj_kernel,
        grid=(vocab // vtile,),
        in_specs=[pl.BlockSpec((rows, dim), lambda v: (0, 0)),
                  pl.BlockSpec((dim, vtile), lambda v: (0, v)),
                  pl.BlockSpec((1, vtile), lambda v: (0, v))],
        out_specs=pl.BlockSpec((rows, vtile), lambda v: (0, v)),
        out_shape=jax.ShapeDtypeStruct((rows, vocab), jnp.float32),
        compiler_params=pltpu.CompilerParams(
            dimension_semantics=("parallel",),
            vmem_limit_bytes=_vmem_limit(need2)),
    )(h_out, p["w_out"], p["b_out"])

    # (B*S, V) -> (S, B, V) to match PyTorch batch_first=False output layout.
    return jnp.transpose(logits.reshape(batch, seq, vocab), (1, 0, 2))


# --------------------------- pure-JAX reference --------------------------------

def _ref_layernorm(x, g, b):
    mean = jnp.mean(x, axis=-1, keepdims=True)
    var = jnp.mean((x - mean) ** 2, axis=-1, keepdims=True)
    return (x - mean) / jnp.sqrt(var + EPS) * g + b


def _ref_mha(q_src, kv_src, in_w, in_b, out_w, out_b, n_heads):
    L, N, D = q_src.shape
    hd = D // n_heads
    q = q_src @ in_w[:D].T + in_b[:D]
    k = kv_src @ in_w[D:2 * D].T + in_b[D:2 * D]
    v = kv_src @ in_w[2 * D:].T + in_b[2 * D:]

    def split(x):
        return x.reshape(x.shape[0], N, n_heads, hd).transpose(1, 2, 0, 3)

    qh, kh, vh = split(q), split(k), split(v)
    s = jnp.einsum("nhqd,nhkd->nhqk", qh, kh) / math.sqrt(hd)
    p = jax.nn.softmax(s, axis=-1)
    o = jnp.einsum("nhqk,nhkd->nhqd", p, vh)
    o = o.transpose(2, 0, 1, 3).reshape(L, N, D)
    return o @ out_w.T + out_b


def _ref_decoder_layer(h, lp, n_heads):
    mem = h
    x = h
    sa = _ref_mha(x, x, lp["sa_in_w"], lp["sa_in_b"][0], lp["sa_out_w"],
                  lp["sa_out_b"][0], n_heads)
    x = _ref_layernorm(x + sa, lp["ln1_g"][0], lp["ln1_b"][0])
    ca = _ref_mha(x, mem, lp["ca_in_w"], lp["ca_in_b"][0], lp["ca_out_w"],
                  lp["ca_out_b"][0], n_heads)
    x = _ref_layernorm(x + ca, lp["ln2_g"][0], lp["ln2_b"][0])
    ff = jnp.maximum(x @ lp["ff_w1"].T + lp["ff_b1"][0], 0.0) @ lp["ff_w2"].T + lp["ff_b2"][0]
    x = _ref_layernorm(x + ff, lp["ln3_g"][0], lp["ln3_b"][0])
    return x


def _ref_forward(tokens_sb, params, n_heads):
    h = jnp.take(params["emb"], tokens_sb, axis=0)
    for lp in params["layers"]:
        h = _ref_decoder_layer(h, lp, n_heads)
    h = _ref_layernorm(h, params["norm_g"][0], params["norm_b"][0])
    return h @ params["out_w"].T + params["out_b"][0]


# ------------------------------ params / main ----------------------------------

def init_params(key, vocab, dim, n_layers, n_heads, ff):
    keys = jax.random.split(key, 2 + n_layers)
    params = {
        "emb": jax.random.normal(keys[0], (vocab, dim), jnp.float32),
        "norm_g": jnp.ones((1, dim), jnp.float32),
        "norm_b": jnp.zeros((1, dim), jnp.float32),
    }
    kw, kb = jax.random.split(keys[1])
    params["out_w"] = 0.05 * jax.random.normal(kw, (vocab, dim), jnp.float32)
    params["out_b"] = 0.02 * jax.random.normal(kb, (1, vocab), jnp.float32)
    layers = []
    for l in range(n_layers):
        k = jax.random.split(keys[2 + l], 12)
        lp = {
            "sa_in_w": 0.08 * jax.random.normal(k[0], (3 * dim, dim), jnp.float32),
            "sa_in_b": 0.02 * jax.random.normal(k[1], (1, 3 * dim), jnp.float32),
            "sa_out_w": 0.08 * jax.random.normal(k[2], (dim, dim), jnp.float32),
            "sa_out_b": 0.02 * jax.random.normal(k[3], (1, dim), jnp.float32),
            "ca_in_w": 0.08 * jax.random.normal(k[4], (3 * dim, dim), jnp.float32),
            "ca_in_b": 0.02 * jax.random.normal(k[5], (1, 3 * dim), jnp.float32),
            "ca_out_w": 0.08 * jax.random.normal(k[6], (dim, dim), jnp.float32),
            "ca_out_b": 0.02 * jax.random.normal(k[7], (1, dim), jnp.float32),
            "ln1_g": jnp.ones((1, dim), jnp.float32),
            "ln1_b": jnp.zeros((1, dim), jnp.float32),
            "ln2_g": jnp.ones((1, dim), jnp.float32),
            "ln2_b": jnp.zeros((1, dim), jnp.float32),
            "ln3_g": jnp.ones((1, dim), jnp.float32),
            "ln3_b": jnp.zeros((1, dim), jnp.float32),
            "ff_w1": 0.05 * jax.random.normal(k[8], (ff, dim), jnp.float32),
            "ff_b1": 0.02 * jax.random.normal(k[9], (1, ff), jnp.float32),
            "ff_w2": 0.05 * jax.random.normal(k[10], (dim, ff), jnp.float32),
            "ff_b2": 0.02 * jax.random.normal(k[11], (1, dim), jnp.float32),
        }
        layers.append(lp)
    params["layers"] = layers
    return params


if __name__ == "__main__":
    SEQ, BATCH = 8, 2
    DIM, HEADS, LAYERS, VOCAB = 32, 4, 2, 64
    FF = 2048  # nn.TransformerDecoderLayer default dim_feedforward

    key = jax.random.PRNGKey(0)
    kp, kt = jax.random.split(key)
    params = init_params(kp, VOCAB, DIM, LAYERS, HEADS, FF)
    prepped = prepare_weights(params)
    tokens = jax.random.randint(kt, (SEQ, BATCH), 0, VOCAB, dtype=jnp.int32)

    out = jax.block_until_ready(transformer_forward(tokens, prepped, HEADS))
    assert out.shape == (SEQ, BATCH, VOCAB), out.shape

    ref = jax.block_until_ready(_ref_forward(tokens, params, HEADS))
    max_diff = float(jnp.max(jnp.abs(out - ref)))
    if not np.allclose(np.asarray(out), np.asarray(ref), rtol=5e-2, atol=5e-2):
        raise AssertionError(f"mismatch vs pure-JAX reference, max abs diff={max_diff}")
    print("KERNEL_OK")
</pallas_src>

<mosaic_0001>
module attributes {stable_mosaic.version = 11 : i64} {
  func.func @_layers_kernel(%arg0: i32, %arg1: memref<16x32xf32, #tpu.memory_space<vmem>>, %arg2: memref<1x32x96xbf16, #tpu.memory_space<vmem>>, %arg3: memref<1x1x96xf32, #tpu.memory_space<vmem>>, %arg4: memref<1x32x32xbf16, #tpu.memory_space<vmem>>, %arg5: memref<1x1x32xf32, #tpu.memory_space<vmem>>, %arg6: memref<1x32x32xbf16, #tpu.memory_space<vmem>>, %arg7: memref<1x1x32xf32, #tpu.memory_space<vmem>>, %arg8: memref<1x32x64xbf16, #tpu.memory_space<vmem>>, %arg9: memref<1x1x64xf32, #tpu.memory_space<vmem>>, %arg10: memref<1x32x32xbf16, #tpu.memory_space<vmem>>, %arg11: memref<1x1x32xf32, #tpu.memory_space<vmem>>, %arg12: memref<1x1x32xf32, #tpu.memory_space<vmem>>, %arg13: memref<1x1x32xf32, #tpu.memory_space<vmem>>, %arg14: memref<1x1x32xf32, #tpu.memory_space<vmem>>, %arg15: memref<1x1x32xf32, #tpu.memory_space<vmem>>, %arg16: memref<1x1x32xf32, #tpu.memory_space<vmem>>, %arg17: memref<1x1x32xf32, #tpu.memory_space<vmem>>, %arg18: memref<1x32x2048xbf16, #tpu.memory_space<vmem>>, %arg19: memref<1x1x2048xf32, #tpu.memory_space<vmem>>, %arg20: memref<1x2048x32xbf16, #tpu.memory_space<vmem>>, %arg21: memref<1x1x32xf32, #tpu.memory_space<vmem>>, %arg22: memref<1x32xf32, #tpu.memory_space<vmem>>, %arg23: memref<1x32xf32, #tpu.memory_space<vmem>>, %arg24: memref<16x32xf32, #tpu.memory_space<vmem>>, %arg25: memref<16x32xf32, #tpu.memory_space<vmem>>) attributes {dimension_semantics = [#tpu.dimension_semantics<arbitrary>], iteration_bounds = array<i64: 2>, scalar_prefetch = 0 : i64, scratch_operands = 1 : i64, tpu.core_type = #tpu.core_type<tc>, window_params = [{pipeline_mode = #tpu.pipeline_mode<synchronous>, transform_indices = @transform_0, window_bounds = array<i64: 16, 32>}, {transform_indices = @transform_1, window_bounds = array<i64: 1, 32, 96>}, {transform_indices = @transform_2, window_bounds = array<i64: 1, 1, 96>}, {transform_indices = @transform_3, window_bounds = array<i64: 1, 32, 32>}, {transform_indices = @transform_4, window_bounds = array<i64: 1, 1, 32>}, {transform_indices = @transform_5, window_bounds = array<i64: 1, 32, 32>}, {transform_indices = @transform_6, window_bounds = array<i64: 1, 1, 32>}, {transform_indices = @transform_7, window_bounds = array<i64: 1, 32, 64>}, {transform_indices = @transform_8, window_bounds = array<i64: 1, 1, 64>}, {transform_indices = @transform_9, window_bounds = array<i64: 1, 32, 32>}, {transform_indices = @transform_10, window_bounds = array<i64: 1, 1, 32>}, {transform_indices = @transform_11, window_bounds = array<i64: 1, 1, 32>}, {transform_indices = @transform_12, window_bounds = array<i64: 1, 1, 32>}, {transform_indices = @transform_13, window_bounds = array<i64: 1, 1, 32>}, {transform_indices = @transform_14, window_bounds = array<i64: 1, 1, 32>}, {transform_indices = @transform_15, window_bounds = array<i64: 1, 1, 32>}, {transform_indices = @transform_16, window_bounds = array<i64: 1, 1, 32>}, {transform_indices = @transform_17, window_bounds = array<i64: 1, 32, 2048>}, {transform_indices = @transform_18, window_bounds = array<i64: 1, 1, 2048>}, {transform_indices = @transform_19, window_bounds = array<i64: 1, 2048, 32>}, {transform_indices = @transform_20, window_bounds = array<i64: 1, 1, 32>}, {pipeline_mode = #tpu.pipeline_mode<synchronous>, transform_indices = @transform_21, window_bounds = array<i64: 1, 32>}, {pipeline_mode = #tpu.pipeline_mode<synchronous>, transform_indices = @transform_22, window_bounds = array<i64: 1, 32>}, {pipeline_mode = #tpu.pipeline_mode<synchronous>, transform_indices = @transform_23, window_bounds = array<i64: 16, 32>}]} {
    %c0_i32 = arith.constant 0 : i32
    %0 = arith.cmpi eq, %arg0, %c0_i32 : i32
    %1 = arith.extui %0 : i1 to i32
    %c0_i32_0 = arith.constant 0 : i32
    %2 = arith.cmpi ne, %1, %c0_i32_0 : i32
    scf.if %2 {
      %c0_121 = arith.constant 0 : index
      %c0_122 = arith.constant 0 : index
      %318 = vector.load %arg1[%c0_121, %c0_122] : memref<16x32xf32, #tpu.memory_space<vmem>>, vector<16x32xf32>
      %c0_123 = arith.constant 0 : index
      %c0_124 = arith.constant 0 : index
      %319 = vector.load %arg25[%c0_123, %c0_124] : memref<16x32xf32, #tpu.memory_space<vmem>>, vector<16x32xf32>
      tpu.vector_store %arg25[%c0_123, %c0_124], %318 {strides = array<i32>} : memref<16x32xf32, #tpu.memory_space<vmem>>, vector<16x32xf32>,
    } else {
    }
    %c0 = arith.constant 0 : index
    %c0_1 = arith.constant 0 : index
    %3 = vector.load %arg25[%c0, %c0_1] : memref<16x32xf32, #tpu.memory_space<vmem>>, vector<16x32xf32>
    %c0_2 = arith.constant 0 : index
    %c0_3 = arith.constant 0 : index
    %c0_4 = arith.constant 0 : index
    %4 = vector.load %arg2[%c0_2, %c0_3, %c0_4] : memref<1x32x96xbf16, #tpu.memory_space<vmem>>, vector<1x32x96xbf16>
    %5 = vector.shape_cast %4 : vector<1x32x96xbf16> to vector<32x96xbf16>
    %6 = arith.truncf %3 : vector<16x32xf32> to vector<16x32xbf16>
    %cst = arith.constant dense<0.000000e+00> : vector<16x96xf32>
    %7 = tpu.matmul %6, %5, %cst {dimension_numbers = #tpu.dot_dimension_numbers<[1], [0], [0], [1], [0, 0, 1, 1], [], []>} : vector<16x32xbf16>, vector<32x96xbf16>, vector<16x96xf32> -> vector<16x96xf32>
    %c0_5 = arith.constant 0 : index
    %c0_6 = arith.constant 0 : index
    %c0_7 = arith.constant 0 : index
    %8 = vector.load %arg3[%c0_5, %c0_6, %c0_7] : memref<1x1x96xf32, #tpu.memory_space<vmem>>, vector<1x1x96xf32>
    %9 = vector.shape_cast %8 : vector<1x1x96xf32> to vector<1x96xf32>
    %10 = vector.broadcast %9 : vector<1x96xf32> to vector<16x96xf32>
    %11 = arith.addf %7, %10 : vector<16x96xf32>
    %12 = vector.extract_strided_slice %11 {offsets = [0, 0], sizes = [16, 32], strides = [1, 1]} : vector<16x96xf32> to vector<16x32xf32>
    %13 = vector.extract_strided_slice %11 {offsets = [0, 32], sizes = [16, 32], strides = [1, 1]} : vector<16x96xf32> to vector<16x32xf32>
    %14 = vector.extract_strided_slice %11 {offsets = [0, 64], sizes = [16, 32], strides = [1, 1]} : vector<16x96xf32> to vector<16x32xf32>
    %c0_8 = arith.constant 0 : index
    %c0_9 = arith.constant 0 : index
    %c0_10 = arith.constant 0 : index
    %15 = vector.load %arg4[%c0_8, %c0_9, %c0_10] : memref<1x32x32xbf16, #tpu.memory_space<vmem>>, vector<1x32x32xbf16>
    %16 = vector.shape_cast %15 : vector<1x32x32xbf16> to vector<32x32xbf16>
    %c0_11 = arith.constant 0 : index
    %c0_12 = arith.constant 0 : index
    %c0_13 = arith.constant 0 : index
    %17 = vector.load %arg5[%c0_11, %c0_12, %c0_13] : memref<1x1x32xf32, #tpu.memory_space<vmem>>, vector<1x1x32xf32>
    %18 = vector.shape_cast %17 : vector<1x1x32xf32> to vector<1x32xf32>
    %cst_14 = arith.constant 0.353553385 : f32
    %19 = vector.broadcast %cst_14 : f32 to vector<16x32xf32>
    %20 = arith.mulf %12, %19 : vector<16x32xf32>
    %21 = vector.shape_cast %20 : vector<16x32xf32> to vector<2x8x32xf32>
    %22 = vector.shape_cast %13 : vector<16x32xf32> to vector<2x8x32xf32>
    %23 = vector.shape_cast %14 : vector<16x32xf32> to vector<2x8x32xf32>
    %24 = vector.extract_strided_slice %21 {offsets = [0, 0, 0], sizes = [2, 8, 8], strides = [1, 1, 1]} : vector<2x8x32xf32> to vector<2x8x8xf32>
    %25 = arith.truncf %24 : vector<2x8x8xf32> to vector<2x8x8xbf16>
    %26 = vector.extract_strided_slice %22 {offsets = [0, 0, 0], sizes = [2, 8, 8], strides = [1, 1, 1]} : vector<2x8x32xf32> to vector<2x8x8xf32>
    %27 = arith.truncf %26 : vector<2x8x8xf32> to vector<2x8x8xbf16>
    %28 = vector.extract_strided_slice %23 {offsets = [0, 0, 0], sizes = [2, 8, 8], strides = [1, 1, 1]} : vector<2x8x32xf32> to vector<2x8x8xf32>
    %29 = arith.truncf %28 : vector<2x8x8xf32> to vector<2x8x8xbf16>
    "tpu.trace_start"() <{level = 10 : i32, message = "bqd,bkd->bqk"}> : () -> ()
    %cst_15 = arith.constant dense<0.000000e+00> : vector<2x8x8xf32>
    %30 = tpu.matmul %25, %27, %cst_15 {dimension_numbers = #tpu.dot_dimension_numbers<[2], [2], [1], [1], [0, 0, 0, 1, 1, 1], [0], [0]>} : vector<2x8x8xbf16>, vector<2x8x8xbf16>, vector<2x8x8xf32> -> vector<2x8x8xf32>
    "tpu.trace_stop"() : () -> ()
    %cst_16 = arith.constant dense<0xFF800000> : vector<2x8xf32>
    %31 = vector.multi_reduction <maximumf>, %30, %cst_16 [2] : vector<2x8x8xf32> to vector<2x8xf32>
    %32 = vector.shape_cast %31 : vector<2x8xf32> to vector<2x8x1xf32>
    %33 = vector.broadcast %32 : vector<2x8x1xf32> to vector<2x8x8xf32>
    %34 = arith.subf %30, %33 : vector<2x8x8xf32>
    %35 = math.exp %34 : vector<2x8x8xf32>
    %cst_17 = arith.constant dense<0.000000e+00> : vector<2x8xf32>
    %36 = vector.multi_reduction <add>, %35, %cst_17 [2] : vector<2x8x8xf32> to vector<2x8xf32>
    %37 = vector.shape_cast %36 : vector<2x8xf32> to vector<2x8x1xf32>
    %38 = tpu.reciprocal %37 {approx = true} : vector<2x8x1xf32> -> vector<2x8x1xf32>
    %39 = vector.broadcast %38 : vector<2x8x1xf32> to vector<2x8x8xf32>
    %40 = arith.mulf %35, %39 : vector<2x8x8xf32>
    %41 = arith.truncf %40 : vector<2x8x8xf32> to vector<2x8x8xbf16>
    "tpu.trace_start"() <{level = 10 : i32, message = "bqk,bkd->bqd"}> : () -> ()
    %cst_18 = arith.constant dense<0.000000e+00> : vector<2x8x8xf32>
    %42 = tpu.matmul %41, %29, %cst_18 {dimension_numbers = #tpu.dot_dimension_numbers<[2], [1], [1], [2], [0, 0, 0, 1, 1, 2], [0], [0]>} : vector<2x8x8xbf16>, vector<2x8x8xbf16>, vector<2x8x8xf32> -> vector<2x8x8xf32>
    "tpu.trace_stop"() : () -> ()
    %43 = vector.extract_strided_slice %21 {offsets = [0, 0, 8], sizes = [2, 8, 8], strides = [1, 1, 1]} : vector<2x8x32xf32> to vector<2x8x8xf32>
    %44 = arith.truncf %43 : vector<2x8x8xf32> to vector<2x8x8xbf16>
    %45 = vector.extract_strided_slice %22 {offsets = [0, 0, 8], sizes = [2, 8, 8], strides = [1, 1, 1]} : vector<2x8x32xf32> to vector<2x8x8xf32>
    %46 = arith.truncf %45 : vector<2x8x8xf32> to vector<2x8x8xbf16>
    %47 = vector.extract_strided_slice %23 {offsets = [0, 0, 8], sizes = [2, 8, 8], strides = [1, 1, 1]} : vector<2x8x32xf32> to vector<2x8x8xf32>
    %48 = arith.truncf %47 : vector<2x8x8xf32> to vector<2x8x8xbf16>
    "tpu.trace_start"() <{level = 10 : i32, message = "bqd,bkd->bqk"}> : () -> ()
    %cst_19 = arith.constant dense<0.000000e+00> : vector<2x8x8xf32>
    %49 = tpu.matmul %44, %46, %cst_19 {dimension_numbers = #tpu.dot_dimension_numbers<[2], [2], [1], [1], [0, 0, 0, 1, 1, 1], [0], [0]>} : vector<2x8x8xbf16>, vector<2x8x8xbf16>, vector<2x8x8xf32> -> vector<2x8x8xf32>
    "tpu.trace_stop"() : () -> ()
    %cst_20 = arith.constant dense<0xFF800000> : vector<2x8xf32>
    %50 = vector.multi_reduction <maximumf>, %49, %cst_20 [2] : vector<2x8x8xf32> to vector<2x8xf32>
    %51 = vector.shape_cast %50 : vector<2x8xf32> to vector<2x8x1xf32>
    %52 = vector.broadcast %51 : vector<2x8x1xf32> to vector<2x8x8xf32>
    %53 = arith.subf %49, %52 : vector<2x8x8xf32>
    %54 = math.exp %53 : vector<2x8x8xf32>
    %cst_21 = arith.constant dense<0.000000e+00> : vector<2x8xf32>
    %55 = vector.multi_reduction <add>, %54, %cst_21 [2] : vector<2x8x8xf32> to vector<2x8xf32>
    %56 = vector.shape_cast %55 : vector<2x8xf32> to vector<2x8x1xf32>
    %57 = tpu.reciprocal %56 {approx = true} : vector<2x8x1xf32> -> vector<2x8x1xf32>
    %58 = vector.broadcast %57 : vector<2x8x1xf32> to vector<2x8x8xf32>
    %59 = arith.mulf %54, %58 : vector<2x8x8xf32>
    %60 = arith.truncf %59 : vector<2x8x8xf32> to vector<2x8x8xbf16>
    "tpu.trace_start"() <{level = 10 : i32, message = "bqk,bkd->bqd"}> : () -> ()
    %cst_22 = arith.constant dense<0.000000e+00> : vector<2x8x8xf32>
    %61 = tpu.matmul %60, %48, %cst_22 {dimension_numbers = #tpu.dot_dimension_numbers<[2], [1], [1], [2], [0, 0, 0, 1, 1, 2], [0], [0]>} : vector<2x8x8xbf16>, vector<2x8x8xbf16>, vector<2x8x8xf32> -> vector<2x8x8xf32>
    "tpu.trace_stop"() : () -> ()
    %62 = vector.extract_strided_slice %21 {offsets = [0, 0, 16], sizes = [2, 8, 8], strides = [1, 1, 1]} : vector<2x8x32xf32> to vector<2x8x8xf32>
    %63 = arith.truncf %62 : vector<2x8x8xf32> to vector<2x8x8xbf16>
    %64 = vector.extract_strided_slice %22 {offsets = [0, 0, 16], sizes = [2, 8, 8], strides = [1, 1, 1]} : vector<2x8x32xf32> to vector<2x8x8xf32>
    %65 = arith.truncf %64 : vector<2x8x8xf32> to vector<2x8x8xbf16>
    %66 = vector.extract_strided_slice %23 {offsets = [0, 0, 16], sizes = [2, 8, 8], strides = [1, 1, 1]} : vector<2x8x32xf32> to vector<2x8x8xf32>
    %67 = arith.truncf %66 : vector<2x8x8xf32> to vector<2x8x8xbf16>
    "tpu.trace_start"() <{level = 10 : i32, message = "bqd,bkd->bqk"}> : () -> ()
    %cst_23 = arith.constant dense<0.000000e+00> : vector<2x8x8xf32>
    %68 = tpu.matmul %63, %65, %cst_23 {dimension_numbers = #tpu.dot_dimension_numbers<[2], [2], [1], [1], [0, 0, 0, 1, 1, 1], [0], [0]>} : vector<2x8x8xbf16>, vector<2x8x8xbf16>, vector<2x8x8xf32> -> vector<2x8x8xf32>
    "tpu.trace_stop"() : () -> ()
    %cst_24 = arith.constant dense<0xFF800000> : vector<2x8xf32>
    %69 = vector.multi_reduction <maximumf>, %68, %cst_24 [2] : vector<2x8x8xf32> to vector<2x8xf32>
    %70 = vector.shape_cast %69 : vector<2x8xf32> to vector<2x8x1xf32>
    %71 = vector.broadcast %70 : vector<2x8x1xf32> to vector<2x8x8xf32>
    %72 = arith.subf %68, %71 : vector<2x8x8xf32>
    %73 = math.exp %72 : vector<2x8x8xf32>
    %cst_25 = arith.constant dense<0.000000e+00> : vector<2x8xf32>
    %74 = vector.multi_reduction <add>, %73, %cst_25 [2] : vector<2x8x8xf32> to vector<2x8xf32>
    %75 = vector.shape_cast %74 : vector<2x8xf32> to vector<2x8x1xf32>
    %76 = tpu.reciprocal %75 {approx = true} : vector<2x8x1xf32> -> vector<2x8x1xf32>
    %77 = vector.broadcast %76 : vector<2x8x1xf32> to vector<2x8x8xf32>
    %78 = arith.mulf %73, %77 : vector<2x8x8xf32>
    %79 = arith.truncf %78 : vector<2x8x8xf32> to vector<2x8x8xbf16>
    "tpu.trace_start"() <{level = 10 : i32, message = "bqk,bkd->bqd"}> : () -> ()
    %cst_26 = arith.constant dense<0.000000e+00> : vector<2x8x8xf32>
    %80 = tpu.matmul %79, %67, %cst_26 {dimension_numbers = #tpu.dot_dimension_numbers<[2], [1], [1], [2], [0, 0, 0, 1, 1, 2], [0], [0]>} : vector<2x8x8xbf16>, vector<2x8x8xbf16>, vector<2x8x8xf32> -> vector<2x8x8xf32>
    "tpu.trace_stop"() : () -> ()
    %81 = vector.extract_strided_slice %21 {offsets = [0, 0, 24], sizes = [2, 8, 8], strides = [1, 1, 1]} : vector<2x8x32xf32> to vector<2x8x8xf32>
    %82 = arith.truncf %81 : vector<2x8x8xf32> to vector<2x8x8xbf16>
    %83 = vector.extract_strided_slice %22 {offsets = [0, 0, 24], sizes = [2, 8, 8], strides = [1, 1, 1]} : vector<2x8x32xf32> to vector<2x8x8xf32>
    %84 = arith.truncf %83 : vector<2x8x8xf32> to vector<2x8x8xbf16>
    %85 = vector.extract_strided_slice %23 {offsets = [0, 0, 24], sizes = [2, 8, 8], strides = [1, 1, 1]} : vector<2x8x32xf32> to vector<2x8x8xf32>
    %86 = arith.truncf %85 : vector<2x8x8xf32> to vector<2x8x8xbf16>
    "tpu.trace_start"() <{level = 10 : i32, message = "bqd,bkd->bqk"}> : () -> ()
    %cst_27 = arith.constant dense<0.000000e+00> : vector<2x8x8xf32>
    %87 = tpu.matmul %82, %84, %cst_27 {dimension_numbers = #tpu.dot_dimension_numbers<[2], [2], [1], [1], [0, 0, 0, 1, 1, 1], [0], [0]>} : vector<2x8x8xbf16>, vector<2x8x8xbf16>, vector<2x8x8xf32> -> vector<2x8x8xf32>
    "tpu.trace_stop"() : () -> ()
    %cst_28 = arith.constant dense<0xFF800000> : vector<2x8xf32>
    %88 = vector.multi_reduction <maximumf>, %87, %cst_28 [2] : vector<2x8x8xf32> to vector<2x8xf32>
    %89 = vector.shape_cast %88 : vector<2x8xf32> to vector<2x8x1xf32>
    %90 = vector.broadcast %89 : vector<2x8x1xf32> to vector<2x8x8xf32>
    %91 = arith.subf %87, %90 : vector<2x8x8xf32>
    %92 = math.exp %91 : vector<2x8x8xf32>
    %cst_29 = arith.constant dense<0.000000e+00> : vector<2x8xf32>
    %93 = vector.multi_reduction <add>, %92, %cst_29 [2] : vector<2x8x8xf32> to vector<2x8xf32>
    %94 = vector.shape_cast %93 : vector<2x8xf32> to vector<2x8x1xf32>
    %95 = tpu.reciprocal %94 {approx = true} : vector<2x8x1xf32> -> vector<2x8x1xf32>
    %96 = vector.broadcast %95 : vector<2x8x1xf32> to vector<2x8x8xf32>
    %97 = arith.mulf %92, %96 : vector<2x8x8xf32>
    %98 = arith.truncf %97 : vector<2x8x8xf32> to vector<2x8x8xbf16>
    "tpu.trace_start"() <{level = 10 : i32, message = "bqk,bkd->bqd"}> : () -> ()
    %cst_30 = arith.constant dense<0.000000e+00> : vector<2x8x8xf32>
    %99 = tpu.matmul %98, %86, %cst_30 {dimension_numbers = #tpu.dot_dimension_numbers<[2], [1], [1], [2], [0, 0, 0, 1, 1, 2], [0], [0]>} : vector<2x8x8xbf16>, vector<2x8x8xbf16>, vector<2x8x8xf32> -> vector<2x8x8xf32>
    "tpu.trace_stop"() : () -> ()
    %100 = tpu.concatenate %42, %61, %80, %99 in 2 : vector<2x8x8xf32>, vector<2x8x8xf32>, vector<2x8x8xf32>, vector<2x8x8xf32> -> vector<2x8x32xf32>
    %101 = vector.shape_cast %100 : vector<2x8x32xf32> to vector<16x32xf32>
    %102 = arith.truncf %101 : vector<16x32xf32> to vector<16x32xbf16>
    %cst_31 = arith.constant dense<0.000000e+00> : vector<16x32xf32>
    %103 = tpu.matmul %102, %16, %cst_31 {dimension_numbers = #tpu.dot_dimension_numbers<[1], [0], [0], [1], [0, 0, 1, 1], [], []>} : vector<16x32xbf16>, vector<32x32xbf16>, vector<16x32xf32> -> vector<16x32xf32>
    %104 = vector.broadcast %18 : vector<1x32xf32> to vector<16x32xf32>
    %105 = arith.addf %103, %104 : vector<16x32xf32>
    %106 = arith.addf %3, %105 : vector<16x32xf32>
    %c0_32 = arith.constant 0 : index
    %c0_33 = arith.constant 0 : index
    %c0_34 = arith.constant 0 : index
    %107 = vector.load %arg12[%c0_32, %c0_33, %c0_34] : memref<1x1x32xf32, #tpu.memory_space<vmem>>, vector<1x1x32xf32>
    %108 = vector.shape_cast %107 : vector<1x1x32xf32> to vector<1x32xf32>
    %c0_35 = arith.constant 0 : index
    %c0_36 = arith.constant 0 : index
    %c0_37 = arith.constant 0 : index
    %109 = vector.load %arg13[%c0_35, %c0_36, %c0_37] : memref<1x1x32xf32, #tpu.memory_space<vmem>>, vector<1x1x32xf32>
    %110 = vector.shape_cast %109 : vector<1x1x32xf32> to vector<1x32xf32>
    %cst_38 = arith.constant dense<0.000000e+00> : vector<16xf32>
    %111 = vector.multi_reduction <add>, %106, %cst_38 [1] : vector<16x32xf32> to vector<16xf32>
    %112 = vector.shape_cast %111 : vector<16xf32> to vector<16x1xf32>
    %cst_39 = arith.constant 3.200000e+01 : f32
    %113 = vector.broadcast %cst_39 : f32 to vector<16x1xf32>
    %114 = arith.divf %112, %113 : vector<16x1xf32>
    %115 = vector.broadcast %114 : vector<16x1xf32> to vector<16x32xf32>
    %116 = arith.subf %106, %115 : vector<16x32xf32>
    %117 = arith.mulf %116, %116 : vector<16x32xf32>
    %cst_40 = arith.constant dense<0.000000e+00> : vector<16xf32>
    %118 = vector.multi_reduction <add>, %117, %cst_40 [1] : vector<16x32xf32> to vector<16xf32>
    %119 = vector.shape_cast %118 : vector<16xf32> to vector<16x1xf32>
    %cst_41 = arith.constant 3.200000e+01 : f32
    %120 = vector.broadcast %cst_41 : f32 to vector<16x1xf32>
    %121 = arith.divf %119, %120 : vector<16x1xf32>
    %122 = vector.broadcast %114 : vector<16x1xf32> to vector<16x32xf32>
    %123 = arith.subf %106, %122 : vector<16x32xf32>
    %cst_42 = arith.constant 9.99999974E-6 : f32
    %124 = vector.broadcast %cst_42 : f32 to vector<16x1xf32>
    %125 = arith.addf %121, %124 : vector<16x1xf32>
    %126 = math.rsqrt %125 : vector<16x1xf32>
    %127 = vector.broadcast %126 : vector<16x1xf32> to vector<16x32xf32>
    %128 = arith.mulf %123, %127 : vector<16x32xf32>
    %129 = vector.broadcast %108 : vector<1x32xf32> to vector<16x32xf32>
    %130 = arith.mulf %128, %129 : vector<16x32xf32>
    %131 = vector.broadcast %110 : vector<1x32xf32> to vector<16x32xf32>
    %132 = arith.addf %130, %131 : vector<16x32xf32>
    %c0_43 = arith.constant 0 : index
    %c0_44 = arith.constant 0 : index
    %c0_45 = arith.constant 0 : index
    %133 = vector.load %arg6[%c0_43, %c0_44, %c0_45] : memref<1x32x32xbf16, #tpu.memory_space<vmem>>, vector<1x32x32xbf16>
    %134 = vector.shape_cast %133 : vector<1x32x32xbf16> to vector<32x32xbf16>
    %135 = arith.truncf %132 : vector<16x32xf32> to vector<16x32xbf16>
    %cst_46 = arith.constant dense<0.000000e+00> : vector<16x32xf32>
    %136 = tpu.matmul %135, %134, %cst_46 {dimension_numbers = #tpu.dot_dimension_numbers<[1], [0], [0], [1], [0, 0, 1, 1], [], []>} : vector<16x32xbf16>, vector<32x32xbf16>, vector<16x32xf32> -> vector<16x32xf32>
    %c0_47 = arith.constant 0 : index
    %c0_48 = arith.constant 0 : index
    %c0_49 = arith.constant 0 : index
    %137 = vector.load %arg7[%c0_47, %c0_48, %c0_49] : memref<1x1x32xf32, #tpu.memory_space<vmem>>, vector<1x1x32xf32>
    %138 = vector.shape_cast %137 : vector<1x1x32xf32> to vector<1x32xf32>
    %139 = vector.broadcast %138 : vector<1x32xf32> to vector<16x32xf32>
    %140 = arith.addf %136, %139 : vector<16x32xf32>
    %c0_50 = arith.constant 0 : index
    %c0_51 = arith.constant 0 : index
    %c0_52 = arith.constant 0 : index
    %141 = vector.load %arg8[%c0_50, %c0_51, %c0_52] : memref<1x32x64xbf16, #tpu.memory_space<vmem>>, vector<1x32x64xbf16>
    %142 = vector.shape_cast %141 : vector<1x32x64xbf16> to vector<32x64xbf16>
    %143 = arith.truncf %3 : vector<16x32xf32> to vector<16x32xbf16>
    %cst_53 = arith.constant dense<0.000000e+00> : vector<16x64xf32>
    %144 = tpu.matmul %143, %142, %cst_53 {dimension_numbers = #tpu.dot_dimension_numbers<[1], [0], [0], [1], [0, 0, 1, 1], [], []>} : vector<16x32xbf16>, vector<32x64xbf16>, vector<16x64xf32> -> vector<16x64xf32>
    %c0_54 = arith.constant 0 : index
    %c0_55 = arith.constant 0 : index
    %c0_56 = arith.constant 0 : index
    %145 = vector.load %arg9[%c0_54, %c0_55, %c0_56] : memref<1x1x64xf32, #tpu.memory_space<vmem>>, vector<1x1x64xf32>
    %146 = vector.shape_cast %145 : vector<1x1x64xf32> to vector<1x64xf32>
    %147 = vector.broadcast %146 : vector<1x64xf32> to vector<16x64xf32>
    %148 = arith.addf %144, %147 : vector<16x64xf32>
    %149 = vector.extract_strided_slice %148 {offsets = [0, 0], sizes = [16, 32], strides = [1, 1]} : vector<16x64xf32> to vector<16x32xf32>
    %150 = vector.extract_strided_slice %148 {offsets = [0, 32], sizes = [16, 32], strides = [1, 1]} : vector<16x64xf32> to vector<16x32xf32>
    %c0_57 = arith.constant 0 : index
    %c0_58 = arith.constant 0 : index
    %c0_59 = arith.constant 0 : index
    %151 = vector.load %arg10[%c0_57, %c0_58, %c0_59] : memref<1x32x32xbf16, #tpu.memory_space<vmem>>, vector<1x32x32xbf16>
    %152 = vector.shape_cast %151 : vector<1x32x32xbf16> to vector<32x32xbf16>
    %c0_60 = arith.constant 0 : index
    %c0_61 = arith.constant 0 : index
    %c0_62 = arith.constant 0 : index
    %153 = vector.load %arg11[%c0_60, %c0_61, %c0_62] : memref<1x1x32xf32, #tpu.memory_space<vmem>>, vector<1x1x32xf32>
    %154 = vector.shape_cast %153 : vector<1x1x32xf32> to vector<1x32xf32>
    %cst_63 = arith.constant 0.353553385 : f32
    %155 = vector.broadcast %cst_63 : f32 to vector<16x32xf32>
    %156 = arith.mulf %140, %155 : vector<16x32xf32>
    %157 = vector.shape_cast %156 : vector<16x32xf32> to vector<2x8x32xf32>
    %158 = vector.shape_cast %149 : vector<16x32xf32> to vector<2x8x32xf32>
    %159 = vector.shape_cast %150 : vector<16x32xf32> to vector<2x8x32xf32>
    %160 = vector.extract_strided_slice %157 {offsets = [0, 0, 0], sizes = [2, 8, 8], strides = [1, 1, 1]} : vector<2x8x32xf32> to vector<2x8x8xf32>
    %161 = arith.truncf %160 : vector<2x8x8xf32> to vector<2x8x8xbf16>
    %162 = vector.extract_strided_slice %158 {offsets = [0, 0, 0], sizes = [2, 8, 8], strides = [1, 1, 1]} : vector<2x8x32xf32> to vector<2x8x8xf32>
    %163 = arith.truncf %162 : vector<2x8x8xf32> to vector<2x8x8xbf16>
    %164 = vector.extract_strided_slice %159 {offsets = [0, 0, 0], sizes = [2, 8, 8], strides = [1, 1, 1]} : vector<2x8x32xf32> to vector<2x8x8xf32>
    %165 = arith.truncf %164 : vector<2x8x8xf32> to vector<2x8x8xbf16>
    "tpu.trace_start"() <{level = 10 : i32, message = "bqd,bkd->bqk"}> : () -> ()
    %cst_64 = arith.constant dense<0.000000e+00> : vector<2x8x8xf32>
    %166 = tpu.matmul %161, %163, %cst_64 {dimension_numbers = #tpu.dot_dimension_numbers<[2], [2], [1], [1], [0, 0, 0, 1, 1, 1], [0], [0]>} : vector<2x8x8xbf16>, vector<2x8x8xbf16>, vector<2x8x8xf32> -> vector<2x8x8xf32>
    "tpu.trace_stop"() : () -> ()
    %cst_65 = arith.constant dense<0xFF800000> : vector<2x8xf32>
    %167 = vector.multi_reduction <maximumf>, %166, %cst_65 [2] : vector<2x8x8xf32> to vector<2x8xf32>
    %168 = vector.shape_cast %167 : vector<2x8xf32> to vector<2x8x1xf32>
    %169 = vector.broadcast %168 : vector<2x8x1xf32> to vector<2x8x8xf32>
    %170 = arith.subf %166, %169 : vector<2x8x8xf32>
    %171 = math.exp %170 : vector<2x8x8xf32>
    %cst_66 = arith.constant dense<0.000000e+00> : vector<2x8xf32>
    %172 = vector.multi_reduction <add>, %171, %cst_66 [2] : vector<2x8x8xf32> to vector<2x8xf32>
    %173 = vector.shape_cast %172 : vector<2x8xf32> to vector<2x8x1xf32>
    %174 = tpu.reciprocal %173 {approx = true} : vector<2x8x1xf32> -> vector<2x8x1xf32>
    %175 = vector.broadcast %174 : vector<2x8x1xf32> to vector<2x8x8xf32>
    %176 = arith.mulf %171, %175 : vector<2x8x8xf32>
    %177 = arith.truncf %176 : vector<2x8x8xf32> to vector<2x8x8xbf16>
    "tpu.trace_start"() <{level = 10 : i32, message = "bqk,bkd->bqd"}> : () -> ()
    %cst_67 = arith.constant dense<0.000000e+00> : vector<2x8x8xf32>
    %178 = tpu.matmul %177, %165, %cst_67 {dimension_numbers = #tpu.dot_dimension_numbers<[2], [1], [1], [2], [0, 0, 0, 1, 1, 2], [0], [0]>} : vector<2x8x8xbf16>, vector<2x8x8xbf16>, vector<2x8x8xf32> -> vector<2x8x8xf32>
    "tpu.trace_stop"() : () -> ()
    %179 = vector.extract_strided_slice %157 {offsets = [0, 0, 8], sizes = [2, 8, 8], strides = [1, 1, 1]} : vector<2x8x32xf32> to vector<2x8x8xf32>
    %180 = arith.truncf %179 : vector<2x8x8xf32> to vector<2x8x8xbf16>
    %181 = vector.extract_strided_slice %158 {offsets = [0, 0, 8], sizes = [2, 8, 8], strides = [1, 1, 1]} : vector<2x8x32xf32> to vector<2x8x8xf32>
    %182 = arith.truncf %181 : vector<2x8x8xf32> to vector<2x8x8xbf16>
    %183 = vector.extract_strided_slice %159 {offsets = [0, 0, 8], sizes = [2, 8, 8], strides = [1, 1, 1]} : vector<2x8x32xf32> to vector<2x8x8xf32>
    %184 = arith.truncf %183 : vector<2x8x8xf32> to vector<2x8x8xbf16>
    "tpu.trace_start"() <{level = 10 : i32, message = "bqd,bkd->bqk"}> : () -> ()
    %cst_68 = arith.constant dense<0.000000e+00> : vector<2x8x8xf32>
    %185 = tpu.matmul %180, %182, %cst_68 {dimension_numbers = #tpu.dot_dimension_numbers<[2], [2], [1], [1], [0, 0, 0, 1, 1, 1], [0], [0]>} : vector<2x8x8xbf16>, vector<2x8x8xbf16>, vector<2x8x8xf32> -> vector<2x8x8xf32>
    "tpu.trace_stop"() : () -> ()
    %cst_69 = arith.constant dense<0xFF800000> : vector<2x8xf32>
    %186 = vector.multi_reduction <maximumf>, %185, %cst_69 [2] : vector<2x8x8xf32> to vector<2x8xf32>
    %187 = vector.shape_cast %186 : vector<2x8xf32> to vector<2x8x1xf32>
    %188 = vector.broadcast %187 : vector<2x8x1xf32> to vector<2x8x8xf32>
    %189 = arith.subf %185, %188 : vector<2x8x8xf32>
    %190 = math.exp %189 : vector<2x8x8xf32>
    %cst_70 = arith.constant dense<0.000000e+00> : vector<2x8xf32>
    %191 = vector.multi_reduction <add>, %190, %cst_70 [2] : vector<2x8x8xf32> to vector<2x8xf32>
    %192 = vector.shape_cast %191 : vector<2x8xf32> to vector<2x8x1xf32>
    %193 = tpu.reciprocal %192 {approx = true} : vector<2x8x1xf32> -> vector<2x8x1xf32>
    %194 = vector.broadcast %193 : vector<2x8x1xf32> to vector<2x8x8xf32>
    %195 = arith.mulf %190, %194 : vector<2x8x8xf32>
    %196 = arith.truncf %195 : vector<2x8x8xf32> to vector<2x8x8xbf16>
    "tpu.trace_start"() <{level = 10 : i32, message = "bqk,bkd->bqd"}> : () -> ()
    %cst_71 = arith.constant dense<0.000000e+00> : vector<2x8x8xf32>
    %197 = tpu.matmul %196, %184, %cst_71 {dimension_numbers = #tpu.dot_dimension_numbers<[2], [1], [1], [2], [0, 0, 0, 1, 1, 2], [0], [0]>} : vector<2x8x8xbf16>, vector<2x8x8xbf16>, vector<2x8x8xf32> -> vector<2x8x8xf32>
    "tpu.trace_stop"() : () -> ()
    %198 = vector.extract_strided_slice %157 {offsets = [0, 0, 16], sizes = [2, 8, 8], strides = [1, 1, 1]} : vector<2x8x32xf32> to vector<2x8x8xf32>
    %199 = arith.truncf %198 : vector<2x8x8xf32> to vector<2x8x8xbf16>
    %200 = vector.extract_strided_slice %158 {offsets = [0, 0, 16], sizes = [2, 8, 8], strides = [1, 1, 1]} : vector<2x8x32xf32> to vector<2x8x8xf32>
    %201 = arith.truncf %200 : vector<2x8x8xf32> to vector<2x8x8xbf16>
    %202 = vector.extract_strided_slice %159 {offsets = [0, 0, 16], sizes = [2, 8, 8], strides = [1, 1, 1]} : vector<2x8x32xf32> to vector<2x8x8xf32>
    %203 = arith.truncf %202 : vector<2x8x8xf32> to vector<2x8x8xbf16>
    "tpu.trace_start"() <{level = 10 : i32, message = "bqd,bkd->bqk"}> : () -> ()
    %cst_72 = arith.constant dense<0.000000e+00> : vector<2x8x8xf32>
    %204 = tpu.matmul %199, %201, %cst_72 {dimension_numbers = #tpu.dot_dimension_numbers<[2], [2], [1], [1], [0, 0, 0, 1, 1, 1], [0], [0]>} : vector<2x8x8xbf16>, vector<2x8x8xbf16>, vector<2x8x8xf32> -> vector<2x8x8xf32>
    "tpu.trace_stop"() : () -> ()
    %cst_73 = arith.constant dense<0xFF800000> : vector<2x8xf32>
    %205 = vector.multi_reduction <maximumf>, %204, %cst_73 [2] : vector<2x8x8xf32> to vector<2x8xf32>
    %206 = vector.shape_cast %205 : vector<2x8xf32> to vector<2x8x1xf32>
    %207 = vector.broadcast %206 : vector<2x8x1xf32> to vector<2x8x8xf32>
    %208 = arith.subf %204, %207 : vector<2x8x8xf32>
    %209 = math.exp %208 : vector<2x8x8xf32>
    %cst_74 = arith.constant dense<0.000000e+00> : vector<2x8xf32>
    %210 = vector.multi_reduction <add>, %209, %cst_74 [2] : vector<2x8x8xf32> to vector<2x8xf32>
    %211 = vector.shape_cast %210 : vector<2x8xf32> to vector<2x8x1xf32>
    %212 = tpu.reciprocal %211 {approx = true} : vector<2x8x1xf32> -> vector<2x8x1xf32>
    %213 = vector.broadcast %212 : vector<2x8x1xf32> to vector<2x8x8xf32>
    %214 = arith.mulf %209, %213 : vector<2x8x8xf32>
    %215 = arith.truncf %214 : vector<2x8x8xf32> to vector<2x8x8xbf16>
    "tpu.trace_start"() <{level = 10 : i32, message = "bqk,bkd->bqd"}> : () -> ()
    %cst_75 = arith.constant dense<0.000000e+00> : vector<2x8x8xf32>
    %216 = tpu.matmul %215, %203, %cst_75 {dimension_numbers = #tpu.dot_dimension_numbers<[2], [1], [1], [2], [0, 0, 0, 1, 1, 2], [0], [0]>} : vector<2x8x8xbf16>, vector<2x8x8xbf16>, vector<2x8x8xf32> -> vector<2x8x8xf32>
    "tpu.trace_stop"() : () -> ()
    %217 = vector.extract_strided_slice %157 {offsets = [0, 0, 24], sizes = [2, 8, 8], strides = [1, 1, 1]} : vector<2x8x32xf32> to vector<2x8x8xf32>
    %218 = arith.truncf %217 : vector<2x8x8xf32> to vector<2x8x8xbf16>
    %219 = vector.extract_strided_slice %158 {offsets = [0, 0, 24], sizes = [2, 8, 8], strides = [1, 1, 1]} : vector<2x8x32xf32> to vector<2x8x8xf32>
    %220 = arith.truncf %219 : vector<2x8x8xf32> to vector<2x8x8xbf16>
    %221 = vector.extract_strided_slice %159 {offsets = [0, 0, 24], sizes = [2, 8, 8], strides = [1, 1, 1]} : vector<2x8x32xf32> to vector<2x8x8xf32>
    %222 = arith.truncf %221 : vector<2x8x8xf32> to vector<2x8x8xbf16>
    "tpu.trace_start"() <{level = 10 : i32, message = "bqd,bkd->bqk"}> : () -> ()
    %cst_76 = arith.constant dense<0.000000e+00> : vector<2x8x8xf32>
    %223 = tpu.matmul %218, %220, %cst_76 {dimension_numbers = #tpu.dot_dimension_numbers<[2], [2], [1], [1], [0, 0, 0, 1, 1, 1], [0], [0]>} : vector<2x8x8xbf16>, vector<2x8x8xbf16>, vector<2x8x8xf32> -> vector<2x8x8xf32>
    "tpu.trace_stop"() : () -> ()
    %cst_77 = arith.constant dense<0xFF800000> : vector<2x8xf32>
    %224 = vector.multi_reduction <maximumf>, %223, %cst_77 [2] : vector<2x8x8xf32> to vector<2x8xf32>
    %225 = vector.shape_cast %224 : vector<2x8xf32> to vector<2x8x1xf32>
    %226 = vector.broadcast %225 : vector<2x8x1xf32> to vector<2x8x8xf32>
    %227 = arith.subf %223, %226 : vector<2x8x8xf32>
    %228 = math.exp %227 : vector<2x8x8xf32>
    %cst_78 = arith.constant dense<0.000000e+00> : vector<2x8xf32>
    %229 = vector.multi_reduction <add>, %228, %cst_78 [2] : vector<2x8x8xf32> to vector<2x8xf32>
    %230 = vector.shape_cast %229 : vector<2x8xf32> to vector<2x8x1xf32>
    %231 = tpu.reciprocal %230 {approx = true} : vector<2x8x1xf32> -> vector<2x8x1xf32>
    %232 = vector.broadcast %231 : vector<2x8x1xf32> to vector<2x8x8xf32>
    %233 = arith.mulf %228, %232 : vector<2x8x8xf32>
    %234 = arith.truncf %233 : vector<2x8x8xf32> to vector<2x8x8xbf16>
    "tpu.trace_start"() <{level = 10 : i32, message = "bqk,bkd->bqd"}> : () -> ()
    %cst_79 = arith.constant dense<0.000000e+00> : vector<2x8x8xf32>
    %235 = tpu.matmul %234, %222, %cst_79 {dimension_numbers = #tpu.dot_dimension_numbers<[2], [1], [1], [2], [0, 0, 0, 1, 1, 2], [0], [0]>} : vector<2x8x8xbf16>, vector<2x8x8xbf16>, vector<2x8x8xf32> -> vector<2x8x8xf32>
    "tpu.trace_stop"() : () -> ()
    %236 = tpu.concatenate %178, %197, %216, %235 in 2 : vector<2x8x8xf32>, vector<2x8x8xf32>, vector<2x8x8xf32>, vector<2x8x8xf32> -> vector<2x8x32xf32>
    %237 = vector.shape_cast %236 : vector<2x8x32xf32> to vector<16x32xf32>
    %238 = arith.truncf %237 : vector<16x32xf32> to vector<16x32xbf16>
    %cst_80 = arith.constant dense<0.000000e+00> : vector<16x32xf32>
    %239 = tpu.matmul %238, %152, %cst_80 {dimension_numbers = #tpu.dot_dimension_numbers<[1], [0], [0], [1], [0, 0, 1, 1], [], []>} : vector<16x32xbf16>, vector<32x32xbf16>, vector<16x32xf32> -> vector<16x32xf32>
    %240 = vector.broadcast %154 : vector<1x32xf32> to vector<16x32xf32>
    %241 = arith.addf %239, %240 : vector<16x32xf32>
    %242 = arith.addf %132, %241 : vector<16x32xf32>
    %c0_81 = arith.constant 0 : index
    %c0_82 = arith.constant 0 : index
    %c0_83 = arith.constant 0 : index
    %243 = vector.load %arg14[%c0_81, %c0_82, %c0_83] : memref<1x1x32xf32, #tpu.memory_space<vmem>>, vector<1x1x32xf32>
    %244 = vector.shape_cast %243 : vector<1x1x32xf32> to vector<1x32xf32>
    %c0_84 = arith.constant 0 : index
    %c0_85 = arith.constant 0 : index
    %c0_86 = arith.constant 0 : index
    %245 = vector.load %arg15[%c0_84, %c0_85, %c0_86] : memref<1x1x32xf32, #tpu.memory_space<vmem>>, vector<1x1x32xf32>
    %246 = vector.shape_cast %245 : vector<1x1x32xf32> to vector<1x32xf32>
    %cst_87 = arith.constant dense<0.000000e+00> : vector<16xf32>
    %247 = vector.multi_reduction <add>, %242, %cst_87 [1] : vector<16x32xf32> to vector<16xf32>
    %248 = vector.shape_cast %247 : vector<16xf32> to vector<16x1xf32>
    %cst_88 = arith.constant 3.200000e+01 : f32
    %249 = vector.broadcast %cst_88 : f32 to vector<16x1xf32>
    %250 = arith.divf %248, %249 : vector<16x1xf32>
    %251 = vector.broadcast %250 : vector<16x1xf32> to vector<16x32xf32>
    %252 = arith.subf %242, %251 : vector<16x32xf32>
    %253 = arith.mulf %252, %252 : vector<16x32xf32>
    %cst_89 = arith.constant dense<0.000000e+00> : vector<16xf32>
    %254 = vector.multi_reduction <add>, %253, %cst_89 [1] : vector<16x32xf32> to vector<16xf32>
    %255 = vector.shape_cast %254 : vector<16xf32> to vector<16x1xf32>
    %cst_90 = arith.constant 3.200000e+01 : f32
    %256 = vector.broadcast %cst_90 : f32 to vector<16x1xf32>
    %257 = arith.divf %255, %256 : vector<16x1xf32>
    %258 = vector.broadcast %250 : vector<16x1xf32> to vector<16x32xf32>
    %259 = arith.subf %242, %258 : vector<16x32xf32>
    %cst_91 = arith.constant 9.99999974E-6 : f32
    %260 = vector.broadcast %cst_91 : f32 to vector<16x1xf32>
    %261 = arith.addf %257, %260 : vector<16x1xf32>
    %262 = math.rsqrt %261 : vector<16x1xf32>
    %263 = vector.broadcast %262 : vector<16x1xf32> to vector<16x32xf32>
    %264 = arith.mulf %259, %263 : vector<16x32xf32>
    %265 = vector.broadcast %244 : vector<1x32xf32> to vector<16x32xf32>
    %266 = arith.mulf %264, %265 : vector<16x32xf32>
    %267 = vector.broadcast %246 : vector<1x32xf32> to vector<16x32xf32>
    %268 = arith.addf %266, %267 : vector<16x32xf32>
    %c0_92 = arith.constant 0 : index
    %c0_93 = arith.constant 0 : index
    %c0_94 = arith.constant 0 : index
    %269 = vector.load %arg18[%c0_92, %c0_93, %c0_94] : memref<1x32x2048xbf16, #tpu.memory_space<vmem>>, vector<1x32x2048xbf16>
    %270 = vector.shape_cast %269 : vector<1x32x2048xbf16> to vector<32x2048xbf16>
    %271 = arith.truncf %268 : vector<16x32xf32> to vector<16x32xbf16>
    %cst_95 = arith.constant dense<0.000000e+00> : vector<16x2048xf32>
    %272 = tpu.matmul %271, %270, %cst_95 {dimension_numbers = #tpu.dot_dimension_numbers<[1], [0], [0], [1], [0, 0, 1, 1], [], []>} : vector<16x32xbf16>, vector<32x2048xbf16>, vector<16x2048xf32> -> vector<16x2048xf32>
    %c0_96 = arith.constant 0 : index
    %c0_97 = arith.constant 0 : index
    %c0_98 = arith.constant 0 : index
    %273 = vector.load %arg19[%c0_96, %c0_97, %c0_98] : memref<1x1x2048xf32, #tpu.memory_space<vmem>>, vector<1x1x2048xf32>
    %274 = vector.shape_cast %273 : vector<1x1x2048xf32> to vector<1x2048xf32>
    %275 = vector.broadcast %274 : vector<1x2048xf32> to vector<16x2048xf32>
    %276 = arith.addf %272, %275 : vector<16x2048xf32>
    %cst_99 = arith.constant 0.000000e+00 : f32
    %277 = vector.broadcast %cst_99 : f32 to vector<16x2048xf32>
    %278 = arith.maximumf %276, %277 : vector<16x2048xf32>
    %c0_100 = arith.constant 0 : index
    %c0_101 = arith.constant 0 : index
    %c0_102 = arith.constant 0 : index
    %279 = vector.load %arg20[%c0_100, %c0_101, %c0_102] : memref<1x2048x32xbf16, #tpu.memory_space<vmem>>, vector<1x2048x32xbf16>
    %280 = vector.shape_cast %279 : vector<1x2048x32xbf16> to vector<2048x32xbf16>
    %281 = arith.truncf %278 : vector<16x2048xf32> to vector<16x2048xbf16>
    %cst_103 = arith.constant dense<0.000000e+00> : vector<16x32xf32>
    %282 = tpu.matmul %281, %280, %cst_103 {dimension_numbers = #tpu.dot_dimension_numbers<[1], [0], [0], [1], [0, 0, 1, 1], [], []>} : vector<16x2048xbf16>, vector<2048x32xbf16>, vector<16x32xf32> -> vector<16x32xf32>
    %c0_104 = arith.constant 0 : index
    %c0_105 = arith.constant 0 : index
    %c0_106 = arith.constant 0 : index
    %283 = vector.load %arg21[%c0_104, %c0_105, %c0_106] : memref<1x1x32xf32, #tpu.memory_space<vmem>>, vector<1x1x32xf32>
    %284 = vector.shape_cast %283 : vector<1x1x32xf32> to vector<1x32xf32>
    %285 = vector.broadcast %284 : vector<1x32xf32> to vector<16x32xf32>
    %286 = arith.addf %282, %285 : vector<16x32xf32>
    %287 = arith.addf %268, %286 : vector<16x32xf32>
    %c0_107 = arith.constant 0 : index
    %c0_108 = arith.constant 0 : index
    %c0_109 = arith.constant 0 : index
    %288 = vector.load %arg16[%c0_107, %c0_108, %c0_109] : memref<1x1x32xf32, #tpu.memory_space<vmem>>, vector<1x1x32xf32>
    %289 = vector.shape_cast %288 : vector<1x1x32xf32> to vector<1x32xf32>
    %c0_110 = arith.constant 0 : index
    %c0_111 = arith.constant 0 : index
    %c0_112 = arith.constant 0 : index
    %290 = vector.load %arg17[%c0_110, %c0_111, %c0_112] : memref<1x1x32xf32, #tpu.memory_space<vmem>>, vector<1x1x32xf32>
    %291 = vector.shape_cast %290 : vector<1x1x32xf32> to vector<1x32xf32>
    %cst_113 = arith.constant dense<0.000000e+00> : vector<16xf32>
    %292 = vector.multi_reduction <add>, %287, %cst_113 [1] : vector<16x32xf32> to vector<16xf32>
    %293 = vector.shape_cast %292 : vector<16xf32> to vector<16x1xf32>
    %cst_114 = arith.constant 3.200000e+01 : f32
    %294 = vector.broadcast %cst_114 : f32 to vector<16x1xf32>
    %295 = arith.divf %293, %294 : vector<16x1xf32>
    %296 = vector.broadcast %295 : vector<16x1xf32> to vector<16x32xf32>
    %297 = arith.subf %287, %296 : vector<16x32xf32>
    %298 = arith.mulf %297, %297 : vector<16x32xf32>
    %cst_115 = arith.constant dense<0.000000e+00> : vector<16xf32>
    %299 = vector.multi_reduction <add>, %298, %cst_115 [1] : vector<16x32xf32> to vector<16xf32>
    %300 = vector.shape_cast %299 : vector<16xf32> to vector<16x1xf32>
    %cst_116 = arith.constant 3.200000e+01 : f32
    %301 = vector.broadcast %cst_116 : f32 to vector<16x1xf32>
    %302 = arith.divf %300, %301 : vector<16x1xf32>
    %303 = vector.broadcast %295 : vector<16x1xf32> to vector<16x32xf32>
    %304 = arith.subf %287, %303 : vector<16x32xf32>
    %cst_117 = arith.constant 9.99999974E-6 : f32
    %305 = vector.broadcast %cst_117 : f32 to vector<16x1xf32>
    %306 = arith.addf %302, %305 : vector<16x1xf32>
    %307 = math.rsqrt %306 : vector<16x1xf32>
    %308 = vector.broadcast %307 : vector<16x1xf32> to vector<16x32xf32>
    %309 = arith.mulf %304, %308 : vector<16x32xf32>
    %310 = vector.broadcast %289 : vector<1x32xf32> to vector<16x32xf32>
    %311 = arith.mulf %309, %310 : vector<16x32xf32>
    %312 = vector.broadcast %291 : vector<1x32xf32> to vector<16x32xf32>
    %313 = arith.addf %311, %312 : vector<16x32xf32>
    %c0_118 = arith.constant 0 : index
    %c0_119 = arith.constant 0 : index
    %314 = vector.load %arg25[%c0_118, %c0_119] : memref<16x32xf32, #tpu.memory_space<vmem>>, vector<16x32xf32>
    tpu.vector_store %arg25[%c0_118, %c0_119], %313 {strides = array<i32>} : memref<16x32xf32, #tpu.memory_space<vmem>>, vector<16x32xf32>,
    %c1_i32 = arith.constant 1 : i32
    %315 = arith.cmpi eq, %arg0, %c1_i32 : i32
    %316 = arith.extui %315 : i1 to i32
    %c0_i32_120 = arith.constant 0 : i32
    %317 = arith.cmpi ne, %316, %c0_i32_120 : i32
    scf.if %317 {
      %c0_121 = arith.constant 0 : index
      %c0_122 = arith.constant 0 : index
      %318 = vector.load %arg22[%c0_121, %c0_122] : memref<1x32xf32, #tpu.memory_space<vmem>>, vector<1x32xf32>
      %c0_123 = arith.constant 0 : index
      %c0_124 = arith.constant 0 : index
      %319 = vector.load %arg23[%c0_123, %c0_124] : memref<1x32xf32, #tpu.memory_space<vmem>>, vector<1x32xf32>
      %cst_125 = arith.constant dense<0.000000e+00> : vector<16xf32>
      %320 = vector.multi_reduction <add>, %313, %cst_125 [1] : vector<16x32xf32> to vector<16xf32>
      %321 = vector.shape_cast %320 : vector<16xf32> to vector<16x1xf32>
      %cst_126 = arith.constant 3.200000e+01 : f32
      %322 = vector.broadcast %cst_126 : f32 to vector<16x1xf32>
      %323 = arith.divf %321, %322 : vector<16x1xf32>
      %324 = vector.broadcast %323 : vector<16x1xf32> to vector<16x32xf32>
      %325 = arith.subf %313, %324 : vector<16x32xf32>
      %326 = arith.mulf %325, %325 : vector<16x32xf32>
      %cst_127 = arith.constant dense<0.000000e+00> : vector<16xf32>
      %327 = vector.multi_reduction <add>, %326, %cst_127 [1] : vector<16x32xf32> to vector<16xf32>
      %328 = vector.shape_cast %327 : vector<16xf32> to vector<16x1xf32>
      %cst_128 = arith.constant 3.200000e+01 : f32
      %329 = vector.broadcast %cst_128 : f32 to vector<16x1xf32>
      %330 = arith.divf %328, %329 : vector<16x1xf32>
      %331 = vector.broadcast %323 : vector<16x1xf32> to vector<16x32xf32>
      %332 = arith.subf %313, %331 : vector<16x32xf32>
      %cst_129 = arith.constant 9.99999974E-6 : f32
      %333 = vector.broadcast %cst_129 : f32 to vector<16x1xf32>
      %334 = arith.addf %330, %333 : vector<16x1xf32>
      %335 = math.rsqrt %334 : vector<16x1xf32>
      %336 = vector.broadcast %335 : vector<16x1xf32> to vector<16x32xf32>
      %337 = arith.mulf %332, %336 : vector<16x32xf32>
      %338 = vector.broadcast %318 : vector<1x32xf32> to vector<16x32xf32>
      %339 = arith.mulf %337, %338 : vector<16x32xf32>
      %340 = vector.broadcast %319 : vector<1x32xf32> to vector<16x32xf32>
      %341 = arith.addf %339, %340 : vector<16x32xf32>
      %c0_130 = arith.constant 0 : index
      %c0_131 = arith.constant 0 : index
      %342 = vector.load %arg24[%c0_130, %c0_131] : memref<16x32xf32, #tpu.memory_space<vmem>>, vector<16x32xf32>
      tpu.vector_store %arg24[%c0_130, %c0_131], %341 {strides = array<i32>} : memref<16x32xf32, #tpu.memory_space<vmem>>, vector<16x32xf32>,
    } else {
    }
    return
  }
  func.func @transform_0(%arg0: i32) -> (i32, i32) {
    %c0_i32 = arith.constant 0 : i32
    %c0_i32_0 = arith.constant 0 : i32
    %c0_i32_1 = arith.constant 0 : i32
    return %c0_i32, %c0_i32_0 : i32, i32
  }
  func.func @transform_1(%arg0: i32) -> (i32, i32, i32) {
    %c0_i32 = arith.constant 0 : i32
    %c0_i32_0 = arith.constant 0 : i32
    %c0_i32_1 = arith.constant 0 : i32
    return %arg0, %c0_i32, %c0_i32_0 : i32, i32, i32
  }
  func.func @transform_2(%arg0: i32) -> (i32, i32, i32) {
    %c0_i32 = arith.constant 0 : i32
    %c0_i32_0 = arith.constant 0 : i32
    %c0_i32_1 = arith.constant 0 : i32
    return %arg0, %c0_i32, %c0_i32_0 : i32, i32, i32
  }
  func.func @transform_3(%arg0: i32) -> (i32, i32, i32) {
    %c0_i32 = arith.constant 0 : i32
    %c0_i32_0 = arith.constant 0 : i32
    %c0_i32_1 = arith.constant 0 : i32
    return %arg0, %c0_i32, %c0_i32_0 : i32, i32, i32
  }
  func.func @transform_4(%arg0: i32) -> (i32, i32, i32) {
    %c0_i32 = arith.constant 0 : i32
    %c0_i32_0 = arith.constant 0 : i32
    %c0_i32_1 = arith.constant 0 : i32
    return %arg0, %c0_i32, %c0_i32_0 : i32, i32, i32
  }
  func.func @transform_5(%arg0: i32) -> (i32, i32, i32) {
    %c0_i32 = arith.constant 0 : i32
    %c0_i32_0 = arith.constant 0 : i32
    %c0_i32_1 = arith.constant 0 : i32
    return %arg0, %c0_i32, %c0_i32_0 : i32, i32, i32
  }
  func.func @transform_6(%arg0: i32) -> (i32, i32, i32) {
    %c0_i32 = arith.constant 0 : i32
    %c0_i32_0 = arith.constant 0 : i32
    %c0_i32_1 = arith.constant 0 : i32
    return %arg0, %c0_i32, %c0_i32_0 : i32, i32, i32
  }
  func.func @transform_7(%arg0: i32) -> (i32, i32, i32) {
    %c0_i32 = arith.constant 0 : i32
    %c0_i32_0 = arith.constant 0 : i32
    %c0_i32_1 = arith.constant 0 : i32
    return %arg0, %c0_i32, %c0_i32_0 : i32, i32, i32
  }
  func.func @transform_8(%arg0: i32) -> (i32, i32, i32) {
    %c0_i32 = arith.constant 0 : i32
    %c0_i32_0 = arith.constant 0 : i32
    %c0_i32_1 = arith.constant 0 : i32
    return %arg0, %c0_i32, %c0_i32_0 : i32, i32, i32
  }
  func.func @transform_9(%arg0: i32) -> (i32, i32, i32) {
    %c0_i32 = arith.constant 0 : i32
    %c0_i32_0 = arith.constant 0 : i32
    %c0_i32_1 = arith.constant 0 : i32
    return %arg0, %c0_i32, %c0_i32_0 : i32, i32, i32
  }
  func.func @transform_10(%arg0: i32) -> (i32, i32, i32) {
    %c0_i32 = arith.constant 0 : i32
    %c0_i32_0 = arith.constant 0 : i32
    %c0_i32_1 = arith.constant 0 : i32
    return %arg0, %c0_i32, %c0_i32_0 : i32, i32, i32
  }
  func.func @transform_11(%arg0: i32) -> (i32, i32, i32) {
    %c0_i32 = arith.constant 0 : i32
    %c0_i32_0 = arith.constant 0 : i32
    %c0_i32_1 = arith.constant 0 : i32
    return %arg0, %c0_i32, %c0_i32_0 : i32, i32, i32
  }
  func.func @transform_12(%arg0: i32) -> (i32, i32, i32) {
    %c0_i32 = arith.constant 0 : i32
    %c0_i32_0 = arith.constant 0 : i32
    %c0_i32_1 = arith.constant 0 : i32
    return %arg0, %c0_i32, %c0_i32_0 : i32, i32, i32
  }
  func.func @transform_13(%arg0: i32) -> (i32, i32, i32) {
    %c0_i32 = arith.constant 0 : i32
    %c0_i32_0 = arith.constant 0 : i32
    %c0_i32_1 = arith.constant 0 : i32
    return %arg0, %c0_i32, %c0_i32_0 : i32, i32, i32
  }
  func.func @transform_14(%arg0: i32) -> (i32, i32, i32) {
    %c0_i32 = arith.constant 0 : i32
    %c0_i32_0 = arith.constant 0 : i32
    %c0_i32_1 = arith.constant 0 : i32
    return %arg0, %c0_i32, %c0_i32_0 : i32, i32, i32
  }
  func.func @transform_15(%arg0: i32) -> (i32, i32, i32) {
    %c0_i32 = arith.constant 0 : i32
    %c0_i32_0 = arith.constant 0 : i32
    %c0_i32_1 = arith.constant 0 : i32
    return %arg0, %c0_i32, %c0_i32_0 : i32, i32, i32
  }
  func.func @transform_16(%arg0: i32) -> (i32, i32, i32) {
    %c0_i32 = arith.constant 0 : i32
    %c0_i32_0 = arith.constant 0 : i32
    %c0_i32_1 = arith.constant 0 : i32
    return %arg0, %c0_i32, %c0_i32_0 : i32, i32, i32
  }
  func.func @transform_17(%arg0: i32) -> (i32, i32, i32) {
    %c0_i32 = arith.constant 0 : i32
    %c0_i32_0 = arith.constant 0 : i32
    %c0_i32_1 = arith.constant 0 : i32
    return %arg0, %c0_i32, %c0_i32_0 : i32, i32, i32
  }
  func.func @transform_18(%arg0: i32) -> (i32, i32, i32) {
    %c0_i32 = arith.constant 0 : i32
    %c0_i32_0 = arith.constant 0 : i32
    %c0_i32_1 = arith.constant 0 : i32
    return %arg0, %c0_i32, %c0_i32_0 : i32, i32, i32
  }
  func.func @transform_19(%arg0: i32) -> (i32, i32, i32) {
    %c0_i32 = arith.constant 0 : i32
    %c0_i32_0 = arith.constant 0 : i32
    %c0_i32_1 = arith.constant 0 : i32
    return %arg0, %c0_i32, %c0_i32_0 : i32, i32, i32
  }
  func.func @transform_20(%arg0: i32) -> (i32, i32, i32) {
    %c0_i32 = arith.constant 0 : i32
    %c0_i32_0 = arith.constant 0 : i32
    %c0_i32_1 = arith.constant 0 : i32
    return %arg0, %c0_i32, %c0_i32_0 : i32, i32, i32
  }
  func.func @transform_21(%arg0: i32) -> (i32, i32) {
    %c0_i32 = arith.constant 0 : i32
    %c0_i32_0 = arith.constant 0 : i32
    %c0_i32_1 = arith.constant 0 : i32
    return %c0_i32, %c0_i32_0 : i32, i32
  }
  func.func @transform_22(%arg0: i32) -> (i32, i32) {
    %c0_i32 = arith.constant 0 : i32
    %c0_i32_0 = arith.constant 0 : i32
    %c0_i32_1 = arith.constant 0 : i32
    return %c0_i32, %c0_i32_0 : i32, i32
  }
  func.func @transform_23(%arg0: i32) -> (i32, i32) {
    %c0_i32 = arith.constant 0 : i32
    %c0_i32_0 = arith.constant 0 : i32
    %c0_i32_1 = arith.constant 0 : i32
    return %c0_i32, %c0_i32_0 : i32, i32
  }
}

</mosaic_0001>

<llo_original>
// kernel: tpu_custom_call.1
$region0: #{tpu_custom_call.1}
  #allocation0 [shape = 'u32[]', space=smem, size = 0x4, offset = 0x4, fixed_abs, tag = 'smem constant byte address 0x4 - core index']
  #allocation1 [shape = 'u32[144,128]{1,0:T(1,128)}', space=vmem, size = 0x12000, scoped, tag = 'internal scratch']
  #allocation2 [shape = 'f32[16,32]{1,0:T(8,128)}', space=vmem, size = 0x2000, scoped, tag = 'scratch operand']
  %s0 = inlined_call_operand.vmem [shape: f32[16,32], index: 0, kind: input, shape index: {}]
  %s1 = inlined_call_operand.vmem [shape: bf16[2,32,96], index: 1, kind: input, shape index: {}]
  %s2 = inlined_call_operand.vmem [shape: f32[2,1,96], index: 2, kind: input, shape index: {}]
  %s3 = inlined_call_operand.vmem [shape: bf16[2,32,32], index: 3, kind: input, shape index: {}]
  %s4 = inlined_call_operand.vmem [shape: f32[2,1,32], index: 4, kind: input, shape index: {}]
  %s5 = inlined_call_operand.vmem [shape: bf16[2,32,32], index: 5, kind: input, shape index: {}]
  %s6 = inlined_call_operand.vmem [shape: f32[2,1,32], index: 6, kind: input, shape index: {}]
  %s7 = inlined_call_operand.vmem [shape: bf16[2,32,64], index: 7, kind: input, shape index: {}]
  %s8 = inlined_call_operand.vmem [shape: f32[2,1,64], index: 8, kind: input, shape index: {}]
  %s9 = inlined_call_operand.vmem [shape: bf16[2,32,32], index: 9, kind: input, shape index: {}]
  %s10 = inlined_call_operand.vmem [shape: f32[2,1,32], index: 10, kind: input, shape index: {}]
  %s11 = inlined_call_operand.vmem [shape: f32[2,1,32], index: 11, kind: input, shape index: {}]
  %s12 = inlined_call_operand.vmem [shape: f32[2,1,32], index: 12, kind: input, shape index: {}]
  %s13 = inlined_call_operand.vmem [shape: f32[2,1,32], index: 13, kind: input, shape index: {}]
  %s14 = inlined_call_operand.vmem [shape: f32[2,1,32], index: 14, kind: input, shape index: {}]
  %s15 = inlined_call_operand.vmem [shape: f32[2,1,32], index: 15, kind: input, shape index: {}]
  %s16 = inlined_call_operand.vmem [shape: f32[2,1,32], index: 16, kind: input, shape index: {}]
  %s17 = inlined_call_operand.vmem [shape: bf16[2,32,2048], index: 17, kind: input, shape index: {}]
  %s18 = inlined_call_operand.vmem [shape: f32[2,1,2048], index: 18, kind: input, shape index: {}]
  %s19 = inlined_call_operand.vmem [shape: bf16[2,2048,32], index: 19, kind: input, shape index: {}]
  %s20 = inlined_call_operand.vmem [shape: f32[2,1,32], index: 20, kind: input, shape index: {}]
  %s21 = inlined_call_operand.vmem [shape: f32[1,32], index: 21, kind: input, shape index: {}]
  %s22 = inlined_call_operand.vmem [shape: f32[1,32], index: 22, kind: input, shape index: {}]
  %s23 = inlined_call_operand.hbm [shape: f32[16,32], index: 23, kind: output, shape index: {}]
  %s24 = sld [smem:[#allocation0]]
  $region133: #{tpu_custom_call.1} parent=0
    _
  %s26 = ssub.s32 1, %s24
  %s27 = scalar_select 0, %s26, %s24
  $region1: #{tpu_custom_call.1} parent=0
    #allocation3 [shape = 'u8[8192]{0}', space=vmem, size = 0x2000, scoped, tag = 'output window, operand 0, single buffered']
    #allocation4 [shape = 's32[2]{0}', space=sflag, size = 0x8, scoped, tag = 'scoped memory for tpu_custom_call.1']
    %28 = vsyncpa [#allocation4], 0
    loop: start=0, step=1, limit=4
    $region2: #{tpu_custom_call.1} parent=1 // loop_pre_header
      _
    $region3: #{tpu_custom_call.1} parent=1 // loop_header
      %s30 = sphi 0, %s34
      %p31 = scmp.ge.s32.totalorder %s30, 4
      %s38 = sphi 0, %s38
      %s40 = sphi 0, %s38
      %s41 = sphi 0, %s40
      %s55 = sphi 0, %s41
      %s61 = sphi 0, %s63
      %s64 = sphi 0, %s61
      %s65 = sphi 0, %s64
      %s81 = sphi 0, %s65
      %s87 = sphi 0, %s89
      %s90 = sphi 0, %s87
      %s91 = sphi 0, %s90
      %s107 = sphi 0, %s91
      %s113 = sphi 0, %s115
      %s116 = sphi 0, %s113
      %s117 = sphi 0, %s116
      %s133 = sphi 0, %s117
      %s139 = sphi 0, %s141
      %s142 = sphi 0, %s139
      %s143 = sphi 0, %s142
      %s159 = sphi 0, %s143
      %s165 = sphi 0, %s167
      %s168 = sphi 0, %s165
      %s169 = sphi 0, %s168
      %s185 = sphi 0, %s169
      %s191 = sphi 0, %s193
      %s194 = sphi 0, %s191
      %s195 = sphi 0, %s194
      %s211 = sphi 0, %s195
      %s217 = sphi 0, %s219
      %s220 = sphi 0, %s217
      %s221 = sphi 0, %s220
      %s237 = sphi 0, %s221
      %s243 = sphi 0, %s245
      %s246 = sphi 0, %s243
      %s247 = sphi 0, %s246
      %s263 = sphi 0, %s247
      %s269 = sphi 0, %s271
      %s272 = sphi 0, %s269
      %s273 = sphi 0, %s272
      %s289 = sphi 0, %s273
      %s295 = sphi 0, %s297
      %s298 = sphi 0, %s295
      %s299 = sphi 0, %s298
      %s315 = sphi 0, %s299
      %s321 = sphi 0, %s323
      %s324 = sphi 0, %s321
      %s325 = sphi 0, %s324
      %s341 = sphi 0, %s325
      %s347 = sphi 0, %s349
      %s350 = sphi 0, %s347
      %s351 = sphi 0, %s350
      %s367 = sphi 0, %s351
      %s373 = sphi 0, %s375
      %s376 = sphi 0, %s373
      %s377 = sphi 0, %s376
      %s393 = sphi 0, %s377
      %s399 = sphi 0, %s401
      %s402 = sphi 0, %s399
      %s403 = sphi 0, %s402
      %s419 = sphi 0, %s403
      %s425 = sphi 0, %s427
      %s428 = sphi 0, %s425
      %s429 = sphi 0, %s428
      %s445 = sphi 0, %s429
      %s451 = sphi 0, %s453
      %s454 = sphi 0, %s451
      %s455 = sphi 0, %s454
      %s471 = sphi 0, %s455
      %s477 = sphi 0, %s479
      %s480 = sphi 0, %s477
      %s481 = sphi 0, %s480
      %s497 = sphi 0, %s481
      %s503 = sphi 0, %s505
      %s506 = sphi 0, %s503
      %s507 = sphi 0, %s506
      %s523 = sphi 0, %s507
      %s529 = sphi 0, %s531
      %s532 = sphi 0, %s529
      %s533 = sphi 0, %s532
      %s549 = sphi 0, %s533
      %s555 = sphi 0, %s557
      %s558 = sphi 0, %s555
      %s559 = sphi 0, %s558
      %s575 = sphi 0, %s559
      %s579 = sphi 0, %s579
      %s581 = sphi 0, %s579
      %s582 = sphi 0, %s581
      %s596 = sphi 0, %s582
      %s600 = sphi 0, %s600
      %s602 = sphi 0, %s600
      %s603 = sphi 0, %s602
      %s617 = sphi 0, %s603
      %s621 = sphi 0, %s621
      %s623 = sphi 0, %s621
      %s624 = sphi 0, %s623
      %s638 = sphi 0, %s624
    $region4: #{tpu_custom_call.1} parent=1 // loop_header_branch
      %33 = sbr.rel (%p31) target = $region8
    $region5: #{tpu_custom_call.1} parent=1 // loop_body
      %s35 = ssub.s32 %s30, 1
      %s36 = ssub.s32 %s30, 2
      %s37 = sadd.s32 %s30, 1
      %s39 = sadd.s32 %s38, 1
      %p42 = scmp.eq.s32.totalorder %s30, 1
      %p43 = scmp.ne.s32.totalorder %s38, %s40
      %p44 = scmp.eq.s32.totalorder %s30, 0
      %p45 = por %p43, %p44
      %p46 = scmp.ne.s32.totalorder %s38, %s40
      %p47 = scmp.eq.s32.totalorder %s35, 1
      %p48 = por %p46, %p47
      %p49 = scmp.ne.s32.totalorder %s40, %s41
      %p50 = scmp.eq.s32.totalorder %s35, 0
      %p51 = por %p49, %p50
      %p52 = scmp.ne.s32.totalorder %s40, %s41
      %p53 = scmp.eq.s32.totalorder %s36, 1
      %p54 = por %p52, %p53
      %p56 = scmp.ne.s32.totalorder %s41, %s55
      %p57 = scmp.eq.s32.totalorder %s36, 0
      %p58 = por %p56, %p57
      %s59 = ssub.s32 %s30, %s37
      %p60 = scmp.eq.s32.totalorder %s59, 0
      %s62 = sadd.s32 %s61, 1
      %s63 = scalar_select %p60, %s61, %s62
      %p66 = pneg %p60
      %p67 = scmp.eq.s32.totalorder %s30, 1
      %p68 = por %p66, %p67
      %p69 = scmp.ne.s32.totalorder %s61, %s64
      %p70 = scmp.eq.s32.totalorder %s30, 0
      %p71 = por %p69, %p70
      %p72 = scmp.ne.s32.totalorder %s61, %s64
      %p73 = scmp.eq.s32.totalorder %s35, 1
      %p74 = por %p72, %p73
      %p75 = scmp.ne.s32.totalorder %s64, %s65
      %p76 = scmp.eq.s32.totalorder %s35, 0
      %p77 = por %p75, %p76
      %p78 = scmp.ne.s32.totalorder %s64, %s65
      %p79 = scmp.eq.s32.totalorder %s36, 1
      %p80 = por %p78, %p79
      %p82 = scmp.ne.s32.totalorder %s65, %s81
      %p83 = scmp.eq.s32.totalorder %s36, 0
      %p84 = por %p82, %p83
      %s85 = ssub.s32 %s30, %s37
      %p86 = scmp.eq.s32.totalorder %s85, 0
      %s88 = sadd.s32 %s87, 1
      %s89 = scalar_select %p86, %s87, %s88
      %p92 = pneg %p86
      %p93 = scmp.eq.s32.totalorder %s30, 1
      %p94 = por %p92, %p93
      %p95 = scmp.ne.s32.totalorder %s87, %s90
      %p96 = scmp.eq.s32.totalorder %s30, 0
      %p97 = por %p95, %p96
      %p98 = scmp.ne.s32.totalorder %s87, %s90
      %p99 = scmp.eq.s32.totalorder %s35, 1
      %p100 = por %p98, %p99
      %p101 = scmp.ne.s32.totalorder %s90, %s91
      %p102 = scmp.eq.s32.totalorder %s35, 0
      %p103 = por %p101, %p102
      %p104 = scmp.ne.s32.totalorder %s90, %s91
      %p105 = scmp.eq.s32.totalorder %s36, 1
      %p106 = por %p104, %p105
      %p108 = scmp.ne.s32.totalorder %s91, %s107
      %p109 = scmp.eq.s32.totalorder %s36, 0
      %p110 = por %p108, %p109
      %s111 = ssub.s32 %s30, %s37
      %p112 = scmp.eq.s32.totalorder %s111, 0
      %s114 = sadd.s32 %s113, 1
      %s115 = scalar_select %p112, %s113, %s114
      %p118 = pneg %p112
      %p119 = scmp.eq.s32.totalorder %s30, 1
      %p120 = por %p118, %p119
      %p121 = scmp.ne.s32.totalorder %s113, %s116
      %p122 = scmp.eq.s32.totalorder %s30, 0
      %p123 = por %p121, %p122
      %p124 = scmp.ne.s32.totalorder %s113, %s116
      %p125 = scmp.eq.s32.totalorder %s35, 1
      %p126 = por %p124, %p125
      %p127 = scmp.ne.s32.totalorder %s116, %s117
      %p128 = scmp.eq.s32.totalorder %s35, 0
      %p129 = por %p127, %p128
      %p130 = scmp.ne.s32.totalorder %s116, %s117
      %p131 = scmp.eq.s32.totalorder %s36, 1
      %p132 = por %p130, %p131
      %p134 = scmp.ne.s32.totalorder %s117, %s133
      %p135 = scmp.eq.s32.totalorder %s36, 0
      %p136 = por %p134, %p135
      %s137 = ssub.s32 %s30, %s37
      %p138 = scmp.eq.s32.totalorder %s137, 0
      %s140 = sadd.s32 %s139, 1
      %s141 = scalar_select %p138, %s139, %s140
      %p144 = pneg %p138
      %p145 = scmp.eq.s32.totalorder %s30, 1
      %p146 = por %p144, %p145
      %p147 = scmp.ne.s32.totalorder %s139, %s142
      %p148 = scmp.eq.s32.totalorder %s30, 0
      %p149 = por %p147, %p148
      %p150 = scmp.ne.s32.totalorder %s139, %s142
      %p151 = scmp.eq.s32.totalorder %s35, 1
      %p152 = por %p150, %p151
      %p153 = scmp.ne.s32.totalorder %s142, %s143
      %p154 = scmp.eq.s32.totalorder %s35, 0
      %p155 = por %p153, %p154
      %p156 = scmp.ne.s32.totalorder %s142, %s143
      %p157 = scmp.eq.s32.totalorder %s36, 1
      %p158 = por %p156, %p157
      %p160 = scmp.ne.s32.totalorder %s143, %s159
      %p161 = scmp.eq.s32.totalorder %s36, 0
      %p162 = por %p160, %p161
      %s163 = ssub.s32 %s30, %s37
      %p164 = scmp.eq.s32.totalorder %s163, 0
      %s166 = sadd.s32 %s165, 1
      %s167 = scalar_select %p164, %s165, %s166
      %p170 = pneg %p164
      %p171 = scmp.eq.s32.totalorder %s30, 1
      %p172 = por %p170, %p171
      %p173 = scmp.ne.s32.totalorder %s165, %s168
      %p174 = scmp.eq.s32.totalorder %s30, 0
      %p175 = por %p173, %p174
      %p176 = scmp.ne.s32.totalorder %s165, %s168
      %p177 = scmp.eq.s32.totalorder %s35, 1
      %p178 = por %p176, %p177
      %p179 = scmp.ne.s32.totalorder %s168, %s169
      %p180 = scmp.eq.s32.totalorder %s35, 0
      %p181 = por %p179, %p180
      %p182 = scmp.ne.s32.totalorder %s168, %s169
      %p183 = scmp.eq.s32.totalorder %s36, 1
      %p184 = por %p182, %p183
      %p186 = scmp.ne.s32.totalorder %s169, %s185
      %p187 = scmp.eq.s32.totalorder %s36, 0
      %p188 = por %p186, %p187
      %s189 = ssub.s32 %s30, %s37
      %p190 = scmp.eq.s32.totalorder %s189, 0
      %s192 = sadd.s32 %s191, 1
      %s193 = scalar_select %p190, %s191, %s192
      %p196 = pneg %p190
      %p197 = scmp.eq.s32.totalorder %s30, 1
      %p198 = por %p196, %p197
      %p199 = scmp.ne.s32.totalorder %s191, %s194
      %p200 = scmp.eq.s32.totalorder %s30, 0
      %p201 = por %p199, %p200
      %p202 = scmp.ne.s32.totalorder %s191, %s194
      %p203 = scmp.eq.s32.totalorder %s35, 1
      %p204 = por %p202, %p203
      %p205 = scmp.ne.s32.totalorder %s194, %s195
      %p206 = scmp.eq.s32.totalorder %s35, 0
      %p207 = por %p205, %p206
      %p208 = scmp.ne.s32.totalorder %s194, %s195
      %p209 = scmp.eq.s32.totalorder %s36, 1
      %p210 = por %p208, %p209
      %p212 = scmp.ne.s32.totalorder %s195, %s211
      %p213 = scmp.eq.s32.totalorder %s36, 0
      %p214 = por %p212, %p213
      %s215 = ssub.s32 %s30, %s37
      %p216 = scmp.eq.s32.totalorder %s215, 0
      %s218 = sadd.s32 %s217, 1
      %s219 = scalar_select %p216, %s217, %s218
      %p222 = pneg %p216
      %p223 = scmp.eq.s32.totalorder %s30, 1
      %p224 = por %p222, %p223
      %p225 = scmp.ne.s32.totalorder %s217, %s220
      %p226 = scmp.eq.s32.totalorder %s30, 0
      %p227 = por %p225, %p226
      %p228 = scmp.ne.s32.totalorder %s217, %s220
      %p229 = scmp.eq.s32.totalorder %s35, 1
      %p230 = por %p228, %p229
      %p231 = scmp.ne.s32.totalorder %s220, %s221
      %p232 = scmp.eq.s32.totalorder %s35, 0
      %p233 = por %p231, %p232
      %p234 = scmp.ne.s32.totalorder %s220, %s221
      %p235 = scmp.eq.s32.totalorder %s36, 1
      %p236 = por %p234, %p235
      %p238 = scmp.ne.s32.totalorder %s221, %s237
      %p239 = scmp.eq.s32.totalorder %s36, 0
      %p240 = por %p238, %p239
      %s241 = ssub.s32 %s30, %s37
      %p242 = scmp.eq.s32.totalorder %s241, 0
      %s244 = sadd.s32 %s243, 1
      %s245 = scalar_select %p242, %s243, %s244
      %p248 = pneg %p242
      %p249 = scmp.eq.s32.totalorder %s30, 1
      %p250 = por %p248, %p249
      %p251 = scmp.ne.s32.totalorder %s243, %s246
      %p252 = scmp.eq.s32.totalorder %s30, 0
      %p253 = por %p251, %p252
      %p254 = scmp.ne.s32.totalorder %s243, %s246
      %p255 = scmp.eq.s32.totalorder %s35, 1
      %p256 = por %p254, %p255
      %p257 = scmp.ne.s32.totalorder %s246, %s247
      %p258 = scmp.eq.s32.totalorder %s35, 0
      %p259 = por %p257, %p258
      %p260 = scmp.ne.s32.totalorder %s246, %s247
      %p261 = scmp.eq.s32.totalorder %s36, 1
      %p262 = por %p260, %p261
      %p264 = scmp.ne.s32.totalorder %s247, %s263
      %p265 = scmp.eq.s32.totalorder %s36, 0
      %p266 = por %p264, %p265
      %s267 = ssub.s32 %s30, %s37
      %p268 = scmp.eq.s32.totalorder %s267, 0
      %s270 = sadd.s32 %s269, 1
      %s271 = scalar_select %p268, %s269, %s270
      %p274 = pneg %p268
      %p275 = scmp.eq.s32.totalorder %s30, 1
      %p276 = por %p274, %p275
      %p277 = scmp.ne.s32.totalorder %s269, %s272
      %p278 = scmp.eq.s32.totalorder %s30, 0
      %p279 = por %p277, %p278
      %p280 = scmp.ne.s32.totalorder %s269, %s272
      %p281 = scmp.eq.s32.totalorder %s35, 1
      %p282 = por %p280, %p281
      %p283 = scmp.ne.s32.totalorder %s272, %s273
      %p284 = scmp.eq.s32.totalorder %s35, 0
      %p285 = por %p283, %p284
      %p286 = scmp.ne.s32.totalorder %s272, %s273
      %p287 = scmp.eq.s32.totalorder %s36, 1
      %p288 = por %p286, %p287
      %p290 = scmp.ne.s32.totalorder %s273, %s289
      %p291 = scmp.eq.s32.totalorder %s36, 0
      %p292 = por %p290, %p291
      %s293 = ssub.s32 %s30, %s37
      %p294 = scmp.eq.s32.totalorder %s293, 0
      %s296 = sadd.s32 %s295, 1
      %s297 = scalar_select %p294, %s295, %s296
      %p300 = pneg %p294
      %p301 = scmp.eq.s32.totalorder %s30, 1
      %p302 = por %p300, %p301
      %p303 = scmp.ne.s32.totalorder %s295, %s298
      %p304 = scmp.eq.s32.totalorder %s30, 0
      %p305 = por %p303, %p304
      %p306 = scmp.ne.s32.totalorder %s295, %s298
      %p307 = scmp.eq.s32.totalorder %s35, 1
      %p308 = por %p306, %p307
      %p309 = scmp.ne.s32.totalorder %s298, %s299
      %p310 = scmp.eq.s32.totalorder %s35, 0
      %p311 = por %p309, %p310
      %p312 = scmp.ne.s32.totalorder %s298, %s299
      %p313 = scmp.eq.s32.totalorder %s36, 1
      %p314 = por %p312, %p313
      %p316 = scmp.ne.s32.totalorder %s299, %s315
      %p317 = scmp.eq.s32.totalorder %s36, 0
      %p318 = por %p316, %p317
      %s319 = ssub.s32 %s30, %s37
      %p320 = scmp.eq.s32.totalorder %s319, 0
      %s322 = sadd.s32 %s321, 1
      %s323 = scalar_select %p320, %s321, %s322
      %p326 = pneg %p320
      %p327 = scmp.eq.s32.totalorder %s30, 1
      %p328 = por %p326, %p327
      %p329 = scmp.ne.s32.totalorder %s321, %s324
      %p330 = scmp.eq.s32.totalorder %s30, 0
      %p331 = por %p329, %p330
      %p332 = scmp.ne.s32.totalorder %s321, %s324
      %p333 = scmp.eq.s32.totalorder %s35, 1
      %p334 = por %p332, %p333
      %p335 = scmp.ne.s32.totalorder %s324, %s325
      %p336 = scmp.eq.s32.totalorder %s35, 0
      %p337 = por %p335, %p336
      %p338 = scmp.ne.s32.totalorder %s324, %s325
      %p339 = scmp.eq.s32.totalorder %s36, 1
      %p340 = por %p338, %p339
      %p342 = scmp.ne.s32.totalorder %s325, %s341
      %p343 = scmp.eq.s32.totalorder %s36, 0
      %p344 = por %p342, %p343
      %s345 = ssub.s32 %s30, %s37
      %p346 = scmp.eq.s32.totalorder %s345, 0
      %s348 = sadd.s32 %s347, 1
      %s349 = scalar_select %p346, %s347, %s348
      %p352 = pneg %p346
      %p353 = scmp.eq.s32.totalorder %s30, 1
      %p354 = por %p352, %p353
      %p355 = scmp.ne.s32.totalorder %s347, %s350
      %p356 = scmp.eq.s32.totalorder %s30, 0
      %p357 = por %p355, %p356
      %p358 = scmp.ne.s32.totalorder %s347, %s350
      %p359 = scmp.eq.s32.totalorder %s35, 1
      %p360 = por %p358, %p359
      %p361 = scmp.ne.s32.totalorder %s350, %s351
      %p362 = scmp.eq.s32.totalorder %s35, 0
      %p363 = por %p361, %p362
      %p364 = scmp.ne.s32.totalorder %s350, %s351
      %p365 = scmp.eq.s32.totalorder %s36, 1
      %p366 = por %p364, %p365
      %p368 = scmp.ne.s32.totalorder %s351, %s367
      %p369 = scmp.eq.s32.totalorder %s36, 0
      %p370 = por %p368, %p369
      %s371 = ssub.s32 %s30, %s37
      %p372 = scmp.eq.s32.totalorder %s371, 0
      %s374 = sadd.s32 %s373, 1
      %s375 = scalar_select %p372, %s373, %s374
      %p378 = pneg %p372
      %p379 = scmp.eq.s32.totalorder %s30, 1
      %p380 = por %p378, %p379
      %p381 = scmp.ne.s32.totalorder %s373, %s376
      %p382 = scmp.eq.s32.totalorder %s30, 0
      %p383 = por %p381, %p382
      %p384 = scmp.ne.s32.totalorder %s373, %s376
      %p385 = scmp.eq.s32.totalorder %s35, 1
      %p386 = por %p384, %p385
      %p387 = scmp.ne.s32.totalorder %s376, %s377
      %p388 = scmp.eq.s32.totalorder %s35, 0
      %p389 = por %p387, %p388
      %p390 = scmp.ne.s32.totalorder %s376, %s377
      %p391 = scmp.eq.s32.totalorder %s36, 1
      %p392 = por %p390, %p391
      %p394 = scmp.ne.s32.totalorder %s377, %s393
      %p395 = scmp.eq.s32.totalorder %s36, 0
      %p396 = por %p394, %p395
      %s397 = ssub.s32 %s30, %s37
      %p398 = scmp.eq.s32.totalorder %s397, 0
      %s400 = sadd.s32 %s399, 1
      %s401 = scalar_select %p398, %s399, %s400
      %p404 = pneg %p398
      %p405 = scmp.eq.s32.totalorder %s30, 1
      %p406 = por %p404, %p405
      %p407 = scmp.ne.s32.totalorder %s399, %s402
      %p408 = scmp.eq.s32.totalorder %s30, 0
      %p409 = por %p407, %p408
      %p410 = scmp.ne.s32.totalorder %s399, %s402
      %p411 = scmp.eq.s32.totalorder %s35, 1
      %p412 = por %p410, %p411
      %p413 = scmp.ne.s32.totalorder %s402, %s403
      %p414 = scmp.eq.s32.totalorder %s35, 0
      %p415 = por %p413, %p414
      %p416 = scmp.ne.s32.totalorder %s402, %s403
      %p417 = scmp.eq.s32.totalorder %s36, 1
      %p418 = por %p416, %p417
      %p420 = scmp.ne.s32.totalorder %s403, %s419
      %p421 = scmp.eq.s32.totalorder %s36, 0
      %p422 = por %p420, %p421
      %s423 = ssub.s32 %s30, %s37
      %p424 = scmp.eq.s32.totalorder %s423, 0
      %s426 = sadd.s32 %s425, 1
      %s427 = scalar_select %p424, %s425, %s426
      %p430 = pneg %p424
      %p431 = scmp.eq.s32.totalorder %s30, 1
      %p432 = por %p430, %p431
      %p433 = scmp.ne.s32.totalorder %s425, %s428
      %p434 = scmp.eq.s32.totalorder %s30, 0
      %p435 = por %p433, %p434
      %p436 = scmp.ne.s32.totalorder %s425, %s428
      %p437 = scmp.eq.s32.totalorder %s35, 1
      %p438 = por %p436, %p437
      %p439 = scmp.ne.s32.totalorder %s428, %s429
      %p440 = scmp.eq.s32.totalorder %s35, 0
      %p441 = por %p439, %p440
      %p442 = scmp.ne.s32.totalorder %s428, %s429
      %p443 = scmp.eq.s32.totalorder %s36, 1
      %p444 = por %p442, %p443
      %p446 = scmp.ne.s32.totalorder %s429, %s445
      %p447 = scmp.eq.s32.totalorder %s36, 0
      %p448 = por %p446, %p447
      %s449 = ssub.s32 %s30, %s37
      %p450 = scmp.eq.s32.totalorder %s449, 0
      %s452 = sadd.s32 %s451, 1
      %s453 = scalar_select %p450, %s451, %s452
      %p456 = pneg %p450
      %p457 = scmp.eq.s32.totalorder %s30, 1
      %p458 = por %p456, %p457
      %p459 = scmp.ne.s32.totalorder %s451, %s454
      %p460 = scmp.eq.s32.totalorder %s30, 0
      %p461 = por %p459, %p460
      %p462 = scmp.ne.s32.totalorder %s451, %s454
      %p463 = scmp.eq.s32.totalorder %s35, 1
      %p464 = por %p462, %p463
      %p465 = scmp.ne.s32.totalorder %s454, %s455
      %p466 = scmp.eq.s32.totalorder %s35, 0
      %p467 = por %p465, %p466
      %p468 = scmp.ne.s32.totalorder %s454, %s455
      %p469 = scmp.eq.s32.totalorder %s36, 1
      %p470 = por %p468, %p469
      %p472 = scmp.ne.s32.totalorder %s455, %s471
      %p473 = scmp.eq.s32.totalorder %s36, 0
      %p474 = por %p472, %p473
      %s475 = ssub.s32 %s30, %s37
      %p476 = scmp.eq.s32.totalorder %s475, 0
      %s478 = sadd.s32 %s477, 1
      %s479 = scalar_select %p476, %s477, %s478
      %p482 = pneg %p476
      %p483 = scmp.eq.s32.totalorder %s30, 1
      %p484 = por %p482, %p483
      %p485 = scmp.ne.s32.totalorder %s477, %s480
      %p486 = scmp.eq.s32.totalorder %s30, 0
      %p487 = por %p485, %p486
      %p488 = scmp.ne.s32.totalorder %s477, %s480
      %p489 = scmp.eq.s32.totalorder %s35, 1
      %p490 = por %p488, %p489
      %p491 = scmp.ne.s32.totalorder %s480, %s481
      %p492 = scmp.eq.s32.totalorder %s35, 0
      %p493 = por %p491, %p492
      %p494 = scmp.ne.s32.totalorder %s480, %s481
      %p495 = scmp.eq.s32.totalorder %s36, 1
      %p496 = por %p494, %p495
      %p498 = scmp.ne.s32.totalorder %s481, %s497
      %p499 = scmp.eq.s32.totalorder %s36, 0
      %p500 = por %p498, %p499
      %s501 = ssub.s32 %s30, %s37
      %p502 = scmp.eq.s32.totalorder %s501, 0
      %s504 = sadd.s32 %s503, 1
      %s505 = scalar_select %p502, %s503, %s504
      %p508 = pneg %p502
      %p509 = scmp.eq.s32.totalorder %s30, 1
      %p510 = por %p508, %p509
      %p511 = scmp.ne.s32.totalorder %s503, %s506
      %p512 = scmp.eq.s32.totalorder %s30, 0
      %p513 = por %p511, %p512
      %p514 = scmp.ne.s32.totalorder %s503, %s506
      %p515 = scmp.eq.s32.totalorder %s35, 1
      %p516 = por %p514, %p515
      %p517 = scmp.ne.s32.totalorder %s506, %s507
      %p518 = scmp.eq.s32.totalorder %s35, 0
      %p519 = por %p517, %p518
      %p520 = scmp.ne.s32.totalorder %s506, %s507
      %p521 = scmp.eq.s32.totalorder %s36, 1
      %p522 = por %p520, %p521
      %p524 = scmp.ne.s32.totalorder %s507, %s523
      %p525 = scmp.eq.s32.totalorder %s36, 0
      %p526 = por %p524, %p525
      %s527 = ssub.s32 %s30, %s37
      %p528 = scmp.eq.s32.totalorder %s527, 0
      %s530 = sadd.s32 %s529, 1
      %s531 = scalar_select %p528, %s529, %s530
      %p534 = pneg %p528
      %p535 = scmp.eq.s32.totalorder %s30, 1
      %p536 = por %p534, %p535
      %p537 = scmp.ne.s32.totalorder %s529, %s532
      %p538 = scmp.eq.s32.totalorder %s30, 0
      %p539 = por %p537, %p538
      %p540 = scmp.ne.s32.totalorder %s529, %s532
      %p541 = scmp.eq.s32.totalorder %s35, 1
      %p542 = por %p540, %p541
      %p543 = scmp.ne.s32.totalorder %s532, %s533
      %p544 = scmp.eq.s32.totalorder %s35, 0
      %p545 = por %p543, %p544
      %p546 = scmp.ne.s32.totalorder %s532, %s533
      %p547 = scmp.eq.s32.totalorder %s36, 1
      %p548 = por %p546, %p547
      %p550 = scmp.ne.s32.totalorder %s533, %s549
      %p551 = scmp.eq.s32.totalorder %s36, 0
      %p552 = por %p550, %p551
      %s553 = ssub.s32 %s30, %s37
      %p554 = scmp.eq.s32.totalorder %s553, 0
      %s556 = sadd.s32 %s555, 1
      %s557 = scalar_select %p554, %s555, %s556
      %p560 = pneg %p554
      %p561 = scmp.eq.s32.totalorder %s30, 1
      %p562 = por %p560, %p561
      %p563 = scmp.ne.s32.totalorder %s555, %s558
      %p564 = scmp.eq.s32.totalorder %s30, 0
      %p565 = por %p563, %p564
      %p566 = scmp.ne.s32.totalorder %s555, %s558
      %p567 = scmp.eq.s32.totalorder %s35, 1
      %p568 = por %p566, %p567
      %p569 = scmp.ne.s32.totalorder %s558, %s559
      %p570 = scmp.eq.s32.totalorder %s35, 0
      %p571 = por %p569, %p570
      %p572 = scmp.ne.s32.totalorder %s558, %s559
      %p573 = scmp.eq.s32.totalorder %s36, 1
      %p574 = por %p572, %p573
      %p576 = scmp.ne.s32.totalorder %s559, %s575
      %p577 = scmp.eq.s32.totalorder %s36, 0
      %p578 = por %p576, %p577
      %s580 = sadd.s32 %s579, 1
      %p583 = scmp.eq.s32.totalorder %s30, 1
      %p584 = scmp.ne.s32.totalorder %s579, %s581
      %p585 = scmp.eq.s32.totalorder %s30, 0
      %p586 = por %p584, %p585
      %p587 = scmp.ne.s32.totalorder %s579, %s581
      %p588 = scmp.eq.s32.totalorder %s35, 1
      %p589 = por %p587, %p588
      %p590 = scmp.ne.s32.totalorder %s581, %s582
      %p591 = scmp.eq.s32.totalorder %s35, 0
      %p592 = por %p590, %p591
      %p593 = scmp.ne.s32.totalorder %s581, %s582
      %p594 = scmp.eq.s32.totalorder %s36, 1
      %p595 = por %p593, %p594
      %p597 = scmp.ne.s32.totalorder %s582, %s596
      %p598 = scmp.eq.s32.totalorder %s36, 0
      %p599 = por %p597, %p598
      %s601 = sadd.s32 %s600, 1
      %p604 = scmp.eq.s32.totalorder %s30, 1
      %p605 = scmp.ne.s32.totalorder %s600, %s602
      %p606 = scmp.eq.s32.totalorder %s30, 0
      %p607 = por %p605, %p606
      %p608 = scmp.ne.s32.totalorder %s600, %s602
      %p609 = scmp.eq.s32.totalorder %s35, 1
      %p610 = por %p608, %p609
      %p611 = scmp.ne.s32.totalorder %s602, %s603
      %p612 = scmp.eq.s32.totalorder %s35, 0
      %p613 = por %p611, %p612
      %p614 = scmp.ne.s32.totalorder %s602, %s603
      %p615 = scmp.eq.s32.totalorder %s36, 1
      %p616 = por %p614, %p615
      %p618 = scmp.ne.s32.totalorder %s603, %s617
      %p619 = scmp.eq.s32.totalorder %s36, 0
      %p620 = por %p618, %p619
      %s622 = sadd.s32 %s621, 1
      %p625 = scmp.eq.s32.totalorder %s30, 1
      %p626 = scmp.ne.s32.totalorder %s621, %s623
      %p627 = scmp.eq.s32.totalorder %s30, 0
      %p628 = por %p626, %p627
      %p629 = scmp.ne.s32.totalorder %s621, %s623
      %p630 = scmp.eq.s32.totalorder %s35, 1
      %p631 = por %p629, %p630
      %p632 = scmp.ne.s32.totalorder %s623, %s624
      %p633 = scmp.eq.s32.totalorder %s35, 0
      %p634 = por %p632, %p633
      %p635 = scmp.ne.s32.totalorder %s623, %s624
      %p636 = scmp.eq.s32.totalorder %s36, 1
      %p637 = por %p635, %p636
      %p639 = scmp.ne.s32.totalorder %s624, %s638
      %p640 = scmp.eq.s32.totalorder %s36, 0
      %p641 = por %p639, %p640
      %p642 = scmp.le.s32.totalorder 1, %s30
      %p643 = scmp.lt.s32.totalorder %s30, 3
      %p644 = pnand %p642, %p643
      %p645 = pneg %p644
      // Predicated region
      $region9: #{tpu_custom_call.1} parent=5 // pred_check
        _
      $region10: #{tpu_custom_call.1} parent=5 // pred_check_branch
        %647 = sbr.rel (%p644) target = $region12
      $region11: #{tpu_custom_call.1} parent=5 // pred_region
        %s648 = ssub.s32 %s30, 1
        // Predicated region
        $region13: #{tpu_custom_call.1} parent=11 // pred_check
          %p649 = pneg %p51
        $region14: #{tpu_custom_call.1} parent=11 // pred_check_branch
          %651 = sbr.rel (%p649) target = $region16
        $region15: #{tpu_custom_call.1} parent=11 // pred_region
          _
        $region16: #{tpu_custom_call.1} parent=11 // pred_fallthru
          _
        // Predicated region
        $region17: #{tpu_custom_call.1} parent=11 // pred_check
          %p652 = pneg %p592
        $region18: #{tpu_custom_call.1} parent=11 // pred_check_branch
          %654 = sbr.rel (%p652) target = $region20
        $region19: #{tpu_custom_call.1} parent=11 // pred_region
          _
        $region20: #{tpu_custom_call.1} parent=11 // pred_fallthru
          _
        // Predicated region
        $region21: #{tpu_custom_call.1} parent=11 // pred_check
          %p655 = pneg %p613
        $region22: #{tpu_custom_call.1} parent=11 // pred_check_branch
          %657 = sbr.rel (%p655) target = $region24
        $region23: #{tpu_custom_call.1} parent=11 // pred_region
          _
        $region24: #{tpu_custom_call.1} parent=11 // pred_fallthru
          _
      $region12: #{tpu_custom_call.1} parent=5 // pred_fallthru
        _
      %p658 = scmp.lt.s32.totalorder %s30, 2
      // Predicated region
      $region25: #{tpu_custom_call.1} parent=5 // pred_check
        %p659 = pneg %p658
      $region26: #{tpu_custom_call.1} parent=5 // pred_check_branch
        %661 = sbr.rel (%p659) target = $region28
      $region27: #{tpu_custom_call.1} parent=5 // pred_region
        // Predicated region
        $region29: #{tpu_custom_call.1} parent=27 // pred_check
          %p662 = pneg %p71
        $region30: #{tpu_custom_call.1} parent=27 // pred_check_branch
          %664 = sbr.rel (%p662) target = $region32
        $region31: #{tpu_custom_call.1} parent=27 // pred_region
          %p665 = scmp.lt.s32.totalorder %s30, 1
          %s666 = scalar_select %p665, %s30, 1
          %s667 = smul.addr %s666, 4
          %s668 = smul.addr %s667, 4
          %s669 = scalar_lea.vmem %s1, %s668
        $region32: #{tpu_custom_call.1} parent=27 // pred_fallthru
          _
        // Predicated region
        $region33: #{tpu_custom_call.1} parent=27 // pred_check
          %p670 = pneg %p97
        $region34: #{tpu_custom_call.1} parent=27 // pred_check_branch
          %672 = sbr.rel (%p670) target = $region36
        $region35: #{tpu_custom_call.1} parent=27 // pred_region
          %p673 = scmp.lt.s32.totalorder %s30, 1
          %s674 = scalar_select %p673, %s30, 1
          %s675 = scalar_lea.vmem %s2, %s674
        $region36: #{tpu_custom_call.1} parent=27 // pred_fallthru
          _
        // Predicated region
        $region37: #{tpu_custom_call.1} parent=27 // pred_check
          %p676 = pneg %p123
        $region38: #{tpu_custom_call.1} parent=27 // pred_check_branch
          %678 = sbr.rel (%p676) target = $region40
        $region39: #{tpu_custom_call.1} parent=27 // pred_region
          %p679 = scmp.lt.s32.totalorder %s30, 1
          %s680 = scalar_select %p679, %s30, 1
          %s681 = smul.addr %s680, 4
          %s682 = smul.addr %s681, 4
          %s683 = scalar_lea.vmem %s3, %s682
        $region40: #{tpu_custom_call.1} parent=27 // pred_fallthru
          _
        // Predicated region
        $region41: #{tpu_custom_call.1} parent=27 // pred_check
          %p684 = pneg %p149
        $region42: #{tpu_custom_call.1} parent=27 // pred_check_branch
          %686 = sbr.rel (%p684) target = $region44
        $region43: #{tpu_custom_call.1} parent=27 // pred_region
          %p687 = scmp.lt.s32.totalorder %s30, 1
          %s688 = scalar_select %p687, %s30, 1
          %s689 = scalar_lea.vmem %s4, %s688
        $region44: #{tpu_custom_call.1} parent=27 // pred_fallthru
          _
        // Predicated region
        $region45: #{tpu_custom_call.1} parent=27 // pred_check
          %p690 = pneg %p175
        $region46: #{tpu_custom_call.1} parent=27 // pred_check_branch
          %692 = sbr.rel (%p690) target = $region48
        $region47: #{tpu_custom_call.1} parent=27 // pred_region
          %p693 = scmp.lt.s32.totalorder %s30, 1
          %s694 = scalar_select %p693, %s30, 1
          %s695 = smul.addr %s694, 4
          %s696 = smul.addr %s695, 4
          %s697 = scalar_lea.vmem %s5, %s696
        $region48: #{tpu_custom_call.1} parent=27 // pred_fallthru
          _
        // Predicated region
        $region49: #{tpu_custom_call.1} parent=27 // pred_check
          %p698 = pneg %p201
        $region50: #{tpu_custom_call.1} parent=27 // pred_check_branch
          %700 = sbr.rel (%p698) target = $region52
        $region51: #{tpu_custom_call.1} parent=27 // pred_region
          %p701 = scmp.lt.s32.totalorder %s30, 1
          %s702 = scalar_select %p701, %s30, 1
          %s703 = scalar_lea.vmem %s6, %s702
        $region52: #{tpu_custom_call.1} parent=27 // pred_fallthru
          _
        // Predicated region
        $region53: #{tpu_custom_call.1} parent=27 // pred_check
          %p704 = pneg %p227
        $region54: #{tpu_custom_call.1} parent=27 // pred_check_branch
          %706 = sbr.rel (%p704) target = $region56
        $region55: #{tpu_custom_call.1} parent=27 // pred_region
          %p707 = scmp.lt.s32.totalorder %s30, 1
          %s708 = scalar_select %p707, %s30, 1
          %s709 = smul.addr %s708, 4
          %s710 = smul.addr %s709, 4
          %s711 = scalar_lea.vmem %s7, %s710
        $region56: #{tpu_custom_call.1} parent=27 // pred_fallthru
          _
        // Predicated region
        $region57: #{tpu_custom_call.1} parent=27 // pred_check
          %p712 = pneg %p253
        $region58: #{tpu_custom_call.1} parent=27 // pred_check_branch
          %714 = sbr.rel (%p712) target = $region60
        $region59: #{tpu_custom_call.1} parent=27 // pred_region
          %p715 = scmp.lt.s32.totalorder %s30, 1
          %s716 = scalar_select %p715, %s30, 1
          %s717 = scalar_lea.vmem %s8, %s716
        $region60: #{tpu_custom_call.1} parent=27 // pred_fallthru
          _
        // Predicated region
        $region61: #{tpu_custom_call.1} parent=27 // pred_check
          %p718 = pneg %p279
        $region62: #{tpu_custom_call.1} parent=27 // pred_check_branch
          %720 = sbr.rel (%p718) target = $region64
        $region63: #{tpu_custom_call.1} parent=27 // pred_region
          %p721 = scmp.lt.s32.totalorder %s30, 1
          %s722 = scalar_select %p721, %s30, 1
          %s723 = smul.addr %s722, 4
          %s724 = smul.addr %s723, 4
          %s725 = scalar_lea.vmem %s9, %s724
        $region64: #{tpu_custom_call.1} parent=27 // pred_fallthru
          _
        // Predicated region
        $region65: #{tpu_custom_call.1} parent=27 // pred_check
          %p726 = pneg %p305
        $region66: #{tpu_custom_call.1} parent=27 // pred_check_branch
          %728 = sbr.rel (%p726) target = $region68
        $region67: #{tpu_custom_call.1} parent=27 // pred_region
          %p729 = scmp.lt.s32.totalorder %s30, 1
          %s730 = scalar_select %p729, %s30, 1
          %s731 = scalar_lea.vmem %s10, %s730
        $region68: #{tpu_custom_call.1} parent=27 // pred_fallthru
          _
        // Predicated region
        $region69: #{tpu_custom_call.1} parent=27 // pred_check
          %p732 = pneg %p331
        $region70: #{tpu_custom_call.1} parent=27 // pred_check_branch
          %734 = sbr.rel (%p732) target = $region72
        $region71: #{tpu_custom_call.1} parent=27 // pred_region
          %p735 = scmp.lt.s32.totalorder %s30, 1
          %s736 = scalar_select %p735, %s30, 1
          %s737 = scalar_lea.vmem %s11, %s736
        $region72: #{tpu_custom_call.1} parent=27 // pred_fallthru
          _
        // Predicated region
        $region73: #{tpu_custom_call.1} parent=27 // pred_check
          %p738 = pneg %p357
        $region74: #{tpu_custom_call.1} parent=27 // pred_check_branch
          %740 = sbr.rel (%p738) target = $region76
        $region75: #{tpu_custom_call.1} parent=27 // pred_region
          %p741 = scmp.lt.s32.totalorder %s30, 1
          %s742 = scalar_select %p741, %s30, 1
          %s743 = scalar_lea.vmem %s12, %s742
        $region76: #{tpu_custom_call.1} parent=27 // pred_fallthru
          _
        // Predicated region
        $region77: #{tpu_custom_call.1} parent=27 // pred_check
          %p744 = pneg %p383
        $region78: #{tpu_custom_call.1} parent=27 // pred_check_branch
          %746 = sbr.rel (%p744) target = $region80
        $region79: #{tpu_custom_call.1} parent=27 // pred_region
          %p747 = scmp.lt.s32.totalorder %s30, 1
          %s748 = scalar_select %p747, %s30, 1
          %s749 = scalar_lea.vmem %s13, %s748
        $region80: #{tpu_custom_call.1} parent=27 // pred_fallthru
          _
        // Predicated region
        $region81: #{tpu_custom_call.1} parent=27 // pred_check
          %p750 = pneg %p409
        $region82: #{tpu_custom_call.1} parent=27 // pred_check_branch
          %752 = sbr.rel (%p750) target = $region84
        $region83: #{tpu_custom_call.1} parent=27 // pred_region
          %p753 = scmp.lt.s32.totalorder %s30, 1
          %s754 = scalar_select %p753, %s30, 1
          %s755 = scalar_lea.vmem %s14, %s754
        $region84: #{tpu_custom_call.1} parent=27 // pred_fallthru
          _
        // Predicated region
        $region85: #{tpu_custom_call.1} parent=27 // pred_check
          %p756 = pneg %p435
        $region86: #{tpu_custom_call.1} parent=27 // pred_check_branch
          %758 = sbr.rel (%p756) target = $region88
        $region87: #{tpu_custom_call.1} parent=27 // pred_region
          %p759 = scmp.lt.s32.totalorder %s30, 1
          %s760 = scalar_select %p759, %s30, 1
          %s761 = scalar_lea.vmem %s15, %s760
        $region88: #{tpu_custom_call.1} parent=27 // pred_fallthru
          _
        // Predicated region
        $region89: #{tpu_custom_call.1} parent=27 // pred_check
          %p762 = pneg %p461
        $region90: #{tpu_custom_call.1} parent=27 // pred_check_branch
          %764 = sbr.rel (%p762) target = $region92
        $region91: #{tpu_custom_call.1} parent=27 // pred_region
          %p765 = scmp.lt.s32.totalorder %s30, 1
          %s766 = scalar_select %p765, %s30, 1
          %s767 = scalar_lea.vmem %s16, %s766
        $region92: #{tpu_custom_call.1} parent=27 // pred_fallthru
          _
        // Predicated region
        $region93: #{tpu_custom_call.1} parent=27 // pred_check
          %p768 = pneg %p487
        $region94: #{tpu_custom_call.1} parent=27 // pred_check_branch
          %770 = sbr.rel (%p768) target = $region96
        $region95: #{tpu_custom_call.1} parent=27 // pred_region
          %p771 = scmp.lt.s32.totalorder %s30, 1
          %s772 = scalar_select %p771, %s30, 1
          %s773 = smul.addr %s772, 64
          %s774 = smul.addr %s773, 4
          %s775 = scalar_lea.vmem %s17, %s774
        $region96: #{tpu_custom_call.1} parent=27 // pred_fallthru
          _
        // Predicated region
        $region97: #{tpu_custom_call.1} parent=27 // pred_check
          %p776 = pneg %p513
        $region98: #{tpu_custom_call.1} parent=27 // pred_check_branch
          %778 = sbr.rel (%p776) target = $region100
        $region99: #{tpu_custom_call.1} parent=27 // pred_region
          %p779 = scmp.lt.s32.totalorder %s30, 1
          %s780 = scalar_select %p779, %s30, 1
          %s781 = smul.addr %s780, 16
          %s782 = scalar_lea.vmem %s18, %s781
        $region100: #{tpu_custom_call.1} parent=27 // pred_fallthru
          _
        // Predicated region
        $region101: #{tpu_custom_call.1} parent=27 // pred_check
          %p783 = pneg %p539
        $region102: #{tpu_custom_call.1} parent=27 // pred_check_branch
          %785 = sbr.rel (%p783) target = $region104
        $region103: #{tpu_custom_call.1} parent=27 // pred_region
          %p786 = scmp.lt.s32.totalorder %s30, 1
          %s787 = scalar_select %p786, %s30, 1
          %s788 = smul.addr %s787, 256
          %s789 = smul.addr %s788, 4
          %s790 = scalar_lea.vmem %s19, %s789
        $region104: #{tpu_custom_call.1} parent=27 // pred_fallthru
          _
        // Predicated region
        $region105: #{tpu_custom_call.1} parent=27 // pred_check
          %p791 = pneg %p565
        $region106: #{tpu_custom_call.1} parent=27 // pred_check_branch
          %793 = sbr.rel (%p791) target = $region108
        $region107: #{tpu_custom_call.1} parent=27 // pred_region
          %p794 = scmp.lt.s32.totalorder %s30, 1
          %s795 = scalar_select %p794, %s30, 1
          %s796 = scalar_lea.vmem %s20, %s795
        $region108: #{tpu_custom_call.1} parent=27 // pred_fallthru
          _
      $region28: #{tpu_custom_call.1} parent=5 // pred_fallthru
        _
      %p797 = scmp.le.s32.totalorder 1, %s30
      %p798 = scmp.lt.s32.totalorder %s30, 3
      %p799 = pnand %p797, %p798
      %p800 = pneg %p799
      // Predicated region
      $region109: #{tpu_custom_call.1} parent=5 // pred_check
        _
      $region110: #{tpu_custom_call.1} parent=5 // pred_check_branch
        %802 = sbr.rel (%p799) target = $region112
      $region111: #{tpu_custom_call.1} parent=5 // pred_region
        %s803 = ssub.s32 %s30, 1
        %p804 = pneg %p51
        %p805 = pneg %p48
        %p806 = scmp.lt.s32.totalorder %s35, 1
        %s807 = scalar_select %p806, %s35, 1
        %s808 = smul.addr %s807, 4
        %s809 = smul.addr %s808, 4
        %s810 = scalar_lea.vmem %s1, %s809
        %p811 = pneg %p77
        %p812 = pneg %p74
        %p813 = scmp.lt.s32.totalorder %s35, 1
        %s814 = scalar_select %p813, %s35, 1
        %s815 = scalar_lea.vmem %s2, %s814
        %p816 = pneg %p103
        %p817 = pneg %p100
        %p818 = scmp.lt.s32.totalorder %s35, 1
        %s819 = scalar_select %p818, %s35, 1
        %s820 = smul.addr %s819, 4
        %s821 = smul.addr %s820, 4
        %s822 = scalar_lea.vmem %s3, %s821
        %p823 = pneg %p129
        %p824 = pneg %p126
        %p825 = scmp.lt.s32.totalorder %s35, 1
        %s826 = scalar_select %p825, %s35, 1
        %s827 = scalar_lea.vmem %s4, %s826
        %p828 = pneg %p155
        %p829 = pneg %p152
        %p830 = scmp.lt.s32.totalorder %s35, 1
        %s831 = scalar_select %p830, %s35, 1
        %s832 = smul.addr %s831, 4
        %s833 = smul.addr %s832, 4
        %s834 = scalar_lea.vmem %s5, %s833
        %p835 = pneg %p181
        %p836 = pneg %p178
        %p837 = scmp.lt.s32.totalorder %s35, 1
        %s838 = scalar_select %p837, %s35, 1
        %s839 = scalar_lea.vmem %s6, %s838
        %p840 = pneg %p207
        %p841 = pneg %p204
        %p842 = scmp.lt.s32.totalorder %s35, 1
        %s843 = scalar_select %p842, %s35, 1
        %s844 = smul.addr %s843, 4
        %s845 = smul.addr %s844, 4
        %s846 = scalar_lea.vmem %s7, %s845
        %p847 = pneg %p233
        %p848 = pneg %p230
        %p849 = scmp.lt.s32.totalorder %s35, 1
        %s850 = scalar_select %p849, %s35, 1
        %s851 = scalar_lea.vmem %s8, %s850
        %p852 = pneg %p259
        %p853 = pneg %p256
        %p854 = scmp.lt.s32.totalorder %s35, 1
        %s855 = scalar_select %p854, %s35, 1
        %s856 = smul.addr %s855, 4
        %s857 = smul.addr %s856, 4
        %s858 = scalar_lea.vmem %s9, %s857
        %p859 = pneg %p285
        %p860 = pneg %p282
        %p861 = scmp.lt.s32.totalorder %s35, 1
        %s862 = scalar_select %p861, %s35, 1
        %s863 = scalar_lea.vmem %s10, %s862
        %p864 = pneg %p311
        %p865 = pneg %p308
        %p866 = scmp.lt.s32.totalorder %s35, 1
        %s867 = scalar_select %p866, %s35, 1
        %s868 = scalar_lea.vmem %s11, %s867
        %p869 = pneg %p337
        %p870 = pneg %p334
        %p871 = scmp.lt.s32.totalorder %s35, 1
        %s872 = scalar_select %p871, %s35, 1
        %s873 = scalar_lea.vmem %s12, %s872
        %p874 = pneg %p363
        %p875 = pneg %p360
        %p876 = scmp.lt.s32.totalorder %s35, 1
        %s877 = scalar_select %p876, %s35, 1
        %s878 = scalar_lea.vmem %s13, %s877
        %p879 = pneg %p389
        %p880 = pneg %p386
        %p881 = scmp.lt.s32.totalorder %s35, 1
        %s882 = scalar_select %p881, %s35, 1
        %s883 = scalar_lea.vmem %s14, %s882
        %p884 = pneg %p415
        %p885 = pneg %p412
        %p886 = scmp.lt.s32.totalorder %s35, 1
        %s887 = scalar_select %p886, %s35, 1
        %s888 = scalar_lea.vmem %s15, %s887
        %p889 = pneg %p441
        %p890 = pneg %p438
        %p891 = scmp.lt.s32.totalorder %s35, 1
        %s892 = scalar_select %p891, %s35, 1
        %s893 = scalar_lea.vmem %s16, %s892
        %p894 = pneg %p467
        %p895 = pneg %p464
        %p896 = scmp.lt.s32.totalorder %s35, 1
        %s897 = scalar_select %p896, %s35, 1
        %s898 = smul.addr %s897, 64
        %s899 = smul.addr %s898, 4
        %s900 = scalar_lea.vmem %s17, %s899
        %p901 = pneg %p493
        %p902 = pneg %p490
        %p903 = scmp.lt.s32.totalorder %s35, 1
        %s904 = scalar_select %p903, %s35, 1
        %s905 = smul.addr %s904, 16
        %s906 = scalar_lea.vmem %s18, %s905
        %p907 = pneg %p519
        %p908 = pneg %p516
        %p909 = scmp.lt.s32.totalorder %s35, 1
        %s910 = scalar_select %p909, %s35, 1
        %s911 = smul.addr %s910, 256
        %s912 = smul.addr %s911, 4
        %s913 = scalar_lea.vmem %s19, %s912
        %p914 = pneg %p545
        %p915 = pneg %p542
        %p916 = scmp.lt.s32.totalorder %s35, 1
        %s917 = scalar_select %p916, %s35, 1
        %s918 = scalar_lea.vmem %s20, %s917
        %p919 = pneg %p571
        %p920 = pneg %p568
        %p921 = pneg %p592
        %p922 = pneg %p589
        %p923 = pneg %p613
        %p924 = pneg %p610
        %p925 = pneg %p634
        %p926 = pneg %p631
        %p927 = scmp.lt.s32.totalorder %s35, 1
        %s928 = scalar_select %p927, %s35, 1
        %s929 = smul.addr %s928, 4
        %s930 = smul.addr %s929, 4
        %s931 = scalar_lea.vmem %s1, %s930
        %p932 = scmp.lt.s32.totalorder %s35, 1
        %s933 = scalar_select %p932, %s35, 1
        %s934 = scalar_lea.vmem %s2, %s933
        %p935 = scmp.lt.s32.totalorder %s35, 1
        %s936 = scalar_select %p935, %s35, 1
        %s937 = smul.addr %s936, 4
        %s938 = smul.addr %s937, 4
        %s939 = scalar_lea.vmem %s3, %s938
        %p940 = scmp.lt.s32.totalorder %s35, 1
        %s941 = scalar_select %p940, %s35, 1
        %s942 = scalar_lea.vmem %s4, %s941
        %p943 = scmp.lt.s32.totalorder %s35, 1
        %s944 = scalar_select %p943, %s35, 1
        %s945 = smul.addr %s944, 4
        %s946 = smul.addr %s945, 4
        %s947 = scalar_lea.vmem %s5, %s946
        %p948 = scmp.lt.s32.totalorder %s35, 1
        %s949 = scalar_select %p948, %s35, 1
        %s950 = scalar_lea.vmem %s6, %s949
        %p951 = scmp.lt.s32.totalorder %s35, 1
        %s952 = scalar_select %p951, %s35, 1
        %s953 = smul.addr %s952, 4
        %s954 = smul.addr %s953, 4
        %s955 = scalar_lea.vmem %s7, %s954
        %p956 = scmp.lt.s32.totalorder %s35, 1
        %s957 = scalar_select %p956, %s35, 1
        %s958 = scalar_lea.vmem %s8, %s957
        %p959 = scmp.lt.s32.totalorder %s35, 1
        %s960 = scalar_select %p959, %s35, 1
        %s961 = smul.addr %s960, 4
        %s962 = smul.addr %s961, 4
        %s963 = scalar_lea.vmem %s9, %s962
        %p964 = scmp.lt.s32.totalorder %s35, 1
        %s965 = scalar_select %p964, %s35, 1
        %s966 = scalar_lea.vmem %s10, %s965
        %p967 = scmp.lt.s32.totalorder %s35, 1
        %s968 = scalar_select %p967, %s35, 1
        %s969 = scalar_lea.vmem %s11, %s968
        %p970 = scmp.lt.s32.totalorder %s35, 1
        %s971 = scalar_select %p970, %s35, 1
        %s972 = scalar_lea.vmem %s12, %s971
        %p973 = scmp.lt.s32.totalorder %s35, 1
        %s974 = scalar_select %p973, %s35, 1
        %s975 = scalar_lea.vmem %s13, %s974
        %p976 = scmp.lt.s32.totalorder %s35, 1
        %s977 = scalar_select %p976, %s35, 1
        %s978 = scalar_lea.vmem %s14, %s977
        %p979 = scmp.lt.s32.totalorder %s35, 1
        %s980 = scalar_select %p979, %s35, 1
        %s981 = scalar_lea.vmem %s15, %s980
        %p982 = scmp.lt.s32.totalorder %s35, 1
        %s983 = scalar_select %p982, %s35, 1
        %s984 = scalar_lea.vmem %s16, %s983
        %p985 = scmp.lt.s32.totalorder %s35, 1
        %s986 = scalar_select %p985, %s35, 1
        %s987 = smul.addr %s986, 64
        %s988 = smul.addr %s987, 4
        %s989 = scalar_lea.vmem %s17, %s988
        %p990 = scmp.lt.s32.totalorder %s35, 1
        %s991 = scalar_select %p990, %s35, 1
        %s992 = smul.addr %s991, 16
        %s993 = scalar_lea.vmem %s18, %s992
        %p994 = scmp.lt.s32.totalorder %s35, 1
        %s995 = scalar_select %p994, %s35, 1
        %s996 = smul.addr %s995, 256
        %s997 = smul.addr %s996, 4
        %s998 = scalar_lea.vmem %s19, %s997
        %p999 = scmp.lt.s32.totalorder %s35, 1
        %s1000 = scalar_select %p999, %s35, 1
        %s1001 = scalar_lea.vmem %s20, %s1000
        %p1003 = scmp.eq.s32.totalorder %s35, 0
        // Predicated region
        $region113: #{tpu_custom_call.1} parent=111 // pred_check
          %p1004 = pneg %p1003
        $region114: #{tpu_custom_call.1} parent=111 // pred_check_branch
          %1006 = sbr.rel (%p1004) target = $region116
        $region115: #{tpu_custom_call.1} parent=111 // pred_region
          %v1007 = vld [vmem:[%s0] sm:$0xff]
          %v1008 = vld [vmem:[%s0 + $0x8] sm:$0xff]
          %vm1009 = vcmask 261120
          %1010 = vst.msk [vmem:[#allocation2] sm:$0xff] %vm1009, %v1007
          %1011 = vst.msk [vmem:[#allocation2 + $0x8] sm:$0xff] %vm1009, %v1008
        $region116: #{tpu_custom_call.1} parent=111 // pred_fallthru
          _
        %v1012 = vld [vmem:[#allocation2] sm:$0xff]
        %v1013 = vld [vmem:[#allocation2 + $0x8] sm:$0xff]
        %v1014 = vld [vmem:[%s931] sm:$0xf]
        %v1015 = vld [vmem:[%s931 + $0x4] sm:$0xf]
        %v1016 = vld [vmem:[%s931 + $0x8] sm:$0xf]
        %v1017 = vld [vmem:[%s931 + $0xc] sm:$0xf]
        %v1018 = vpack.c.bf16 %v1013, %v1012
        %v1019 = vld [vmem:[%s934] sm:$0x1]
        %v1021 = vlaneseq
        %v1022 = vshrl.u32 %v1021, 7
        %v1023 = vsub.s32 0, %v1022
        %v1024 = vrot.slane %v1019, %v1023
        %v1030 = vunpack.c.l.b16 %v1014
        %v1031 = vunpack.c.l.b16 %v1015
        %v1032 = vunpack.c.l.b16 %v1016
        %v1033 = vunpack.c.l.b16 %v1017
        %v1034 = vpack.c.b16 %v1031, %v1030
        %v1035 = vpack.c.b16 %v1033, %v1032
        %vm1038 = vcmask 261120
        %v1040 = vsel %vm1038, %v1018, 0
        %1042 = vmatprep.subr.bf16.mxu0 0
        %1043 = vmatpush1.bf16.msra.mxu0 %v1034
        %1044 = vmatprep.subr.bf16.mxu0 0
        %1045 = vmatpush1.bf16.msra.mxu0 %v1035
        %1046 = vmatprep.subr.bf16.mxu0 0
        %1047 = vmatpush1.bf16.msra.mxu0 0
        %1048 = vmatprep.subr.bf16.mxu0 0
        %1049 = vmatpush1.bf16.msra.mxu0 0
        %1050 = vmatprep.subr.bf16.mxu0 0
        %1051 = vmatpush1.bf16.msra.mxu0 0
        %1052 = vmatprep.subr.bf16.mxu0 0
        %1053 = vmatpush1.bf16.msra.mxu0 0
        %1054 = vmatprep.subr.bf16.mxu0 0
        %1055 = vmatpush1.bf16.msra.mxu0 0
        %1056 = vmatprep.subr.bf16.mxu0 0
        %1057 = vmatpush1.bf16.msra.mxu0 0
        %1058 = vmatprep.subr.bf16.mxu0 0
        %1059 = vmatpush1.bf16.msra.mxu0 0
        %1060 = vmatprep.subr.bf16.mxu0 0
        %1061 = vmatpush1.bf16.msra.mxu0 0
        %1062 = vmatprep.subr.bf16.mxu0 0
        %1063 = vmatpush1.bf16.msra.mxu0 0
        %1064 = vmatprep.subr.bf16.mxu0 0
        %1065 = vmatpush1.bf16.msra.mxu0 0
        %1066 = vmatprep.subr.bf16.mxu0 0
        %1067 = vmatpush1.bf16.msra.mxu0 0
        %1068 = vmatprep.subr.bf16.mxu0 0
        %1069 = vmatpush1.bf16.msra.mxu0 0
        %1070 = vmatprep.subr.bf16.mxu0 0
        %1071 = vmatpush1.bf16.msra.mxu0 0
        %1072 = vmatprep.subr.bf16.mxu0 0
        %1073 = vmatpush1.bf16.msra.mxu0 0
        %1074 = vmatprep.mubr.bf16.mxu0 0
        %1075 = vmatmul.mubr.bf16.gmra.mrb[0].mxu0 %v1040
        %v1076 = vpop.f32.mrb[0].mxu0
        %v1077 = vadd.f32 %v1024, %v1076
        %v1078 = vpop.f32.mrb[0].mxu0
        %v1079 = vpop.f32.mrb[0].mxu0
        %v1080 = vadd.f32 %v1024, %v1079
        %v1081 = vpop.f32.mrb[0].mxu0
        %1082 = vdwg.mxu0
        %v1083 = vld [vmem:[%s939] sm:$0xf]
        %v1084 = vld [vmem:[%s939 + $0x4] sm:$0xf]
        %v1085 = vld [vmem:[%s939 + $0x8] sm:$0xf]
        %v1086 = vld [vmem:[%s939 + $0xc] sm:$0xf]
        %v1087 = vld [vmem:[%s942] sm:$0x1]
        %v1088 = vmul.f32 %v1077, 0.35355338
        %v1089 = vmul.f32 %v1080, 0.35355338
        %v1090 = vpack.c.bf16 %v1088, %v1088
        %v1091 = vpack.c.bf16 %v1089, %v1089
        %v1092 = vpack.c.bf16 %v1077, %v1077
        %v1093 = vpack.c.bf16 %v1080, %v1080
        %1095 = vrot.lane.b32.xlu0 %v1092, 96
        %v1096 = vpop.permute.xlu0 %1095
        %vm1097 = vcmask 64512
        %v1099 = vsel %vm1097, %v1090, 0
        %v1102 = vsel %vm1097, %v1096, 0
        %1104 = vmatprep.subr.bf16.mxu0 0
        %1105 = vmatpush1.bf16.xpose.msra.mxu0 %v1102
        %1106 = vmatprep.subr.bf16.mxu0 0
        %1107 = vmatpush1.bf16.xpose.msra.mxu0 0
        %1108 = vmatprep.subr.bf16.mxu0 0
        %1109 = vmatpush1.bf16.xpose.msra.mxu0 0
        %1110 = vmatprep.subr.bf16.mxu0 0
        %1111 = vmatpush1.bf16.xpose.msra.mxu0 0
        %1112 = vmatprep.subr.bf16.mxu0 0
        %1113 = vmatpush1.bf16.xpose.msra.mxu0 0
        %1114 = vmatprep.subr.bf16.mxu0 0
        %1115 = vmatpush1.bf16.xpose.msra.mxu0 0
        %1116 = vmatprep.subr.bf16.mxu0 0
        %1117 = vmatpush1.bf16.xpose.msra.mxu0 0
        %1118 = vmatprep.subr.bf16.mxu0 0
        %1119 = vmatpush1.bf16.xpose.msra.mxu0 0
        %1120 = vmatprep.subr.bf16.mxu0 0
        %1121 = vmatpush1.bf16.xpose.msra.mxu0 0
        %1122 = vmatprep.subr.bf16.mxu0 0
        %1123 = vmatpush1.bf16.xpose.msra.mxu0 0
        %1124 = vmatprep.subr.bf16.mxu0 0
        %1125 = vmatpush1.bf16.xpose.msra.mxu0 0
        %1126 = vmatprep.subr.bf16.mxu0 0
        %1127 = vmatpush1.bf16.xpose.msra.mxu0 0
        %1128 = vmatprep.subr.bf16.mxu0 0
        %1129 = vmatpush1.bf16.xpose.msra.mxu0 0
        %1130 = vmatprep.subr.bf16.mxu0 0
        %1131 = vmatpush1.bf16.xpose.msra.mxu0 0
        %1132 = vmatprep.subr.bf16.mxu0 0
        %1133 = vmatpush1.bf16.xpose.msra.mxu0 0
        %1134 = vmatprep.subr.bf16.mxu0 0
        %1135 = vmatpush1.bf16.xpose.msra.mxu0 0
        %1136 = vmatprep.mubr.bf16.mxu0 0
        %1137 = vmatmul.mubr.bf16.gmra.mrb[0].mxu0 %v1099
        %v1138 = vpop.f32.mrb[0].mxu0
        %v1139 = vadd.f32 0.0, %v1138
        %v1140 = vpop.f32.mrb[0].mxu0
        %v1141 = vpop.f32.mrb[0].mxu0
        %v1142 = vpop.f32.mrb[0].mxu0
        %1143 = vdwg.mxu0
        %1145 = vrot.lane.b32.xlu0 %v1093, 96
        %v1146 = vpop.permute.xlu0 %1145
        %v1148 = vsel %vm1097, %v1091, 0
        %v1151 = vsel %vm1097, %v1146, 0
        %1153 = vmatprep.subr.bf16.mxu0 0
        %1154 = vmatpush1.bf16.xpose.msra.mxu0 %v1151
        %1155 = vmatprep.subr.bf16.mxu0 0
        %1156 = vmatpush1.bf16.xpose.msra.mxu0 0
        %1157 = vmatprep.subr.bf16.mxu0 0
        %1158 = vmatpush1.bf16.xpose.msra.mxu0 0
        %1159 = vmatprep.subr.bf16.mxu0 0
        %1160 = vmatpush1.bf16.xpose.msra.mxu0 0
        %1161 = vmatprep.subr.bf16.mxu0 0
        %1162 = vmatpush1.bf16.xpose.msra.mxu0 0
        %1163 = vmatprep.subr.bf16.mxu0 0
        %1164 = vmatpush1.bf16.xpose.msra.mxu0 0
        %1165 = vmatprep.subr.bf16.mxu0 0
        %1166 = vmatpush1.bf16.xpose.msra.mxu0 0
        %1167 = vmatprep.subr.bf16.mxu0 0
        %1168 = vmatpush1.bf16.xpose.msra.mxu0 0
        %1169 = vmatprep.subr.bf16.mxu0 0
        %1170 = vmatpush1.bf16.xpose.msra.mxu0 0
        %1171 = vmatprep.subr.bf16.mxu0 0
        %1172 = vmatpush1.bf16.xpose.msra.mxu0 0
        %1173 = vmatprep.subr.bf16.mxu0 0
        %1174 = vmatpush1.bf16.xpose.msra.mxu0 0
        %1175 = vmatprep.subr.bf16.mxu0 0
        %1176 = vmatpush1.bf16.xpose.msra.mxu0 0
        %1177 = vmatprep.subr.bf16.mxu0 0
        %1178 = vmatpush1.bf16.xpose.msra.mxu0 0
        %1179 = vmatprep.subr.bf16.mxu0 0
        %1180 = vmatpush1.bf16.xpose.msra.mxu0 0
        %1181 = vmatprep.subr.bf16.mxu0 0
        %1182 = vmatpush1.bf16.xpose.msra.mxu0 0
        %1183 = vmatprep.subr.bf16.mxu0 0
        %1184 = vmatpush1.bf16.xpose.msra.mxu0 0
        %1185 = vmatprep.mubr.bf16.mxu0 0
        %1186 = vmatmul.mubr.bf16.gmra.mrb[0].mxu0 %v1148
        %v1187 = vpop.f32.mrb[0].mxu0
        %v1188 = vadd.f32 0.0, %v1187
        %v1189 = vpop.f32.mrb[0].mxu0
        %v1190 = vpop.f32.mrb[0].mxu0
        %v1191 = vpop.f32.mrb[0].mxu0
        %1192 = vdwg.mxu0
        %v1193 = vsel %vm1097, %v1139, -inf
        %1194 = vmax.xlane.f32.xlu0 %v1193
        %v1195 = vpop.xlane.xlu0 %1194
        %v1196 = vsel %vm1097, %v1188, -inf
        %1197 = vmax.xlane.f32.xlu0 %v1196
        %v1198 = vpop.xlane.xlu0 %1197
        %v1199 = vsub.f32 %v1139, %v1195
        %v1200 = vsub.f32 %v1188, %v1198
        %v1201 = vmul.f32 %v1199, 1.442695
        %v1202 = vpow.pop %v1201
        %v1203 = vmul.f32 %v1200, 1.442695
        %v1204 = vpow.pop %v1203
        %v1205 = vsel %vm1097, %v1202, 0.0
        %1206 = vadd.xlane.f32.xlu0 %v1205
        %v1207 = vpop.xlane.xlu0 %1206
        %v1208 = vsel %vm1097, %v1204, 0.0
        %1209 = vadd.xlane.f32.xlu0 %v1208
        %v1210 = vpop.xlane.xlu0 %1209
        %v1211 = vrcp.pop %v1207
        %v1212 = vrcp.pop %v1210
        %v1213 = vmul.f32 %v1202, %v1211
        %v1214 = vmul.f32 %v1204, %v1212
        %v1215 = vpack.c.bf16 %v1213, %v1213
        %v1216 = vpack.c.bf16 %v1214, %v1214
        %1217 = vrot.lane.b32.xlu0 %v1092, 64
        %v1218 = vpop.permute.xlu0 %1217
        %v1220 = vsel %vm1097, %v1215, 0
        %vm1222 = vcmask 1043456
        %v1224 = vsel %vm1222, %v1218, 0
        %1226 = vmatprep.subr.bf16.mxu0 0
        %1227 = vmatpush1.bf16.msra.mxu0 %v1224
        %1228 = vmatprep.subr.bf16.mxu0 0
        %1229 = vmatpush1.bf16.msra.mxu0 0
        %1230 = vmatprep.subr.bf16.mxu0 0
        %1231 = vmatpush1.bf16.msra.mxu0 0
        %1232 = vmatprep.subr.bf16.mxu0 0
        %1233 = vmatpush1.bf16.msra.mxu0 0
        %1234 = vmatprep.subr.bf16.mxu0 0
        %1235 = vmatpush1.bf16.msra.mxu0 0
        %1236 = vmatprep.subr.bf16.mxu0 0
        %1237 = vmatpush1.bf16.msra.mxu0 0
        %1238 = vmatprep.subr.bf16.mxu0 0
        %1239 = vmatpush1.bf16.msra.mxu0 0
        %1240 = vmatprep.subr.bf16.mxu0 0
        %1241 = vmatpush1.bf16.msra.mxu0 0
        %1242 = vmatprep.subr.bf16.mxu0 0
        %1243 = vmatpush1.bf16.msra.mxu0 0
        %1244 = vmatprep.subr.bf16.mxu0 0
        %1245 = vmatpush1.bf16.msra.mxu0 0
        %1246 = vmatprep.subr.bf16.mxu0 0
        %1247 = vmatpush1.bf16.msra.mxu0 0
        %1248 = vmatprep.subr.bf16.mxu0 0
        %1249 = vmatpush1.bf16.msra.mxu0 0
        %1250 = vmatprep.subr.bf16.mxu0 0
        %1251 = vmatpush1.bf16.msra.mxu0 0
        %1252 = vmatprep.subr.bf16.mxu0 0
        %1253 = vmatpush1.bf16.msra.mxu0 0
        %1254 = vmatprep.subr.bf16.mxu0 0
        %1255 = vmatpush1.bf16.msra.mxu0 0
        %1256 = vmatprep.subr.bf16.mxu0 0
        %1257 = vmatpush1.bf16.msra.mxu0 0
        %1258 = vmatprep.mubr.bf16.mxu0 0
        %1259 = vmatmul.mubr.bf16.gmra.mrb[0].mxu0 %v1220
        %v1260 = vpop.f32.mrb[0].mxu0
        %v1261 = vadd.f32 0.0, %v1260
        %v1262 = vpop.f32.mrb[0].mxu0
        %v1263 = vpop.f32.mrb[0].mxu0
        %v1264 = vpop.f32.mrb[0].mxu0
        %1265 = vdwg.mxu0
        %1266 = vrot.lane.b32.xlu0 %v1093, 64
        %v1267 = vpop.permute.xlu0 %1266
        %v1269 = vsel %vm1097, %v1216, 0
        %v1272 = vsel %vm1222, %v1267, 0
        %1274 = vmatprep.subr.bf16.mxu0 0
        %1275 = vmatpush1.bf16.msra.mxu0 %v1272
        %1276 = vmatprep.subr.bf16.mxu0 0
        %1277 = vmatpush1.bf16.msra.mxu0 0
        %1278 = vmatprep.subr.bf16.mxu0 0
        %1279 = vmatpush1.bf16.msra.mxu0 0
        %1280 = vmatprep.subr.bf16.mxu0 0
        %1281 = vmatpush1.bf16.msra.mxu0 0
        %1282 = vmatprep.subr.bf16.mxu0 0
        %1283 = vmatpush1.bf16.msra.mxu0 0
        %1284 = vmatprep.subr.bf16.mxu0 0
        %1285 = vmatpush1.bf16.msra.mxu0 0
        %1286 = vmatprep.subr.bf16.mxu0 0
        %1287 = vmatpush1.bf16.msra.mxu0 0
        %1288 = vmatprep.subr.bf16.mxu0 0
        %1289 = vmatpush1.bf16.msra.mxu0 0
        %1290 = vmatprep.subr.bf16.mxu0 0
        %1291 = vmatpush1.bf16.msra.mxu0 0
        %1292 = vmatprep.subr.bf16.mxu0 0
        %1293 = vmatpush1.bf16.msra.mxu0 0
        %1294 = vmatprep.subr.bf16.mxu0 0
        %1295 = vmatpush1.bf16.msra.mxu0 0
        %1296 = vmatprep.subr.bf16.mxu0 0
        %1297 = vmatpush1.bf16.msra.mxu0 0
        %1298 = vmatprep.subr.bf16.mxu0 0
        %1299 = vmatpush1.bf16.msra.mxu0 0
        %1300 = vmatprep.subr.bf16.mxu0 0
        %1301 = vmatpush1.bf16.msra.mxu0 0
        %1302 = vmatprep.subr.bf16.mxu0 0
        %1303 = vmatpush1.bf16.msra.mxu0 0
        %1304 = vmatprep.subr.bf16.mxu0 0
        %1305 = vmatpush1.bf16.msra.mxu0 0
        %1306 = vmatprep.mubr.bf16.mxu0 0
        %1307 = vmatmul.mubr.bf16.gmra.mrb[0].mxu0 %v1269
        %v1308 = vpop.f32.mrb[0].mxu0
        %v1309 = vadd.f32 0.0, %v1308
        %v1310 = vpop.f32.mrb[0].mxu0
        %v1311 = vpop.f32.mrb[0].mxu0
        %v1312 = vpop.f32.mrb[0].mxu0
        %1313 = vdwg.mxu0
        %1315 = vrot.lane.b32.xlu0 %v1090, 120
        %v1316 = vpop.permute.xlu0 %1315
        %1317 = vrot.lane.b32.xlu0 %v1092, 88
        %v1318 = vpop.permute.xlu0 %1317
        %v1320 = vsel %vm1097, %v1316, 0
        %v1323 = vsel %vm1097, %v1318, 0
        %1325 = vmatprep.subr.bf16.mxu0 0
        %1326 = vmatpush1.bf16.xpose.msra.mxu0 %v1323
        %1327 = vmatprep.subr.bf16.mxu0 0
        %1328 = vmatpush1.bf16.xpose.msra.mxu0 0
        %1329 = vmatprep.subr.bf16.mxu0 0
        %1330 = vmatpush1.bf16.xpose.msra.mxu0 0
        %1331 = vmatprep.subr.bf16.mxu0 0
        %1332 = vmatpush1.bf16.xpose.msra.mxu0 0
        %1333 = vmatprep.subr.bf16.mxu0 0
        %1334 = vmatpush1.bf16.xpose.msra.mxu0 0
        %1335 = vmatprep.subr.bf16.mxu0 0
        %1336 = vmatpush1.bf16.xpose.msra.mxu0 0
        %1337 = vmatprep.subr.bf16.mxu0 0
        %1338 = vmatpush1.bf16.xpose.msra.mxu0 0
        %1339 = vmatprep.subr.bf16.mxu0 0
        %1340 = vmatpush1.bf16.xpose.msra.mxu0 0
        %1341 = vmatprep.subr.bf16.mxu0 0
        %1342 = vmatpush1.bf16.xpose.msra.mxu0 0
        %1343 = vmatprep.subr.bf16.mxu0 0
        %1344 = vmatpush1.bf16.xpose.msra.mxu0 0
        %1345 = vmatprep.subr.bf16.mxu0 0
        %1346 = vmatpush1.bf16.xpose.msra.mxu0 0
        %1347 = vmatprep.subr.bf16.mxu0 0
        %1348 = vmatpush1.bf16.xpose.msra.mxu0 0
        %1349 = vmatprep.subr.bf16.mxu0 0
        %1350 = vmatpush1.bf16.xpose.msra.mxu0 0
        %1351 = vmatprep.subr.bf16.mxu0 0
        %1352 = vmatpush1.bf16.xpose.msra.mxu0 0
        %1353 = vmatprep.subr.bf16.mxu0 0
        %1354 = vmatpush1.bf16.xpose.msra.mxu0 0
        %1355 = vmatprep.subr.bf16.mxu0 0
        %1356 = vmatpush1.bf16.xpose.msra.mxu0 0
        %1357 = vmatprep.mubr.bf16.mxu0 0
        %1358 = vmatmul.mubr.bf16.gmra.mrb[0].mxu0 %v1320
        %v1359 = vpop.f32.mrb[0].mxu0
        %v1360 = vadd.f32 0.0, %v1359
        %v1361 = vpop.f32.mrb[0].mxu0
        %v1362 = vpop.f32.mrb[0].mxu0
        %v1363 = vpop.f32.mrb[0].mxu0
        %1364 = vdwg.mxu0
        %1366 = vrot.lane.b32.xlu0 %v1091, 120
        %v1367 = vpop.permute.xlu0 %1366
        %1368 = vrot.lane.b32.xlu0 %v1093, 88
        %v1369 = vpop.permute.xlu0 %1368
        %v1371 = vsel %vm1097, %v1367, 0
        %v1374 = vsel %vm1097, %v1369, 0
        %1376 = vmatprep.subr.bf16.mxu0 0
        %1377 = vmatpush1.bf16.xpose.msra.mxu0 %v1374
        %1378 = vmatprep.subr.bf16.mxu0 0
        %1379 = vmatpush1.bf16.xpose.msra.mxu0 0
        %1380 = vmatprep.subr.bf16.mxu0 0
        %1381 = vmatpush1.bf16.xpose.msra.mxu0 0
        %1382 = vmatprep.subr.bf16.mxu0 0
        %1383 = vmatpush1.bf16.xpose.msra.mxu0 0
        %1384 = vmatprep.subr.bf16.mxu0 0
        %1385 = vmatpush1.bf16.xpose.msra.mxu0 0
        %1386 = vmatprep.subr.bf16.mxu0 0
        %1387 = vmatpush1.bf16.xpose.msra.mxu0 0
        %1388 = vmatprep.subr.bf16.mxu0 0
        %1389 = vmatpush1.bf16.xpose.msra.mxu0 0
        %1390 = vmatprep.subr.bf16.mxu0 0
        %1391 = vmatpush1.bf16.xpose.msra.mxu0 0
        %1392 = vmatprep.subr.bf16.mxu0 0
        %1393 = vmatpush1.bf16.xpose.msra.mxu0 0
        %1394 = vmatprep.subr.bf16.mxu0 0
        %1395 = vmatpush1.bf16.xpose.msra.mxu0 0
        %1396 = vmatprep.subr.bf16.mxu0 0
        %1397 = vmatpush1.bf16.xpose.msra.mxu0 0
        %1398 = vmatprep.subr.bf16.mxu0 0
        %1399 = vmatpush1.bf16.xpose.msra.mxu0 0
        %1400 = vmatprep.subr.bf16.mxu0 0
        %1401 = vmatpush1.bf16.xpose.msra.mxu0 0
        %1402 = vmatprep.subr.bf16.mxu0 0
        %1403 = vmatpush1.bf16.xpose.msra.mxu0 0
        %1404 = vmatprep.subr.bf16.mxu0 0
        %1405 = vmatpush1.bf16.xpose.msra.mxu0 0
        %1406 = vmatprep.subr.bf16.mxu0 0
        %1407 = vmatpush1.bf16.xpose.msra.mxu0 0
        %1408 = vmatprep.mubr.bf16.mxu0 0
        %1409 = vmatmul.mubr.bf16.gmra.mrb[0].mxu0 %v1371
        %v1410 = vpop.f32.mrb[0].mxu0
        %v1411 = vadd.f32 0.0, %v1410
        %v1412 = vpop.f32.mrb[0].mxu0
        %v1413 = vpop.f32.mrb[0].mxu0
        %v1414 = vpop.f32.mrb[0].mxu0
        %1415 = vdwg.mxu0
        %v1416 = vsel %vm1097, %v1360, -inf
        %1417 = vmax.xlane.f32.xlu0 %v1416
        %v1418 = vpop.xlane.xlu0 %1417
        %v1419 = vsel %vm1097, %v1411, -inf
        %1420 = vmax.xlane.f32.xlu0 %v1419
        %v1421 = vpop.xlane.xlu0 %1420
        %v1422 = vsub.f32 %v1360, %v1418
        %v1423 = vsub.f32 %v1411, %v1421
        %v1424 = vmul.f32 %v1422, 1.442695
        %v1425 = vpow.pop %v1424
        %v1426 = vmul.f32 %v1423, 1.442695
        %v1427 = vpow.pop %v1426
        %v1428 = vsel %vm1097, %v1425, 0.0
        %1429 = vadd.xlane.f32.xlu0 %v1428
        %v1430 = vpop.xlane.xlu0 %1429
        %v1431 = vsel %vm1097, %v1427, 0.0
        %1432 = vadd.xlane.f32.xlu0 %v1431
        %v1433 = vpop.xlane.xlu0 %1432
        %v1434 = vrcp.pop %v1430
        %v1435 = vrcp.pop %v1433
        %v1436 = vmul.f32 %v1425, %v1434
        %v1437 = vmul.f32 %v1427, %v1435
        %v1438 = vpack.c.bf16 %v1436, %v1436
        %v1439 = vpack.c.bf16 %v1437, %v1437
        %1440 = vrot.lane.b32.xlu0 %v1092, 56
        %v1441 = vpop.permute.xlu0 %1440
        %v1443 = vsel %vm1097, %v1438, 0
        %v1446 = vsel %vm1222, %v1441, 0
        %1448 = vmatprep.subr.bf16.mxu0 0
        %1449 = vmatpush1.bf16.msra.mxu0 %v1446
        %1450 = vmatprep.subr.bf16.mxu0 0
        %1451 = vmatpush1.bf16.msra.mxu0 0
        %1452 = vmatprep.subr.bf16.mxu0 0
        %1453 = vmatpush1.bf16.msra.mxu0 0
        %1454 = vmatprep.subr.bf16.mxu0 0
        %1455 = vmatpush1.bf16.msra.mxu0 0
        %1456 = vmatprep.subr.bf16.mxu0 0
        %1457 = vmatpush1.bf16.msra.mxu0 0
        %1458 = vmatprep.subr.bf16.mxu0 0
        %1459 = vmatpush1.bf16.msra.mxu0 0
        %1460 = vmatprep.subr.bf16.mxu0 0
        %1461 = vmatpush1.bf16.msra.mxu0 0
        %1462 = vmatprep.subr.bf16.mxu0 0
        %1463 = vmatpush1.bf16.msra.mxu0 0
        %1464 = vmatprep.subr.bf16.mxu0 0
        %1465 = vmatpush1.bf16.msra.mxu0 0
        %1466 = vmatprep.subr.bf16.mxu0 0
        %1467 = vmatpush1.bf16.msra.mxu0 0
        %1468 = vmatprep.subr.bf16.mxu0 0
        %1469 = vmatpush1.bf16.msra.mxu0 0
        %1470 = vmatprep.subr.bf16.mxu0 0
        %1471 = vmatpush1.bf16.msra.mxu0 0
        %1472 = vmatprep.subr.bf16.mxu0 0
        %1473 = vmatpush1.bf16.msra.mxu0 0
        %1474 = vmatprep.subr.bf16.mxu0 0
        %1475 = vmatpush1.bf16.msra.mxu0 0
        %1476 = vmatprep.subr.bf16.mxu0 0
        %1477 = vmatpush1.bf16.msra.mxu0 0
        %1478 = vmatprep.subr.bf16.mxu0 0
        %1479 = vmatpush1.bf16.msra.mxu0 0
        %1480 = vmatprep.mubr.bf16.mxu0 0
        %1481 = vmatmul.mubr.bf16.gmra.mrb[0].mxu0 %v1443
        %v1482 = vpop.f32.mrb[0].mxu0
        %v1483 = vadd.f32 0.0, %v1482
        %v1484 = vpop.f32.mrb[0].mxu0
        %v1485 = vpop.f32.mrb[0].mxu0
        %v1486 = vpop.f32.mrb[0].mxu0
        %1487 = vdwg.mxu0
        %1488 = vrot.lane.b32.xlu0 %v1093, 56
        %v1489 = vpop.permute.xlu0 %1488
        %v1491 = vsel %vm1097, %v1439, 0
        %v1494 = vsel %vm1222, %v1489, 0
        %1496 = vmatprep.subr.bf16.mxu0 0
        %1497 = vmatpush1.bf16.msra.mxu0 %v1494
        %1498 = vmatprep.subr.bf16.mxu0 0
        %1499 = vmatpush1.bf16.msra.mxu0 0
        %1500 = vmatprep.subr.bf16.mxu0 0
        %1501 = vmatpush1.bf16.msra.mxu0 0
        %1502 = vmatprep.subr.bf16.mxu0 0
        %1503 = vmatpush1.bf16.msra.mxu0 0
        %1504 = vmatprep.subr.bf16.mxu0 0
        %1505 = vmatpush1.bf16.msra.mxu0 0
        %1506 = vmatprep.subr.bf16.mxu0 0
        %1507 = vmatpush1.bf16.msra.mxu0 0
        %1508 = vmatprep.subr.bf16.mxu0 0
        %1509 = vmatpush1.bf16.msra.mxu0 0
        %1510 = vmatprep.subr.bf16.mxu0 0
        %1511 = vmatpush1.bf16.msra.mxu0 0
        %1512 = vmatprep.subr.bf16.mxu0 0
        %1513 = vmatpush1.bf16.msra.mxu0 0
        %1514 = vmatprep.subr.bf16.mxu0 0
        %1515 = vmatpush1.bf16.msra.mxu0 0
        %1516 = vmatprep.subr.bf16.mxu0 0
        %1517 = vmatpush1.bf16.msra.mxu0 0
        %1518 = vmatprep.subr.bf16.mxu0 0
        %1519 = vmatpush1.bf16.msra.mxu0 0
        %1520 = vmatprep.subr.bf16.mxu0 0
        %1521 = vmatpush1.bf16.msra.mxu0 0
        %1522 = vmatprep.subr.bf16.mxu0 0
        %1523 = vmatpush1.bf16.msra.mxu0 0
        %1524 = vmatprep.subr.bf16.mxu0 0
        %1525 = vmatpush1.bf16.msra.mxu0 0
        %1526 = vmatprep.subr.bf16.mxu0 0
        %1527 = vmatpush1.bf16.msra.mxu0 0
        %1528 = vmatprep.mubr.bf16.mxu0 0
        %1529 = vmatmul.mubr.bf16.gmra.mrb[0].mxu0 %v1491
        %v1530 = vpop.f32.mrb[0].mxu0
        %v1531 = vadd.f32 0.0, %v1530
        %v1532 = vpop.f32.mrb[0].mxu0
        %v1533 = vpop.f32.mrb[0].mxu0
        %v1534 = vpop.f32.mrb[0].mxu0
        %1535 = vdwg.mxu0
        %1536 = vrot.lane.b32.xlu0 %v1090, 112
        %v1537 = vpop.permute.xlu0 %1536
        %1538 = vrot.lane.b32.xlu0 %v1092, 80
        %v1539 = vpop.permute.xlu0 %1538
        %v1541 = vsel %vm1097, %v1537, 0
        %v1544 = vsel %vm1097, %v1539, 0
        %1546 = vmatprep.subr.bf16.mxu0 0
        %1547 = vmatpush1.bf16.xpose.msra.mxu0 %v1544
        %1548 = vmatprep.subr.bf16.mxu0 0
        %1549 = vmatpush1.bf16.xpose.msra.mxu0 0
        %1550 = vmatprep.subr.bf16.mxu0 0
        %1551 = vmatpush1.bf16.xpose.msra.mxu0 0
        %1552 = vmatprep.subr.bf16.mxu0 0
        %1553 = vmatpush1.bf16.xpose.msra.mxu0 0
        %1554 = vmatprep.subr.bf16.mxu0 0
        %1555 = vmatpush1.bf16.xpose.msra.mxu0 0
        %1556 = vmatprep.subr.bf16.mxu0 0
        %1557 = vmatpush1.bf16.xpose.msra.mxu0 0
        %1558 = vmatprep.subr.bf16.mxu0 0
        %1559 = vmatpush1.bf16.xpose.msra.mxu0 0
        %1560 = vmatprep.subr.bf16.mxu0 0
        %1561 = vmatpush1.bf16.xpose.msra.mxu0 0
        %1562 = vmatprep.subr.bf16.mxu0 0
        %1563 = vmatpush1.bf16.xpose.msra.mxu0 0
        %1564 = vmatprep.subr.bf16.mxu0 0
        %1565 = vmatpush1.bf16.xpose.msra.mxu0 0
        %1566 = vmatprep.subr.bf16.mxu0 0
        %1567 = vmatpush1.bf16.xpose.msra.mxu0 0
        %1568 = vmatprep.subr.bf16.mxu0 0
        %1569 = vmatpush1.bf16.xpose.msra.mxu0 0
        %1570 = vmatprep.subr.bf16.mxu0 0
        %1571 = vmatpush1.bf16.xpose.msra.mxu0 0
        %1572 = vmatprep.subr.bf16.mxu0 0
        %1573 = vmatpush1.bf16.xpose.msra.mxu0 0
        %1574 = vmatprep.subr.bf16.mxu0 0
        %1575 = vmatpush1.bf16.xpose.msra.mxu0 0
        %1576 = vmatprep.subr.bf16.mxu0 0
        %1577 = vmatpush1.bf16.xpose.msra.mxu0 0
        %1578 = vmatprep.mubr.bf16.mxu0 0
        %1579 = vmatmul.mubr.bf16.gmra.mrb[0].mxu0 %v1541
        %v1580 = vpop.f32.mrb[0].mxu0
        %v1581 = vadd.f32 0.0, %v1580
        %v1582 = vpop.f32.mrb[0].mxu0
        %v1583 = vpop.f32.mrb[0].mxu0
        %v1584 = vpop.f32.mrb[0].mxu0
        %1585 = vdwg.mxu0
        %1586 = vrot.lane.b32.xlu0 %v1091, 112
        %v1587 = vpop.permute.xlu0 %1586
        %1588 = vrot.lane.b32.xlu0 %v1093, 80
        %v1589 = vpop.permute.xlu0 %1588
        %v1591 = vsel %vm1097, %v1587, 0
        %v1594 = vsel %vm1097, %v1589, 0
        %1596 = vmatprep.subr.bf16.mxu0 0
        %1597 = vmatpush1.bf16.xpose.msra.mxu0 %v1594
        %1598 = vmatprep.subr.bf16.mxu0 0
        %1599 = vmatpush1.bf16.xpose.msra.mxu0 0
        %1600 = vmatprep.subr.bf16.mxu0 0
        %1601 = vmatpush1.bf16.xpose.msra.mxu0 0
        %1602 = vmatprep.subr.bf16.mxu0 0
        %1603 = vmatpush1.bf16.xpose.msra.mxu0 0
        %1604 = vmatprep.subr.bf16.mxu0 0
        %1605 = vmatpush1.bf16.xpose.msra.mxu0 0
        %1606 = vmatprep.subr.bf16.mxu0 0
        %1607 = vmatpush1.bf16.xpose.msra.mxu0 0
        %1608 = vmatprep.subr.bf16.mxu0 0
        %1609 = vmatpush1.bf16.xpose.msra.mxu0 0
        %1610 = vmatprep.subr.bf16.mxu0 0
        %1611 = vmatpush1.bf16.xpose.msra.mxu0 0
        %1612 = vmatprep.subr.bf16.mxu0 0
        %1613 = vmatpush1.bf16.xpose.msra.mxu0 0
        %1614 = vmatprep.subr.bf16.mxu0 0
        %1615 = vmatpush1.bf16.xpose.msra.mxu0 0
        %1616 = vmatprep.subr.bf16.mxu0 0
        %1617 = vmatpush1.bf16.xpose.msra.mxu0 0
        %1618 = vmatprep.subr.bf16.mxu0 0
        %1619 = vmatpush1.bf16.xpose.msra.mxu0 0
        %1620 = vmatprep.subr.bf16.mxu0 0
        %1621 = vmatpush1.bf16.xpose.msra.mxu0 0
        %1622 = vmatprep.subr.bf16.mxu0 0
        %1623 = vmatpush1.bf16.xpose.msra.mxu0 0
        %1624 = vmatprep.subr.bf16.mxu0 0
        %1625 = vmatpush1.bf16.xpose.msra.mxu0 0
        %1626 = vmatprep.subr.bf16.mxu0 0
        %1627 = vmatpush1.bf16.xpose.msra.mxu0 0
        %1628 = vmatprep.mubr.bf16.mxu0 0
        %1629 = vmatmul.mubr.bf16.gmra.mrb[0].mxu0 %v1591
        %v1630 = vpop.f32.mrb[0].mxu0
        %v1631 = vadd.f32 0.0, %v1630
        %v1632 = vpop.f32.mrb[0].mxu0
        %v1633 = vpop.f32.mrb[0].mxu0
        %v1634 = vpop.f32.mrb[0].mxu0
        %1635 = vdwg.mxu0
        %v1636 = vsel %vm1097, %v1581, -inf
        %1637 = vmax.xlane.f32.xlu0 %v1636
        %v1638 = vpop.xlane.xlu0 %1637
        %v1639 = vsel %vm1097, %v1631, -inf
        %1640 = vmax.xlane.f32.xlu0 %v1639
        %v1641 = vpop.xlane.xlu0 %1640
        %v1642 = vsub.f32 %v1581, %v1638
        %v1643 = vsub.f32 %v1631, %v1641
        %v1644 = vmul.f32 %v1642, 1.442695
        %v1645 = vpow.pop %v1644
        %v1646 = vmul.f32 %v1643, 1.442695
        %v1647 = vpow.pop %v1646
        %v1648 = vsel %vm1097, %v1645, 0.0
        %1649 = vadd.xlane.f32.xlu0 %v1648
        %v1650 = vpop.xlane.xlu0 %1649
        %v1651 = vsel %vm1097, %v1647, 0.0
        %1652 = vadd.xlane.f32.xlu0 %v1651
        %v1653 = vpop.xlane.xlu0 %1652
        %v1654 = vrcp.pop %v1650
        %v1655 = vrcp.pop %v1653
        %v1656 = vmul.f32 %v1645, %v1654
        %v1657 = vmul.f32 %v1647, %v1655
        %v1658 = vpack.c.bf16 %v1656, %v1656
        %v1659 = vpack.c.bf16 %v1657, %v1657
        %1660 = vrot.lane.b32.xlu0 %v1092, 48
        %v1661 = vpop.permute.xlu0 %1660
        %v1663 = vsel %vm1097, %v1658, 0
        %v1666 = vsel %vm1222, %v1661, 0
        %1668 = vmatprep.subr.bf16.mxu0 0
        %1669 = vmatpush1.bf16.msra.mxu0 %v1666
        %1670 = vmatprep.subr.bf16.mxu0 0
        %1671 = vmatpush1.bf16.msra.mxu0 0
        %1672 = vmatprep.subr.bf16.mxu0 0
        %1673 = vmatpush1.bf16.msra.mxu0 0
        %1674 = vmatprep.subr.bf16.mxu0 0
        %1675 = vmatpush1.bf16.msra.mxu0 0
        %1676 = vmatprep.subr.bf16.mxu0 0
        %1677 = vmatpush1.bf16.msra.mxu0 0
        %1678 = vmatprep.subr.bf16.mxu0 0
        %1679 = vmatpush1.bf16.msra.mxu0 0
        %1680 = vmatprep.subr.bf16.mxu0 0
        %1681 = vmatpush1.bf16.msra.mxu0 0
        %1682 = vmatprep.subr.bf16.mxu0 0
        %1683 = vmatpush1.bf16.msra.mxu0 0
        %1684 = vmatprep.subr.bf16.mxu0 0
        %1685 = vmatpush1.bf16.msra.mxu0 0
        %1686 = vmatprep.subr.bf16.mxu0 0
        %1687 = vmatpush1.bf16.msra.mxu0 0
        %1688 = vmatprep.subr.bf16.mxu0 0
        %1689 = vmatpush1.bf16.msra.mxu0 0
        %1690 = vmatprep.subr.bf16.mxu0 0
        %1691 = vmatpush1.bf16.msra.mxu0 0
        %1692 = vmatprep.subr.bf16.mxu0 0
        %1693 = vmatpush1.bf16.msra.mxu0 0
        %1694 = vmatprep.subr.bf16.mxu0 0
        %1695 = vmatpush1.bf16.msra.mxu0 0
        %1696 = vmatprep.subr.bf16.mxu0 0
        %1697 = vmatpush1.bf16.msra.mxu0 0
        %1698 = vmatprep.subr.bf16.mxu0 0
        %1699 = vmatpush1.bf16.msra.mxu0 0
        %1700 = vmatprep.mubr.bf16.mxu0 0
        %1701 = vmatmul.mubr.bf16.gmra.mrb[0].mxu0 %v1663
        %v1702 = vpop.f32.mrb[0].mxu0
        %v1703 = vadd.f32 0.0, %v1702
        %v1704 = vpop.f32.mrb[0].mxu0
        %v1705 = vpop.f32.mrb[0].mxu0
        %v1706 = vpop.f32.mrb[0].mxu0
        %1707 = vdwg.mxu0
        %1708 = vrot.lane.b32.xlu0 %v1093, 48
        %v1709 = vpop.permute.xlu0 %1708
        %v1711 = vsel %vm1097, %v1659, 0
        %v1714 = vsel %vm1222, %v1709, 0
        %1716 = vmatprep.subr.bf16.mxu0 0
        %1717 = vmatpush1.bf16.msra.mxu0 %v1714
        %1718 = vmatprep.subr.bf16.mxu0 0
        %1719 = vmatpush1.bf16.msra.mxu0 0
        %1720 = vmatprep.subr.bf16.mxu0 0
        %1721 = vmatpush1.bf16.msra.mxu0 0
        %1722 = vmatprep.subr.bf16.mxu0 0
        %1723 = vmatpush1.bf16.msra.mxu0 0
        %1724 = vmatprep.subr.bf16.mxu0 0
        %1725 = vmatpush1.bf16.msra.mxu0 0
        %1726 = vmatprep.subr.bf16.mxu0 0
        %1727 = vmatpush1.bf16.msra.mxu0 0
        %1728 = vmatprep.subr.bf16.mxu0 0
        %1729 = vmatpush1.bf16.msra.mxu0 0
        %1730 = vmatprep.subr.bf16.mxu0 0
        %1731 = vmatpush1.bf16.msra.mxu0 0
        %1732 = vmatprep.subr.bf16.mxu0 0
        %1733 = vmatpush1.bf16.msra.mxu0 0
        %1734 = vmatprep.subr.bf16.mxu0 0
        %1735 = vmatpush1.bf16.msra.mxu0 0
        %1736 = vmatprep.subr.bf16.mxu0 0
        %1737 = vmatpush1.bf16.msra.mxu0 0
        %1738 = vmatprep.subr.bf16.mxu0 0
        %1739 = vmatpush1.bf16.msra.mxu0 0
        %1740 = vmatprep.subr.bf16.mxu0 0
        %1741 = vmatpush1.bf16.msra.mxu0 0
        %1742 = vmatprep.subr.bf16.mxu0 0
        %1743 = vmatpush1.bf16.msra.mxu0 0
        %1744 = vmatprep.subr.bf16.mxu0 0
        %1745 = vmatpush1.bf16.msra.mxu0 0
        %1746 = vmatprep.subr.bf16.mxu0 0
        %1747 = vmatpush1.bf16.msra.mxu0 0
        %1748 = vmatprep.mubr.bf16.mxu0 0
        %1749 = vmatmul.mubr.bf16.gmra.mrb[0].mxu0 %v1711
        %v1750 = vpop.f32.mrb[0].mxu0
        %v1751 = vadd.f32 0.0, %v1750
        %v1752 = vpop.f32.mrb[0].mxu0
        %v1753 = vpop.f32.mrb[0].mxu0
        %v1754 = vpop.f32.mrb[0].mxu0
        %1755 = vdwg.mxu0
        %1756 = vrot.lane.b32.xlu0 %v1090, 104
        %v1757 = vpop.permute.xlu0 %1756
        %1758 = vrot.lane.b32.xlu0 %v1092, 72
        %v1759 = vpop.permute.xlu0 %1758
        %v1761 = vsel %vm1097, %v1757, 0
        %v1764 = vsel %vm1097, %v1759, 0
        %1766 = vmatprep.subr.bf16.mxu0 0
        %1767 = vmatpush1.bf16.xpose.msra.mxu0 %v1764
        %1768 = vmatprep.subr.bf16.mxu0 0
        %1769 = vmatpush1.bf16.xpose.msra.mxu0 0
        %1770 = vmatprep.subr.bf16.mxu0 0
        %1771 = vmatpush1.bf16.xpose.msra.mxu0 0
        %1772 = vmatprep.subr.bf16.mxu0 0
        %1773 = vmatpush1.bf16.xpose.msra.mxu0 0
        %1774 = vmatprep.subr.bf16.mxu0 0
        %1775 = vmatpush1.bf16.xpose.msra.mxu0 0
        %1776 = vmatprep.subr.bf16.mxu0 0
        %1777 = vmatpush1.bf16.xpose.msra.mxu0 0
        %1778 = vmatprep.subr.bf16.mxu0 0
        %1779 = vmatpush1.bf16.xpose.msra.mxu0 0
        %1780 = vmatprep.subr.bf16.mxu0 0
        %1781 = vmatpush1.bf16.xpose.msra.mxu0 0
        %1782 = vmatprep.subr.bf16.mxu0 0
        %1783 = vmatpush1.bf16.xpose.msra.mxu0 0
        %1784 = vmatprep.subr.bf16.mxu0 0
        %1785 = vmatpush1.bf16.xpose.msra.mxu0 0
        %1786 = vmatprep.subr.bf16.mxu0 0
        %1787 = vmatpush1.bf16.xpose.msra.mxu0 0
        %1788 = vmatprep.subr.bf16.mxu0 0
        %1789 = vmatpush1.bf16.xpose.msra.mxu0 0
        %1790 = vmatprep.subr.bf16.mxu0 0
        %1791 = vmatpush1.bf16.xpose.msra.mxu0 0
        %1792 = vmatprep.subr.bf16.mxu0 0
        %1793 = vmatpush1.bf16.xpose.msra.mxu0 0
        %1794 = vmatprep.subr.bf16.mxu0 0
        %1795 = vmatpush1.bf16.xpose.msra.mxu0 0
        %1796 = vmatprep.subr.bf16.mxu0 0
        %1797 = vmatpush1.bf16.xpose.msra.mxu0 0
        %1798 = vmatprep.mubr.bf16.mxu0 0
        %1799 = vmatmul.mubr.bf16.gmra.mrb[0].mxu0 %v1761
        %v1800 = vpop.f32.mrb[0].mxu0
        %v1801 = vadd.f32 0.0, %v1800
        %v1802 = vpop.f32.mrb[0].mxu0
        %v1803 = vpop.f32.mrb[0].mxu0
        %v1804 = vpop.f32.mrb[0].mxu0
        %1805 = vdwg.mxu0
        %1806 = vrot.lane.b32.xlu0 %v1091, 104
        %v1807 = vpop.permute.xlu0 %1806
        %1808 = vrot.lane.b32.xlu0 %v1093, 72
        %v1809 = vpop.permute.xlu0 %1808
        %v1811 = vsel %vm1097, %v1807, 0
        %v1814 = vsel %vm1097, %v1809, 0
        %1816 = vmatprep.subr.bf16.mxu0 0
        %1817 = vmatpush1.bf16.xpose.msra.mxu0 %v1814
        %1818 = vmatprep.subr.bf16.mxu0 0
        %1819 = vmatpush1.bf16.xpose.msra.mxu0 0
        %1820 = vmatprep.subr.bf16.mxu0 0
        %1821 = vmatpush1.bf16.xpose.msra.mxu0 0
        %1822 = vmatprep.subr.bf16.mxu0 0
        %1823 = vmatpush1.bf16.xpose.msra.mxu0 0
        %1824 = vmatprep.subr.bf16.mxu0 0
        %1825 = vmatpush1.bf16.xpose.msra.mxu0 0
        %1826 = vmatprep.subr.bf16.mxu0 0
        %1827 = vmatpush1.bf16.xpose.msra.mxu0 0
        %1828 = vmatprep.subr.bf16.mxu0 0
        %1829 = vmatpush1.bf16.xpose.msra.mxu0 0
        %1830 = vmatprep.subr.bf16.mxu0 0
        %1831 = vmatpush1.bf16.xpose.msra.mxu0 0
        %1832 = vmatprep.subr.bf16.mxu0 0
        %1833 = vmatpush1.bf16.xpose.msra.mxu0 0
        %1834 = vmatprep.subr.bf16.mxu0 0
        %1835 = vmatpush1.bf16.xpose.msra.mxu0 0
        %1836 = vmatprep.subr.bf16.mxu0 0
        %1837 = vmatpush1.bf16.xpose.msra.mxu0 0
        %1838 = vmatprep.subr.bf16.mxu0 0
        %1839 = vmatpush1.bf16.xpose.msra.mxu0 0
        %1840 = vmatprep.subr.bf16.mxu0 0
        %1841 = vmatpush1.bf16.xpose.msra.mxu0 0
        %1842 = vmatprep.subr.bf16.mxu0 0
        %1843 = vmatpush1.bf16.xpose.msra.mxu0 0
        %1844 = vmatprep.subr.bf16.mxu0 0
        %1845 = vmatpush1.bf16.xpose.msra.mxu0 0
        %1846 = vmatprep.subr.bf16.mxu0 0
        %1847 = vmatpush1.bf16.xpose.msra.mxu0 0
        %1848 = vmatprep.mubr.bf16.mxu0 0
        %1849 = vmatmul.mubr.bf16.gmra.mrb[0].mxu0 %v1811
        %v1850 = vpop.f32.mrb[0].mxu0
        %v1851 = vadd.f32 0.0, %v1850
        %v1852 = vpop.f32.mrb[0].mxu0
        %v1853 = vpop.f32.mrb[0].mxu0
        %v1854 = vpop.f32.mrb[0].mxu0
        %1855 = vdwg.mxu0
        %v1856 = vsel %vm1097, %v1801, -inf
        %1857 = vmax.xlane.f32.xlu0 %v1856
        %v1858 = vpop.xlane.xlu0 %1857
        %v1859 = vsel %vm1097, %v1851, -inf
        %1860 = vmax.xlane.f32.xlu0 %v1859
        %v1861 = vpop.xlane.xlu0 %1860
        %v1862 = vsub.f32 %v1801, %v1858
        %v1863 = vsub.f32 %v1851, %v1861
        %v1864 = vmul.f32 %v1862, 1.442695
        %v1865 = vpow.pop %v1864
        %v1866 = vmul.f32 %v1863, 1.442695
        %v1867 = vpow.pop %v1866
        %v1868 = vsel %vm1097, %v1865, 0.0
        %1869 = vadd.xlane.f32.xlu0 %v1868
        %v1870 = vpop.xlane.xlu0 %1869
        %v1871 = vsel %vm1097, %v1867, 0.0
        %1872 = vadd.xlane.f32.xlu0 %v1871
        %v1873 = vpop.xlane.xlu0 %1872
        %v1874 = vrcp.pop %v1870
        %v1875 = vrcp.pop %v1873
        %v1876 = vmul.f32 %v1865, %v1874
        %v1877 = vmul.f32 %v1867, %v1875
        %v1878 = vpack.c.bf16 %v1876, %v1876
        %v1879 = vpack.c.bf16 %v1877, %v1877
        %1880 = vrot.lane.b32.xlu0 %v1092, 40
        %v1881 = vpop.permute.xlu0 %1880
        %v1883 = vsel %vm1097, %v1878, 0
        %v1886 = vsel %vm1222, %v1881, 0
        %1888 = vmatprep.subr.bf16.mxu0 0
        %1889 = vmatpush1.bf16.msra.mxu0 %v1886
        %1890 = vmatprep.subr.bf16.mxu0 0
        %1891 = vmatpush1.bf16.msra.mxu0 0
        %1892 = vmatprep.subr.bf16.mxu0 0
        %1893 = vmatpush1.bf16.msra.mxu0 0
        %1894 = vmatprep.subr.bf16.mxu0 0
        %1895 = vmatpush1.bf16.msra.mxu0 0
        %1896 = vmatprep.subr.bf16.mxu0 0
        %1897 = vmatpush1.bf16.msra.mxu0 0
        %1898 = vmatprep.subr.bf16.mxu0 0
        %1899 = vmatpush1.bf16.msra.mxu0 0
        %1900 = vmatprep.subr.bf16.mxu0 0
        %1901 = vmatpush1.bf16.msra.mxu0 0
        %1902 = vmatprep.subr.bf16.mxu0 0
        %1903 = vmatpush1.bf16.msra.mxu0 0
        %1904 = vmatprep.subr.bf16.mxu0 0
        %1905 = vmatpush1.bf16.msra.mxu0 0
        %1906 = vmatprep.subr.bf16.mxu0 0
        %1907 = vmatpush1.bf16.msra.mxu0 0
        %1908 = vmatprep.subr.bf16.mxu0 0
        %1909 = vmatpush1.bf16.msra.mxu0 0
        %1910 = vmatprep.subr.bf16.mxu0 0
        %1911 = vmatpush1.bf16.msra.mxu0 0
        %1912 = vmatprep.subr.bf16.mxu0 0
        %1913 = vmatpush1.bf16.msra.mxu0 0
        %1914 = vmatprep.subr.bf16.mxu0 0
        %1915 = vmatpush1.bf16.msra.mxu0 0
        %1916 = vmatprep.subr.bf16.mxu0 0
        %1917 = vmatpush1.bf16.msra.mxu0 0
        %1918 = vmatprep.subr.bf16.mxu0 0
        %1919 = vmatpush1.bf16.msra.mxu0 0
        %1920 = vmatprep.mubr.bf16.mxu0 0
        %1921 = vmatmul.mubr.bf16.gmra.mrb[0].mxu0 %v1883
        %v1922 = vpop.f32.mrb[0].mxu0
        %v1923 = vadd.f32 0.0, %v1922
        %v1924 = vpop.f32.mrb[0].mxu0
        %v1925 = vpop.f32.mrb[0].mxu0
        %v1926 = vpop.f32.mrb[0].mxu0
        %1927 = vdwg.mxu0
        %1928 = vrot.lane.b32.xlu0 %v1093, 40
        %v1929 = vpop.permute.xlu0 %1928
        %v1931 = vsel %vm1097, %v1879, 0
        %v1934 = vsel %vm1222, %v1929, 0
        %1936 = vmatprep.subr.bf16.mxu0 0
        %1937 = vmatpush1.bf16.msra.mxu0 %v1934
        %1938 = vmatprep.subr.bf16.mxu0 0
        %1939 = vmatpush1.bf16.msra.mxu0 0
        %1940 = vmatprep.subr.bf16.mxu0 0
        %1941 = vmatpush1.bf16.msra.mxu0 0
        %1942 = vmatprep.subr.bf16.mxu0 0
        %1943 = vmatpush1.bf16.msra.mxu0 0
        %1944 = vmatprep.subr.bf16.mxu0 0
        %1945 = vmatpush1.bf16.msra.mxu0 0
        %1946 = vmatprep.subr.bf16.mxu0 0
        %1947 = vmatpush1.bf16.msra.mxu0 0
        %1948 = vmatprep.subr.bf16.mxu0 0
        %1949 = vmatpush1.bf16.msra.mxu0 0
        %1950 = vmatprep.subr.bf16.mxu0 0
        %1951 = vmatpush1.bf16.msra.mxu0 0
        %1952 = vmatprep.subr.bf16.mxu0 0
        %1953 = vmatpush1.bf16.msra.mxu0 0
        %1954 = vmatprep.subr.bf16.mxu0 0
        %1955 = vmatpush1.bf16.msra.mxu0 0
        %1956 = vmatprep.subr.bf16.mxu0 0
        %1957 = vmatpush1.bf16.msra.mxu0 0
        %1958 = vmatprep.subr.bf16.mxu0 0
        %1959 = vmatpush1.bf16.msra.mxu0 0
        %1960 = vmatprep.subr.bf16.mxu0 0
        %1961 = vmatpush1.bf16.msra.mxu0 0
        %1962 = vmatprep.subr.bf16.mxu0 0
        %1963 = vmatpush1.bf16.msra.mxu0 0
        %1964 = vmatprep.subr.bf16.mxu0 0
        %1965 = vmatpush1.bf16.msra.mxu0 0
        %1966 = vmatprep.subr.bf16.mxu0 0
        %1967 = vmatpush1.bf16.msra.mxu0 0
        %1968 = vmatprep.mubr.bf16.mxu0 0
        %1969 = vmatmul.mubr.bf16.gmra.mrb[0].mxu0 %v1931
        %v1970 = vpop.f32.mrb[0].mxu0
        %v1971 = vadd.f32 0.0, %v1970
        %v1972 = vpop.f32.mrb[0].mxu0
        %v1973 = vpop.f32.mrb[0].mxu0
        %v1974 = vpop.f32.mrb[0].mxu0
        %1975 = vdwg.mxu0
        %1978 = vrot.lane.b32.xlu0 %v1483, 8
        %v1979 = vpop.permute.xlu0 %1978
        %1980 = vrot.lane.b32.xlu0 %v1531, 8
        %v1981 = vpop.permute.xlu0 %1980
        %1986 = vrot.lane.b32.xlu0 %v1703, 16
        %v1987 = vpop.permute.xlu0 %1986
        %1988 = vrot.lane.b32.xlu0 %v1751, 16
        %v1989 = vpop.permute.xlu0 %1988
        %1994 = vrot.lane.b32.xlu0 %v1923, 24
        %v1995 = vpop.permute.xlu0 %1994
        %1996 = vrot.lane.b32.xlu0 %v1971, 24
        %v1997 = vpop.permute.xlu0 %1996
        %v2000 = vsel %vm1097, %v1261, %v1979
        %v2001 = vsel %vm1097, %v1309, %v1981
        %vm2002 = vcmask 130048
        %v2003 = vsel %vm2002, %v2000, %v1987
        %v2004 = vsel %vm2002, %v2001, %v1989
        %vm2005 = vcmask 195584
        %v2006 = vsel %vm2005, %v2003, %v1995
        %v2007 = vsel %vm2005, %v2004, %v1997
        %v2008 = vpack.c.bf16 %v2007, %v2006
        %v2010 = vlaneseq
        %v2011 = vshrl.u32 %v2010, 7
        %v2012 = vsub.s32 0, %v2011
        %v2013 = vrot.slane %v1087, %v2012
        %v2019 = vunpack.c.l.b16 %v1083
        %v2020 = vunpack.c.l.b16 %v1084
        %v2021 = vunpack.c.l.b16 %v1085
        %v2022 = vunpack.c.l.b16 %v1086
        %v2023 = vpack.c.b16 %v2020, %v2019
        %v2024 = vpack.c.b16 %v2022, %v2021
        %v2028 = vsel %vm1038, %v2008, 0
        %2030 = vmatprep.subr.bf16.mxu0 0
        %2031 = vmatpush1.bf16.msra.mxu0 %v2023
        %2032 = vmatprep.subr.bf16.mxu0 0
        %2033 = vmatpush1.bf16.msra.mxu0 %v2024
        %2034 = vmatprep.subr.bf16.mxu0 0
        %2035 = vmatpush1.bf16.msra.mxu0 0
        %2036 = vmatprep.subr.bf16.mxu0 0
        %2037 = vmatpush1.bf16.msra.mxu0 0
        %2038 = vmatprep.subr.bf16.mxu0 0
        %2039 = vmatpush1.bf16.msra.mxu0 0
        %2040 = vmatprep.subr.bf16.mxu0 0
        %2041 = vmatpush1.bf16.msra.mxu0 0
        %2042 = vmatprep.subr.bf16.mxu0 0
        %2043 = vmatpush1.bf16.msra.mxu0 0
        %2044 = vmatprep.subr.bf16.mxu0 0
        %2045 = vmatpush1.bf16.msra.mxu0 0
        %2046 = vmatprep.subr.bf16.mxu0 0
        %2047 = vmatpush1.bf16.msra.mxu0 0
        %2048 = vmatprep.subr.bf16.mxu0 0
        %2049 = vmatpush1.bf16.msra.mxu0 0
        %2050 = vmatprep.subr.bf16.mxu0 0
        %2051 = vmatpush1.bf16.msra.mxu0 0
        %2052 = vmatprep.subr.bf16.mxu0 0
        %2053 = vmatpush1.bf16.msra.mxu0 0
        %2054 = vmatprep.subr.bf16.mxu0 0
        %2055 = vmatpush1.bf16.msra.mxu0 0
        %2056 = vmatprep.subr.bf16.mxu0 0
        %2057 = vmatpush1.bf16.msra.mxu0 0
        %2058 = vmatprep.subr.bf16.mxu0 0
        %2059 = vmatpush1.bf16.msra.mxu0 0
        %2060 = vmatprep.subr.bf16.mxu0 0
        %2061 = vmatpush1.bf16.msra.mxu0 0
        %2062 = vmatprep.mubr.bf16.mxu0 0
        %2063 = vmatmul.mubr.bf16.gmra.mrb[0].mxu0 %v2028
        %v2064 = vpop.f32.mrb[0].mxu0
        %v2065 = vadd.f32 %v2013, %v2064
        %v2066 = vpop.f32.mrb[0].mxu0
        %v2067 = vpop.f32.mrb[0].mxu0
        %v2068 = vadd.f32 %v2013, %v2067
        %v2069 = vpop.f32.mrb[0].mxu0
        %2070 = vdwg.mxu0
        %v2071 = vadd.f32 %v1012, %v2065
        %v2072 = vadd.f32 %v1013, %v2068
        %v2073 = vld [vmem:[%s969] sm:$0x1]
        %v2074 = vld [vmem:[%s972] sm:$0x1]
        %v2075 = vsel %vm1038, %v2071, 0.0
        %2076 = vadd.xlane.f32.xlu0 %v2075
        %v2077 = vpop.xlane.xlu0 %2076
        %v2078 = vsel %vm1038, %v2072, 0.0
        %2079 = vadd.xlane.f32.xlu0 %v2078
        %v2080 = vpop.xlane.xlu0 %2079
        %v2081 = vrcp.pop 32.0
        %v2082 = vmul.f32 %v2077, %v2081
        %v2083 = vmul.f32 %v2080, %v2081
        %v2084 = vsub.f32 %v2071, %v2082
        %v2085 = vsub.f32 %v2072, %v2083
        %v2086 = vmul.f32 %v2084, %v2084
        %v2087 = vmul.f32 %v2085, %v2085
        %v2088 = vsel %vm1038, %v2086, 0.0
        %2089 = vadd.xlane.f32.xlu0 %v2088
        %v2090 = vpop.xlane.xlu0 %2089
        %v2091 = vsel %vm1038, %v2087, 0.0
        %2092 = vadd.xlane.f32.xlu0 %v2091
        %v2093 = vpop.xlane.xlu0 %2092
        %v2094 = vmul.f32 %v2090, %v2081
        %v2095 = vmul.f32 %v2093, %v2081
        %v2096 = vadd.f32 %v2094, 1e-05
        %v2097 = vadd.f32 %v2095, 1e-05
        %v2098 = vrsqrt.pop %v2096
        %v2099 = vrsqrt.pop %v2097
        %v2100 = vmul.f32 %v2084, %v2098
        %v2101 = vmul.f32 %v2085, %v2099
        %v2103 = vlaneseq
        %v2104 = vshrl.u32 %v2103, 7
        %v2105 = vsub.s32 0, %v2104
        %v2106 = vrot.slane %v2073, %v2105
        %v2108 = vmul.f32 %v2100, %v2106
        %v2109 = vmul.f32 %v2101, %v2106
        %v2111 = vlaneseq
        %v2112 = vshrl.u32 %v2111, 7
        %v2113 = vsub.s32 0, %v2112
        %v2114 = vrot.slane %v2074, %v2113
        %v2116 = vadd.f32 %v2108, %v2114
        %v2117 = vadd.f32 %v2109, %v2114
        %v2118 = vld [vmem:[%s947] sm:$0xf]
        %v2119 = vld [vmem:[%s947 + $0x4] sm:$0xf]
        %v2120 = vld [vmem:[%s947 + $0x8] sm:$0xf]
        %v2121 = vld [vmem:[%s947 + $0xc] sm:$0xf]
        %v2122 = vpack.c.bf16 %v2117, %v2116
        %v2123 = vld [vmem:[%s950] sm:$0x1]
        %v2125 = vlaneseq
        %v2126 = vshrl.u32 %v2125, 7
        %v2127 = vsub.s32 0, %v2126
        %v2128 = vrot.slane %v2123, %v2127
        %v2134 = vunpack.c.l.b16 %v2118
        %v2135 = vunpack.c.l.b16 %v2119
        %v2136 = vunpack.c.l.b16 %v2120
        %v2137 = vunpack.c.l.b16 %v2121
        %v2138 = vpack.c.b16 %v2135, %v2134
        %v2139 = vpack.c.b16 %v2137, %v2136
        %v2143 = vsel %vm1038, %v2122, 0
        %2145 = vmatprep.subr.bf16.mxu0 0
        %2146 = vmatpush1.bf16.msra.mxu0 %v2138
        %2147 = vmatprep.subr.bf16.mxu0 0
        %2148 = vmatpush1.bf16.msra.mxu0 %v2139
        %2149 = vmatprep.subr.bf16.mxu0 0
        %2150 = vmatpush1.bf16.msra.mxu0 0
        %2151 = vmatprep.subr.bf16.mxu0 0
        %2152 = vmatpush1.bf16.msra.mxu0 0
        %2153 = vmatprep.subr.bf16.mxu0 0
        %2154 = vmatpush1.bf16.msra.mxu0 0
        %2155 = vmatprep.subr.bf16.mxu0 0
        %2156 = vmatpush1.bf16.msra.mxu0 0
        %2157 = vmatprep.subr.bf16.mxu0 0
        %2158 = vmatpush1.bf16.msra.mxu0 0
        %2159 = vmatprep.subr.bf16.mxu0 0
        %2160 = vmatpush1.bf16.msra.mxu0 0
        %2161 = vmatprep.subr.bf16.mxu0 0
        %2162 = vmatpush1.bf16.msra.mxu0 0
        %2163 = vmatprep.subr.bf16.mxu0 0
        %2164 = vmatpush1.bf16.msra.mxu0 0
        %2165 = vmatprep.subr.bf16.mxu0 0
        %2166 = vmatpush1.bf16.msra.mxu0 0
        %2167 = vmatprep.subr.bf16.mxu0 0
        %2168 = vmatpush1.bf16.msra.mxu0 0
        %2169 = vmatprep.subr.bf16.mxu0 0
        %2170 = vmatpush1.bf16.msra.mxu0 0
        %2171 = vmatprep.subr.bf16.mxu0 0
        %2172 = vmatpush1.bf16.msra.mxu0 0
        %2173 = vmatprep.subr.bf16.mxu0 0
        %2174 = vmatpush1.bf16.msra.mxu0 0
        %2175 = vmatprep.subr.bf16.mxu0 0
        %2176 = vmatpush1.bf16.msra.mxu0 0
        %2177 = vmatprep.mubr.bf16.mxu0 0
        %2178 = vmatmul.mubr.bf16.gmra.mrb[0].mxu0 %v2143
        %v2179 = vpop.f32.mrb[0].mxu0
        %v2180 = vadd.f32 %v2128, %v2179
        %v2181 = vpop.f32.mrb[0].mxu0
        %v2182 = vpop.f32.mrb[0].mxu0
        %v2183 = vadd.f32 %v2128, %v2182
        %v2184 = vpop.f32.mrb[0].mxu0
        %2185 = vdwg.mxu0
        %v2186 = vld [vmem:[%s955] sm:$0xf]
        %v2187 = vld [vmem:[%s955 + $0x4] sm:$0xf]
        %v2188 = vld [vmem:[%s955 + $0x8] sm:$0xf]
        %v2189 = vld [vmem:[%s955 + $0xc] sm:$0xf]
        %v2190 = vld [vmem:[%s958] sm:$0x1]
        %v2192 = vlaneseq
        %v2193 = vshrl.u32 %v2192, 7
        %v2194 = vsub.s32 0, %v2193
        %v2195 = vrot.slane %v2190, %v2194
        %v2201 = vunpack.c.l.b16 %v2186
        %v2202 = vunpack.c.l.b16 %v2187
        %v2203 = vunpack.c.l.b16 %v2188
        %v2204 = vunpack.c.l.b16 %v2189
        %v2205 = vpack.c.b16 %v2202, %v2201
        %v2206 = vpack.c.b16 %v2204, %v2203
        %2209 = vmatprep.subr.bf16.mxu0 0
        %2210 = vmatpush1.bf16.msra.mxu0 %v2205
        %2211 = vmatprep.subr.bf16.mxu0 0
        %2212 = vmatpush1.bf16.msra.mxu0 %v2206
        %2213 = vmatprep.subr.bf16.mxu0 0
        %2214 = vmatpush1.bf16.msra.mxu0 0
        %2215 = vmatprep.subr.bf16.mxu0 0
        %2216 = vmatpush1.bf16.msra.mxu0 0
        %2217 = vmatprep.subr.bf16.mxu0 0
        %2218 = vmatpush1.bf16.msra.mxu0 0
        %2219 = vmatprep.subr.bf16.mxu0 0
        %2220 = vmatpush1.bf16.msra.mxu0 0
        %2221 = vmatprep.subr.bf16.mxu0 0
        %2222 = vmatpush1.bf16.msra.mxu0 0
        %2223 = vmatprep.subr.bf16.mxu0 0
        %2224 = vmatpush1.bf16.msra.mxu0 0
        %2225 = vmatprep.subr.bf16.mxu0 0
        %2226 = vmatpush1.bf16.msra.mxu0 0
        %2227 = vmatprep.subr.bf16.mxu0 0
        %2228 = vmatpush1.bf16.msra.mxu0 0
        %2229 = vmatprep.subr.bf16.mxu0 0
        %2230 = vmatpush1.bf16.msra.mxu0 0
        %2231 = vmatprep.subr.bf16.mxu0 0
        %2232 = vmatpush1.bf16.msra.mxu0 0
        %2233 = vmatprep.subr.bf16.mxu0 0
        %2234 = vmatpush1.bf16.msra.mxu0 0
        %2235 = vmatprep.subr.bf16.mxu0 0
        %2236 = vmatpush1.bf16.msra.mxu0 0
        %2237 = vmatprep.subr.bf16.mxu0 0
        %2238 = vmatpush1.bf16.msra.mxu0 0
        %2239 = vmatprep.subr.bf16.mxu0 0
        %2240 = vmatpush1.bf16.msra.mxu0 0
        %2241 = vmatprep.mubr.bf16.mxu0 0
        %2242 = vmatmul.mubr.bf16.gmra.mrb[0].mxu0 %v1040
        %v2243 = vpop.f32.mrb[0].mxu0
        %v2244 = vadd.f32 %v2195, %v2243
        %v2245 = vpop.f32.mrb[0].mxu0
        %v2246 = vpop.f32.mrb[0].mxu0
        %v2247 = vadd.f32 %v2195, %v2246
        %v2248 = vpop.f32.mrb[0].mxu0
        %2249 = vdwg.mxu0
        %v2250 = vld [vmem:[%s963] sm:$0xf]
        %v2251 = vld [vmem:[%s963 + $0x4] sm:$0xf]
        %v2252 = vld [vmem:[%s963 + $0x8] sm:$0xf]
        %v2253 = vld [vmem:[%s963 + $0xc] sm:$0xf]
        %v2254 = vld [vmem:[%s966] sm:$0x1]
        %v2255 = vmul.f32 %v2180, 0.35355338
        %v2256 = vmul.f32 %v2183, 0.35355338
        %v2257 = vpack.c.bf16 %v2255, %v2255
        %v2258 = vpack.c.bf16 %v2256, %v2256
        %v2259 = vpack.c.bf16 %v2244, %v2244
        %v2260 = vpack.c.bf16 %v2247, %v2247
        %v2262 = vsel %vm1097, %v2257, 0
        %v2265 = vsel %vm1097, %v2259, 0
        %2267 = vmatprep.subr.bf16.mxu0 0
        %2268 = vmatpush1.bf16.xpose.msra.mxu0 %v2265
        %2269 = vmatprep.subr.bf16.mxu0 0
        %2270 = vmatpush1.bf16.xpose.msra.mxu0 0
        %2271 = vmatprep.subr.bf16.mxu0 0
        %2272 = vmatpush1.bf16.xpose.msra.mxu0 0
        %2273 = vmatprep.subr.bf16.mxu0 0
        %2274 = vmatpush1.bf16.xpose.msra.mxu0 0
        %2275 = vmatprep.subr.bf16.mxu0 0
        %2276 = vmatpush1.bf16.xpose.msra.mxu0 0
        %2277 = vmatprep.subr.bf16.mxu0 0
        %2278 = vmatpush1.bf16.xpose.msra.mxu0 0
        %2279 = vmatprep.subr.bf16.mxu0 0
        %2280 = vmatpush1.bf16.xpose.msra.mxu0 0
        %2281 = vmatprep.subr.bf16.mxu0 0
        %2282 = vmatpush1.bf16.xpose.msra.mxu0 0
        %2283 = vmatprep.subr.bf16.mxu0 0
        %2284 = vmatpush1.bf16.xpose.msra.mxu0 0
        %2285 = vmatprep.subr.bf16.mxu0 0
        %2286 = vmatpush1.bf16.xpose.msra.mxu0 0
        %2287 = vmatprep.subr.bf16.mxu0 0
        %2288 = vmatpush1.bf16.xpose.msra.mxu0 0
        %2289 = vmatprep.subr.bf16.mxu0 0
        %2290 = vmatpush1.bf16.xpose.msra.mxu0 0
        %2291 = vmatprep.subr.bf16.mxu0 0
        %2292 = vmatpush1.bf16.xpose.msra.mxu0 0
        %2293 = vmatprep.subr.bf16.mxu0 0
        %2294 = vmatpush1.bf16.xpose.msra.mxu0 0
        %2295 = vmatprep.subr.bf16.mxu0 0
        %2296 = vmatpush1.bf16.xpose.msra.mxu0 0
        %2297 = vmatprep.subr.bf16.mxu0 0
        %2298 = vmatpush1.bf16.xpose.msra.mxu0 0
        %2299 = vmatprep.mubr.bf16.mxu0 0
        %2300 = vmatmul.mubr.bf16.gmra.mrb[0].mxu0 %v2262
        %v2301 = vpop.f32.mrb[0].mxu0
        %v2302 = vadd.f32 0.0, %v2301
        %v2303 = vpop.f32.mrb[0].mxu0
        %v2304 = vpop.f32.mrb[0].mxu0
        %v2305 = vpop.f32.mrb[0].mxu0
        %2306 = vdwg.mxu0
        %v2308 = vsel %vm1097, %v2258, 0
        %v2311 = vsel %vm1097, %v2260, 0
        %2313 = vmatprep.subr.bf16.mxu0 0
        %2314 = vmatpush1.bf16.xpose.msra.mxu0 %v2311
        %2315 = vmatprep.subr.bf16.mxu0 0
        %2316 = vmatpush1.bf16.xpose.msra.mxu0 0
        %2317 = vmatprep.subr.bf16.mxu0 0
        %2318 = vmatpush1.bf16.xpose.msra.mxu0 0
        %2319 = vmatprep.subr.bf16.mxu0 0
        %2320 = vmatpush1.bf16.xpose.msra.mxu0 0
        %2321 = vmatprep.subr.bf16.mxu0 0
        %2322 = vmatpush1.bf16.xpose.msra.mxu0 0
        %2323 = vmatprep.subr.bf16.mxu0 0
        %2324 = vmatpush1.bf16.xpose.msra.mxu0 0
        %2325 = vmatprep.subr.bf16.mxu0 0
        %2326 = vmatpush1.bf16.xpose.msra.mxu0 0
        %2327 = vmatprep.subr.bf16.mxu0 0
        %2328 = vmatpush1.bf16.xpose.msra.mxu0 0
        %2329 = vmatprep.subr.bf16.mxu0 0
        %2330 = vmatpush1.bf16.xpose.msra.mxu0 0
        %2331 = vmatprep.subr.bf16.mxu0 0
        %2332 = vmatpush1.bf16.xpose.msra.mxu0 0
        %2333 = vmatprep.subr.bf16.mxu0 0
        %2334 = vmatpush1.bf16.xpose.msra.mxu0 0
        %2335 = vmatprep.subr.bf16.mxu0 0
        %2336 = vmatpush1.bf16.xpose.msra.mxu0 0
        %2337 = vmatprep.subr.bf16.mxu0 0
        %2338 = vmatpush1.bf16.xpose.msra.mxu0 0
        %2339 = vmatprep.subr.bf16.mxu0 0
        %2340 = vmatpush1.bf16.xpose.msra.mxu0 0
        %2341 = vmatprep.subr.bf16.mxu0 0
        %2342 = vmatpush1.bf16.xpose.msra.mxu0 0
        %2343 = vmatprep.subr.bf16.mxu0 0
        %2344 = vmatpush1.bf16.xpose.msra.mxu0 0
        %2345 = vmatprep.mubr.bf16.mxu0 0
        %2346 = vmatmul.mubr.bf16.gmra.mrb[0].mxu0 %v2308
        %v2347 = vpop.f32.mrb[0].mxu0
        %v2348 = vadd.f32 0.0, %v2347
        %v2349 = vpop.f32.mrb[0].mxu0
        %v2350 = vpop.f32.mrb[0].mxu0
        %v2351 = vpop.f32.mrb[0].mxu0
        %2352 = vdwg.mxu0
        %v2353 = vsel %vm1097, %v2302, -inf
        %2354 = vmax.xlane.f32.xlu0 %v2353
        %v2355 = vpop.xlane.xlu0 %2354
        %v2356 = vsel %vm1097, %v2348, -inf
        %2357 = vmax.xlane.f32.xlu0 %v2356
        %v2358 = vpop.xlane.xlu0 %2357
        %v2359 = vsub.f32 %v2302, %v2355
        %v2360 = vsub.f32 %v2348, %v2358
        %v2361 = vmul.f32 %v2359, 1.442695
        %v2362 = vpow.pop %v2361
        %v2363 = vmul.f32 %v2360, 1.442695
        %v2364 = vpow.pop %v2363
        %v2365 = vsel %vm1097, %v2362, 0.0
        %2366 = vadd.xlane.f32.xlu0 %v2365
        %v2367 = vpop.xlane.xlu0 %2366
        %v2368 = vsel %vm1097, %v2364, 0.0
        %2369 = vadd.xlane.f32.xlu0 %v2368
        %v2370 = vpop.xlane.xlu0 %2369
        %v2371 = vrcp.pop %v2367
        %v2372 = vrcp.pop %v2370
        %v2373 = vmul.f32 %v2362, %v2371
        %v2374 = vmul.f32 %v2364, %v2372
        %v2375 = vpack.c.bf16 %v2373, %v2373
        %v2376 = vpack.c.bf16 %v2374, %v2374
        %2378 = vrot.lane.b32.xlu0 %v2259, 96
        %v2379 = vpop.permute.xlu0 %2378
        %v2381 = vsel %vm1097, %v2375, 0
        %v2384 = vsel %vm1222, %v2379, 0
        %2386 = vmatprep.subr.bf16.mxu0 0
        %2387 = vmatpush1.bf16.msra.mxu0 %v2384
        %2388 = vmatprep.subr.bf16.mxu0 0
        %2389 = vmatpush1.bf16.msra.mxu0 0
        %2390 = vmatprep.subr.bf16.mxu0 0
        %2391 = vmatpush1.bf16.msra.mxu0 0
        %2392 = vmatprep.subr.bf16.mxu0 0
        %2393 = vmatpush1.bf16.msra.mxu0 0
        %2394 = vmatprep.subr.bf16.mxu0 0
        %2395 = vmatpush1.bf16.msra.mxu0 0
        %2396 = vmatprep.subr.bf16.mxu0 0
        %2397 = vmatpush1.bf16.msra.mxu0 0
        %2398 = vmatprep.subr.bf16.mxu0 0
        %2399 = vmatpush1.bf16.msra.mxu0 0
        %2400 = vmatprep.subr.bf16.mxu0 0
        %2401 = vmatpush1.bf16.msra.mxu0 0
        %2402 = vmatprep.subr.bf16.mxu0 0
        %2403 = vmatpush1.bf16.msra.mxu0 0
        %2404 = vmatprep.subr.bf16.mxu0 0
        %2405 = vmatpush1.bf16.msra.mxu0 0
        %2406 = vmatprep.subr.bf16.mxu0 0
        %2407 = vmatpush1.bf16.msra.mxu0 0
        %2408 = vmatprep.subr.bf16.mxu0 0
        %2409 = vmatpush1.bf16.msra.mxu0 0
        %2410 = vmatprep.subr.bf16.mxu0 0
        %2411 = vmatpush1.bf16.msra.mxu0 0
        %2412 = vmatprep.subr.bf16.mxu0 0
        %2413 = vmatpush1.bf16.msra.mxu0 0
        %2414 = vmatprep.subr.bf16.mxu0 0
        %2415 = vmatpush1.bf16.msra.mxu0 0
        %2416 = vmatprep.subr.bf16.mxu0 0
        %2417 = vmatpush1.bf16.msra.mxu0 0
        %2418 = vmatprep.mubr.bf16.mxu0 0
        %2419 = vmatmul.mubr.bf16.gmra.mrb[0].mxu0 %v2381
        %v2420 = vpop.f32.mrb[0].mxu0
        %v2421 = vadd.f32 0.0, %v2420
        %v2422 = vpop.f32.mrb[0].mxu0
        %v2423 = vpop.f32.mrb[0].mxu0
        %v2424 = vpop.f32.mrb[0].mxu0
        %2425 = vdwg.mxu0
        %2427 = vrot.lane.b32.xlu0 %v2260, 96
        %v2428 = vpop.permute.xlu0 %2427
        %v2430 = vsel %vm1097, %v2376, 0
        %v2433 = vsel %vm1222, %v2428, 0
        %2435 = vmatprep.subr.bf16.mxu0 0
        %2436 = vmatpush1.bf16.msra.mxu0 %v2433
        %2437 = vmatprep.subr.bf16.mxu0 0
        %2438 = vmatpush1.bf16.msra.mxu0 0
        %2439 = vmatprep.subr.bf16.mxu0 0
        %2440 = vmatpush1.bf16.msra.mxu0 0
        %2441 = vmatprep.subr.bf16.mxu0 0
        %2442 = vmatpush1.bf16.msra.mxu0 0
        %2443 = vmatprep.subr.bf16.mxu0 0
        %2444 = vmatpush1.bf16.msra.mxu0 0
        %2445 = vmatprep.subr.bf16.mxu0 0
        %2446 = vmatpush1.bf16.msra.mxu0 0
        %2447 = vmatprep.subr.bf16.mxu0 0
        %2448 = vmatpush1.bf16.msra.mxu0 0
        %2449 = vmatprep.subr.bf16.mxu0 0
        %2450 = vmatpush1.bf16.msra.mxu0 0
        %2451 = vmatprep.subr.bf16.mxu0 0
        %2452 = vmatpush1.bf16.msra.mxu0 0
        %2453 = vmatprep.subr.bf16.mxu0 0
        %2454 = vmatpush1.bf16.msra.mxu0 0
        %2455 = vmatprep.subr.bf16.mxu0 0
        %2456 = vmatpush1.bf16.msra.mxu0 0
        %2457 = vmatprep.subr.bf16.mxu0 0
        %2458 = vmatpush1.bf16.msra.mxu0 0
        %2459 = vmatprep.subr.bf16.mxu0 0
        %2460 = vmatpush1.bf16.msra.mxu0 0
        %2461 = vmatprep.subr.bf16.mxu0 0
        %2462 = vmatpush1.bf16.msra.mxu0 0
        %2463 = vmatprep.subr.bf16.mxu0 0
        %2464 = vmatpush1.bf16.msra.mxu0 0
        %2465 = vmatprep.subr.bf16.mxu0 0
        %2466 = vmatpush1.bf16.msra.mxu0 0
        %2467 = vmatprep.mubr.bf16.mxu0 0
        %2468 = vmatmul.mubr.bf16.gmra.mrb[0].mxu0 %v2430
        %v2469 = vpop.f32.mrb[0].mxu0
        %v2470 = vadd.f32 0.0, %v2469
        %v2471 = vpop.f32.mrb[0].mxu0
        %v2472 = vpop.f32.mrb[0].mxu0
        %v2473 = vpop.f32.mrb[0].mxu0
        %2474 = vdwg.mxu0
        %2476 = vrot.lane.b32.xlu0 %v2257, 120
        %v2477 = vpop.permute.xlu0 %2476
        %2478 = vrot.lane.b32.xlu0 %v2259, 120
        %v2479 = vpop.permute.xlu0 %2478
        %v2481 = vsel %vm1097, %v2477, 0
        %v2484 = vsel %vm1097, %v2479, 0
        %2486 = vmatprep.subr.bf16.mxu0 0
        %2487 = vmatpush1.bf16.xpose.msra.mxu0 %v2484
        %2488 = vmatprep.subr.bf16.mxu0 0
        %2489 = vmatpush1.bf16.xpose.msra.mxu0 0
        %2490 = vmatprep.subr.bf16.mxu0 0
        %2491 = vmatpush1.bf16.xpose.msra.mxu0 0
        %2492 = vmatprep.subr.bf16.mxu0 0
        %2493 = vmatpush1.bf16.xpose.msra.mxu0 0
        %2494 = vmatprep.subr.bf16.mxu0 0
        %2495 = vmatpush1.bf16.xpose.msra.mxu0 0
        %2496 = vmatprep.subr.bf16.mxu0 0
        %2497 = vmatpush1.bf16.xpose.msra.mxu0 0
        %2498 = vmatprep.subr.bf16.mxu0 0
        %2499 = vmatpush1.bf16.xpose.msra.mxu0 0
        %2500 = vmatprep.subr.bf16.mxu0 0
        %2501 = vmatpush1.bf16.xpose.msra.mxu0 0
        %2502 = vmatprep.subr.bf16.mxu0 0
        %2503 = vmatpush1.bf16.xpose.msra.mxu0 0
        %2504 = vmatprep.subr.bf16.mxu0 0
        %2505 = vmatpush1.bf16.xpose.msra.mxu0 0
        %2506 = vmatprep.subr.bf16.mxu0 0
        %2507 = vmatpush1.bf16.xpose.msra.mxu0 0
        %2508 = vmatprep.subr.bf16.mxu0 0
        %2509 = vmatpush1.bf16.xpose.msra.mxu0 0
        %2510 = vmatprep.subr.bf16.mxu0 0
        %2511 = vmatpush1.bf16.xpose.msra.mxu0 0
        %2512 = vmatprep.subr.bf16.mxu0 0
        %2513 = vmatpush1.bf16.xpose.msra.mxu0 0
        %2514 = vmatprep.subr.bf16.mxu0 0
        %2515 = vmatpush1.bf16.xpose.msra.mxu0 0
        %2516 = vmatprep.subr.bf16.mxu0 0
        %2517 = vmatpush1.bf16.xpose.msra.mxu0 0
        %2518 = vmatprep.mubr.bf16.mxu0 0
        %2519 = vmatmul.mubr.bf16.gmra.mrb[0].mxu0 %v2481
        %v2520 = vpop.f32.mrb[0].mxu0
        %v2521 = vadd.f32 0.0, %v2520
        %v2522 = vpop.f32.mrb[0].mxu0
        %v2523 = vpop.f32.mrb[0].mxu0
        %v2524 = vpop.f32.mrb[0].mxu0
        %2525 = vdwg.mxu0
        %2527 = vrot.lane.b32.xlu0 %v2258, 120
        %v2528 = vpop.permute.xlu0 %2527
        %2529 = vrot.lane.b32.xlu0 %v2260, 120
        %v2530 = vpop.permute.xlu0 %2529
        %v2532 = vsel %vm1097, %v2528, 0
        %v2535 = vsel %vm1097, %v2530, 0
        %2537 = vmatprep.subr.bf16.mxu0 0
        %2538 = vmatpush1.bf16.xpose.msra.mxu0 %v2535
        %2539 = vmatprep.subr.bf16.mxu0 0
        %2540 = vmatpush1.bf16.xpose.msra.mxu0 0
        %2541 = vmatprep.subr.bf16.mxu0 0
        %2542 = vmatpush1.bf16.xpose.msra.mxu0 0
        %2543 = vmatprep.subr.bf16.mxu0 0
        %2544 = vmatpush1.bf16.xpose.msra.mxu0 0
        %2545 = vmatprep.subr.bf16.mxu0 0
        %2546 = vmatpush1.bf16.xpose.msra.mxu0 0
        %2547 = vmatprep.subr.bf16.mxu0 0
        %2548 = vmatpush1.bf16.xpose.msra.mxu0 0
        %2549 = vmatprep.subr.bf16.mxu0 0
        %2550 = vmatpush1.bf16.xpose.msra.mxu0 0
        %2551 = vmatprep.subr.bf16.mxu0 0
        %2552 = vmatpush1.bf16.xpose.msra.mxu0 0
        %2553 = vmatprep.subr.bf16.mxu0 0
        %2554 = vmatpush1.bf16.xpose.msra.mxu0 0
        %2555 = vmatprep.subr.bf16.mxu0 0
        %2556 = vmatpush1.bf16.xpose.msra.mxu0 0
        %2557 = vmatprep.subr.bf16.mxu0 0
        %2558 = vmatpush1.bf16.xpose.msra.mxu0 0
        %2559 = vmatprep.subr.bf16.mxu0 0
        %2560 = vmatpush1.bf16.xpose.msra.mxu0 0
        %2561 = vmatprep.subr.bf16.mxu0 0
        %2562 = vmatpush1.bf16.xpose.msra.mxu0 0
        %2563 = vmatprep.subr.bf16.mxu0 0
        %2564 = vmatpush1.bf16.xpose.msra.mxu0 0
        %2565 = vmatprep.subr.bf16.mxu0 0
        %2566 = vmatpush1.bf16.xpose.msra.mxu0 0
        %2567 = vmatprep.subr.bf16.mxu0 0
        %2568 = vmatpush1.bf16.xpose.msra.mxu0 0
        %2569 = vmatprep.mubr.bf16.mxu0 0
        %2570 = vmatmul.mubr.bf16.gmra.mrb[0].mxu0 %v2532
        %v2571 = vpop.f32.mrb[0].mxu0
        %v2572 = vadd.f32 0.0, %v2571
        %v2573 = vpop.f32.mrb[0].mxu0
        %v2574 = vpop.f32.mrb[0].mxu0
        %v2575 = vpop.f32.mrb[0].mxu0
        %2576 = vdwg.mxu0
        %v2577 = vsel %vm1097, %v2521, -inf
        %2578 = vmax.xlane.f32.xlu0 %v2577
        %v2579 = vpop.xlane.xlu0 %2578
        %v2580 = vsel %vm1097, %v2572, -inf
        %2581 = vmax.xlane.f32.xlu0 %v2580
        %v2582 = vpop.xlane.xlu0 %2581
        %v2583 = vsub.f32 %v2521, %v2579
        %v2584 = vsub.f32 %v2572, %v2582
        %v2585 = vmul.f32 %v2583, 1.442695
        %v2586 = vpow.pop %v2585
        %v2587 = vmul.f32 %v2584, 1.442695
        %v2588 = vpow.pop %v2587
        %v2589 = vsel %vm1097, %v2586, 0.0
        %2590 = vadd.xlane.f32.xlu0 %v2589
        %v2591 = vpop.xlane.xlu0 %2590
        %v2592 = vsel %vm1097, %v2588, 0.0
        %2593 = vadd.xlane.f32.xlu0 %v2592
        %v2594 = vpop.xlane.xlu0 %2593
        %v2595 = vrcp.pop %v2591
        %v2596 = vrcp.pop %v2594
        %v2597 = vmul.f32 %v2586, %v2595
        %v2598 = vmul.f32 %v2588, %v2596
        %v2599 = vpack.c.bf16 %v2597, %v2597
        %v2600 = vpack.c.bf16 %v2598, %v2598
        %2601 = vrot.lane.b32.xlu0 %v2259, 88
        %v2602 = vpop.permute.xlu0 %2601
        %v2604 = vsel %vm1097, %v2599, 0
        %v2607 = vsel %vm1222, %v2602, 0
        %2609 = vmatprep.subr.bf16.mxu0 0
        %2610 = vmatpush1.bf16.msra.mxu0 %v2607
        %2611 = vmatprep.subr.bf16.mxu0 0
        %2612 = vmatpush1.bf16.msra.mxu0 0
        %2613 = vmatprep.subr.bf16.mxu0 0
        %2614 = vmatpush1.bf16.msra.mxu0 0
        %2615 = vmatprep.subr.bf16.mxu0 0
        %2616 = vmatpush1.bf16.msra.mxu0 0
        %2617 = vmatprep.subr.bf16.mxu0 0
        %2618 = vmatpush1.bf16.msra.mxu0 0
        %2619 = vmatprep.subr.bf16.mxu0 0
        %2620 = vmatpush1.bf16.msra.mxu0 0
        %2621 = vmatprep.subr.bf16.mxu0 0
        %2622 = vmatpush1.bf16.msra.mxu0 0
        %2623 = vmatprep.subr.bf16.mxu0 0
        %2624 = vmatpush1.bf16.msra.mxu0 0
        %2625 = vmatprep.subr.bf16.mxu0 0
        %2626 = vmatpush1.bf16.msra.mxu0 0
        %2627 = vmatprep.subr.bf16.mxu0 0
        %2628 = vmatpush1.bf16.msra.mxu0 0
        %2629 = vmatprep.subr.bf16.mxu0 0
        %2630 = vmatpush1.bf16.msra.mxu0 0
        %2631 = vmatprep.subr.bf16.mxu0 0
        %2632 = vmatpush1.bf16.msra.mxu0 0
        %2633 = vmatprep.subr.bf16.mxu0 0
        %2634 = vmatpush1.bf16.msra.mxu0 0
        %2635 = vmatprep.subr.bf16.mxu0 0
        %2636 = vmatpush1.bf16.msra.mxu0 0
        %2637 = vmatprep.subr.bf16.mxu0 0
        %2638 = vmatpush1.bf16.msra.mxu0 0
        %2639 = vmatprep.subr.bf16.mxu0 0
        %2640 = vmatpush1.bf16.msra.mxu0 0
        %2641 = vmatprep.mubr.bf16.mxu0 0
        %2642 = vmatmul.mubr.bf16.gmra.mrb[0].mxu0 %v2604
        %v2643 = vpop.f32.mrb[0].mxu0
        %v2644 = vadd.f32 0.0, %v2643
        %v2645 = vpop.f32.mrb[0].mxu0
        %v2646 = vpop.f32.mrb[0].mxu0
        %v2647 = vpop.f32.mrb[0].mxu0
        %2648 = vdwg.mxu0
        %2649 = vrot.lane.b32.xlu0 %v2260, 88
        %v2650 = vpop.permute.xlu0 %2649
        %v2652 = vsel %vm1097, %v2600, 0
        %v2655 = vsel %vm1222, %v2650, 0
        %2657 = vmatprep.subr.bf16.mxu0 0
        %2658 = vmatpush1.bf16.msra.mxu0 %v2655
        %2659 = vmatprep.subr.bf16.mxu0 0
        %2660 = vmatpush1.bf16.msra.mxu0 0
        %2661 = vmatprep.subr.bf16.mxu0 0
        %2662 = vmatpush1.bf16.msra.mxu0 0
        %2663 = vmatprep.subr.bf16.mxu0 0
        %2664 = vmatpush1.bf16.msra.mxu0 0
        %2665 = vmatprep.subr.bf16.mxu0 0
        %2666 = vmatpush1.bf16.msra.mxu0 0
        %2667 = vmatprep.subr.bf16.mxu0 0
        %2668 = vmatpush1.bf16.msra.mxu0 0
        %2669 = vmatprep.subr.bf16.mxu0 0
        %2670 = vmatpush1.bf16.msra.mxu0 0
        %2671 = vmatprep.subr.bf16.mxu0 0
        %2672 = vmatpush1.bf16.msra.mxu0 0
        %2673 = vmatprep.subr.bf16.mxu0 0
        %2674 = vmatpush1.bf16.msra.mxu0 0
        %2675 = vmatprep.subr.bf16.mxu0 0
        %2676 = vmatpush1.bf16.msra.mxu0 0
        %2677 = vmatprep.subr.bf16.mxu0 0
        %2678 = vmatpush1.bf16.msra.mxu0 0
        %2679 = vmatprep.subr.bf16.mxu0 0
        %2680 = vmatpush1.bf16.msra.mxu0 0
        %2681 = vmatprep.subr.bf16.mxu0 0
        %2682 = vmatpush1.bf16.msra.mxu0 0
        %2683 = vmatprep.subr.bf16.mxu0 0
        %2684 = vmatpush1.bf16.msra.mxu0 0
        %2685 = vmatprep.subr.bf16.mxu0 0
        %2686 = vmatpush1.bf16.msra.mxu0 0
        %2687 = vmatprep.subr.bf16.mxu0 0
        %2688 = vmatpush1.bf16.msra.mxu0 0
        %2689 = vmatprep.mubr.bf16.mxu0 0
        %2690 = vmatmul.mubr.bf16.gmra.mrb[0].mxu0 %v2652
        %v2691 = vpop.f32.mrb[0].mxu0
        %v2692 = vadd.f32 0.0, %v2691
        %v2693 = vpop.f32.mrb[0].mxu0
        %v2694 = vpop.f32.mrb[0].mxu0
        %v2695 = vpop.f32.mrb[0].mxu0
        %2696 = vdwg.mxu0
        %2697 = vrot.lane.b32.xlu0 %v2257, 112
        %v2698 = vpop.permute.xlu0 %2697
        %2699 = vrot.lane.b32.xlu0 %v2259, 112
        %v2700 = vpop.permute.xlu0 %2699
        %v2702 = vsel %vm1097, %v2698, 0
        %v2705 = vsel %vm1097, %v2700, 0
        %2707 = vmatprep.subr.bf16.mxu0 0
        %2708 = vmatpush1.bf16.xpose.msra.mxu0 %v2705
        %2709 = vmatprep.subr.bf16.mxu0 0
        %2710 = vmatpush1.bf16.xpose.msra.mxu0 0
        %2711 = vmatprep.subr.bf16.mxu0 0
        %2712 = vmatpush1.bf16.xpose.msra.mxu0 0
        %2713 = vmatprep.subr.bf16.mxu0 0
        %2714 = vmatpush1.bf16.xpose.msra.mxu0 0
        %2715 = vmatprep.subr.bf16.mxu0 0
        %2716 = vmatpush1.bf16.xpose.msra.mxu0 0
        %2717 = vmatprep.subr.bf16.mxu0 0
        %2718 = vmatpush1.bf16.xpose.msra.mxu0 0
        %2719 = vmatprep.subr.bf16.mxu0 0
        %2720 = vmatpush1.bf16.xpose.msra.mxu0 0
        %2721 = vmatprep.subr.bf16.mxu0 0
        %2722 = vmatpush1.bf16.xpose.msra.mxu0 0
        %2723 = vmatprep.subr.bf16.mxu0 0
        %2724 = vmatpush1.bf16.xpose.msra.mxu0 0
        %2725 = vmatprep.subr.bf16.mxu0 0
        %2726 = vmatpush1.bf16.xpose.msra.mxu0 0
        %2727 = vmatprep.subr.bf16.mxu0 0
        %2728 = vmatpush1.bf16.xpose.msra.mxu0 0
        %2729 = vmatprep.subr.bf16.mxu0 0
        %2730 = vmatpush1.bf16.xpose.msra.mxu0 0
        %2731 = vmatprep.subr.bf16.mxu0 0
        %2732 = vmatpush1.bf16.xpose.msra.mxu0 0
        %2733 = vmatprep.subr.bf16.mxu0 0
        %2734 = vmatpush1.bf16.xpose.msra.mxu0 0
        %2735 = vmatprep.subr.bf16.mxu0 0
        %2736 = vmatpush1.bf16.xpose.msra.mxu0 0
        %2737 = vmatprep.subr.bf16.mxu0 0
        %2738 = vmatpush1.bf16.xpose.msra.mxu0 0
        %2739 = vmatprep.mubr.bf16.mxu0 0
        %2740 = vmatmul.mubr.bf16.gmra.mrb[0].mxu0 %v2702
        %v2741 = vpop.f32.mrb[0].mxu0
        %v2742 = vadd.f32 0.0, %v2741
        %v2743 = vpop.f32.mrb[0].mxu0
        %v2744 = vpop.f32.mrb[0].mxu0
        %v2745 = vpop.f32.mrb[0].mxu0
        %2746 = vdwg.mxu0
        %2747 = vrot.lane.b32.xlu0 %v2258, 112
        %v2748 = vpop.permute.xlu0 %2747
        %2749 = vrot.lane.b32.xlu0 %v2260, 112
        %v2750 = vpop.permute.xlu0 %2749
        %v2752 = vsel %vm1097, %v2748, 0
        %v2755 = vsel %vm1097, %v2750, 0
        %2757 = vmatprep.subr.bf16.mxu0 0
        %2758 = vmatpush1.bf16.xpose.msra.mxu0 %v2755
        %2759 = vmatprep.subr.bf16.mxu0 0
        %2760 = vmatpush1.bf16.xpose.msra.mxu0 0
        %2761 = vmatprep.subr.bf16.mxu0 0
        %2762 = vmatpush1.bf16.xpose.msra.mxu0 0
        %2763 = vmatprep.subr.bf16.mxu0 0
        %2764 = vmatpush1.bf16.xpose.msra.mxu0 0
        %2765 = vmatprep.subr.bf16.mxu0 0
        %2766 = vmatpush1.bf16.xpose.msra.mxu0 0
        %2767 = vmatprep.subr.bf16.mxu0 0
        %2768 = vmatpush1.bf16.xpose.msra.mxu0 0
        %2769 = vmatprep.subr.bf16.mxu0 0
        %2770 = vmatpush1.bf16.xpose.msra.mxu0 0
        %2771 = vmatprep.subr.bf16.mxu0 0
        %2772 = vmatpush1.bf16.xpose.msra.mxu0 0
        %2773 = vmatprep.subr.bf16.mxu0 0
        %2774 = vmatpush1.bf16.xpose.msra.mxu0 0
        %2775 = vmatprep.subr.bf16.mxu0 0
        %2776 = vmatpush1.bf16.xpose.msra.mxu0 0
        %2777 = vmatprep.subr.bf16.mxu0 0
        %2778 = vmatpush1.bf16.xpose.msra.mxu0 0
        %2779 = vmatprep.subr.bf16.mxu0 0
        %2780 = vmatpush1.bf16.xpose.msra.mxu0 0
        %2781 = vmatprep.subr.bf16.mxu0 0
        %2782 = vmatpush1.bf16.xpose.msra.mxu0 0
        %2783 = vmatprep.subr.bf16.mxu0 0
        %2784 = vmatpush1.bf16.xpose.msra.mxu0 0
        %2785 = vmatprep.subr.bf16.mxu0 0
        %2786 = vmatpush1.bf16.xpose.msra.mxu0 0
        %2787 = vmatprep.subr.bf16.mxu0 0
        %2788 = vmatpush1.bf16.xpose.msra.mxu0 0
        %2789 = vmatprep.mubr.bf16.mxu0 0
        %2790 = vmatmul.mubr.bf16.gmra.mrb[0].mxu0 %v2752
        %v2791 = vpop.f32.mrb[0].mxu0
        %v2792 = vadd.f32 0.0, %v2791
        %v2793 = vpop.f32.mrb[0].mxu0
        %v2794 = vpop.f32.mrb[0].mxu0
        %v2795 = vpop.f32.mrb[0].mxu0
        %2796 = vdwg.mxu0
        %v2797 = vsel %vm1097, %v2742, -inf
        %2798 = vmax.xlane.f32.xlu0 %v2797
        %v2799 = vpop.xlane.xlu0 %2798
        %v2800 = vsel %vm1097, %v2792, -inf
        %2801 = vmax.xlane.f32.xlu0 %v2800
        %v2802 = vpop.xlane.xlu0 %2801
        %v2803 = vsub.f32 %v2742, %v2799
        %v2804 = vsub.f32 %v2792, %v2802
        %v2805 = vmul.f32 %v2803, 1.442695
        %v2806 = vpow.pop %v2805
        %v2807 = vmul.f32 %v2804, 1.442695
        %v2808 = vpow.pop %v2807
        %v2809 = vsel %vm1097, %v2806, 0.0
        %2810 = vadd.xlane.f32.xlu0 %v2809
        %v2811 = vpop.xlane.xlu0 %2810
        %v2812 = vsel %vm1097, %v2808, 0.0
        %2813 = vadd.xlane.f32.xlu0 %v2812
        %v2814 = vpop.xlane.xlu0 %2813
        %v2815 = vrcp.pop %v2811
        %v2816 = vrcp.pop %v2814
        %v2817 = vmul.f32 %v2806, %v2815
        %v2818 = vmul.f32 %v2808, %v2816
        %v2819 = vpack.c.bf16 %v2817, %v2817
        %v2820 = vpack.c.bf16 %v2818, %v2818
        %2821 = vrot.lane.b32.xlu0 %v2259, 80
        %v2822 = vpop.permute.xlu0 %2821
        %v2824 = vsel %vm1097, %v2819, 0
        %v2827 = vsel %vm1222, %v2822, 0
        %2829 = vmatprep.subr.bf16.mxu0 0
        %2830 = vmatpush1.bf16.msra.mxu0 %v2827
        %2831 = vmatprep.subr.bf16.mxu0 0
        %2832 = vmatpush1.bf16.msra.mxu0 0
        %2833 = vmatprep.subr.bf16.mxu0 0
        %2834 = vmatpush1.bf16.msra.mxu0 0
        %2835 = vmatprep.subr.bf16.mxu0 0
        %2836 = vmatpush1.bf16.msra.mxu0 0
        %2837 = vmatprep.subr.bf16.mxu0 0
        %2838 = vmatpush1.bf16.msra.mxu0 0
        %2839 = vmatprep.subr.bf16.mxu0 0
        %2840 = vmatpush1.bf16.msra.mxu0 0
        %2841 = vmatprep.subr.bf16.mxu0 0
        %2842 = vmatpush1.bf16.msra.mxu0 0
        %2843 = vmatprep.subr.bf16.mxu0 0
        %2844 = vmatpush1.bf16.msra.mxu0 0
        %2845 = vmatprep.subr.bf16.mxu0 0
        %2846 = vmatpush1.bf16.msra.mxu0 0
        %2847 = vmatprep.subr.bf16.mxu0 0
        %2848 = vmatpush1.bf16.msra.mxu0 0
        %2849 = vmatprep.subr.bf16.mxu0 0
        %2850 = vmatpush1.bf16.msra.mxu0 0
        %2851 = vmatprep.subr.bf16.mxu0 0
        %2852 = vmatpush1.bf16.msra.mxu0 0
        %2853 = vmatprep.subr.bf16.mxu0 0
        %2854 = vmatpush1.bf16.msra.mxu0 0
        %2855 = vmatprep.subr.bf16.mxu0 0
        %2856 = vmatpush1.bf16.msra.mxu0 0
        %2857 = vmatprep.subr.bf16.mxu0 0
        %2858 = vmatpush1.bf16.msra.mxu0 0
        %2859 = vmatprep.subr.bf16.mxu0 0
        %2860 = vmatpush1.bf16.msra.mxu0 0
        %2861 = vmatprep.mubr.bf16.mxu0 0
        %2862 = vmatmul.mubr.bf16.gmra.mrb[0].mxu0 %v2824
        %v2863 = vpop.f32.mrb[0].mxu0
        %v2864 = vadd.f32 0.0, %v2863
        %v2865 = vpop.f32.mrb[0].mxu0
        %v2866 = vpop.f32.mrb[0].mxu0
        %v2867 = vpop.f32.mrb[0].mxu0
        %2868 = vdwg.mxu0
        %2869 = vrot.lane.b32.xlu0 %v2260, 80
        %v2870 = vpop.permute.xlu0 %2869
        %v2872 = vsel %vm1097, %v2820, 0
        %v2875 = vsel %vm1222, %v2870, 0
        %2877 = vmatprep.subr.bf16.mxu0 0
        %2878 = vmatpush1.bf16.msra.mxu0 %v2875
        %2879 = vmatprep.subr.bf16.mxu0 0
        %2880 = vmatpush1.bf16.msra.mxu0 0
        %2881 = vmatprep.subr.bf16.mxu0 0
        %2882 = vmatpush1.bf16.msra.mxu0 0
        %2883 = vmatprep.subr.bf16.mxu0 0
        %2884 = vmatpush1.bf16.msra.mxu0 0
        %2885 = vmatprep.subr.bf16.mxu0 0
        %2886 = vmatpush1.bf16.msra.mxu0 0
        %2887 = vmatprep.subr.bf16.mxu0 0
        %2888 = vmatpush1.bf16.msra.mxu0 0
        %2889 = vmatprep.subr.bf16.mxu0 0
        %2890 = vmatpush1.bf16.msra.mxu0 0
        %2891 = vmatprep.subr.bf16.mxu0 0
        %2892 = vmatpush1.bf16.msra.mxu0 0
        %2893 = vmatprep.subr.bf16.mxu0 0
        %2894 = vmatpush1.bf16.msra.mxu0 0
        %2895 = vmatprep.subr.bf16.mxu0 0
        %2896 = vmatpush1.bf16.msra.mxu0 0
        %2897 = vmatprep.subr.bf16.mxu0 0
        %2898 = vmatpush1.bf16.msra.mxu0 0
        %2899 = vmatprep.subr.bf16.mxu0 0
        %2900 = vmatpush1.bf16.msra.mxu0 0
        %2901 = vmatprep.subr.bf16.mxu0 0
        %2902 = vmatpush1.bf16.msra.mxu0 0
        %2903 = vmatprep.subr.bf16.mxu0 0
        %2904 = vmatpush1.bf16.msra.mxu0 0
        %2905 = vmatprep.subr.bf16.mxu0 0
        %2906 = vmatpush1.bf16.msra.mxu0 0
        %2907 = vmatprep.subr.bf16.mxu0 0
        %2908 = vmatpush1.bf16.msra.mxu0 0
        %2909 = vmatprep.mubr.bf16.mxu0 0
        %2910 = vmatmul.mubr.bf16.gmra.mrb[0].mxu0 %v2872
        %v2911 = vpop.f32.mrb[0].mxu0
        %v2912 = vadd.f32 0.0, %v2911
        %v2913 = vpop.f32.mrb[0].mxu0
        %v2914 = vpop.f32.mrb[0].mxu0
        %v2915 = vpop.f32.mrb[0].mxu0
        %2916 = vdwg.mxu0
        %2917 = vrot.lane.b32.xlu0 %v2257, 104
        %v2918 = vpop.permute.xlu0 %2917
        %2919 = vrot.lane.b32.xlu0 %v2259, 104
        %v2920 = vpop.permute.xlu0 %2919
        %v2922 = vsel %vm1097, %v2918, 0
        %v2925 = vsel %vm1097, %v2920, 0
        %2927 = vmatprep.subr.bf16.mxu0 0
        %2928 = vmatpush1.bf16.xpose.msra.mxu0 %v2925
        %2929 = vmatprep.subr.bf16.mxu0 0
        %2930 = vmatpush1.bf16.xpose.msra.mxu0 0
        %2931 = vmatprep.subr.bf16.mxu0 0
        %2932 = vmatpush1.bf16.xpose.msra.mxu0 0
        %2933 = vmatprep.subr.bf16.mxu0 0
        %2934 = vmatpush1.bf16.xpose.msra.mxu0 0
        %2935 = vmatprep.subr.bf16.mxu0 0
        %2936 = vmatpush1.bf16.xpose.msra.mxu0 0
        %2937 = vmatprep.subr.bf16.mxu0 0
        %2938 = vmatpush1.bf16.xpose.msra.mxu0 0
        %2939 = vmatprep.subr.bf16.mxu0 0
        %2940 = vmatpush1.bf16.xpose.msra.mxu0 0
        %2941 = vmatprep.subr.bf16.mxu0 0
        %2942 = vmatpush1.bf16.xpose.msra.mxu0 0
        %2943 = vmatprep.subr.bf16.mxu0 0
        %2944 = vmatpush1.bf16.xpose.msra.mxu0 0
        %2945 = vmatprep.subr.bf16.mxu0 0
        %2946 = vmatpush1.bf16.xpose.msra.mxu0 0
        %2947 = vmatprep.subr.bf16.mxu0 0
        %2948 = vmatpush1.bf16.xpose.msra.mxu0 0
        %2949 = vmatprep.subr.bf16.mxu0 0
        %2950 = vmatpush1.bf16.xpose.msra.mxu0 0
        %2951 = vmatprep.subr.bf16.mxu0 0
        %2952 = vmatpush1.bf16.xpose.msra.mxu0 0
        %2953 = vmatprep.subr.bf16.mxu0 0
        %2954 = vmatpush1.bf16.xpose.msra.mxu0 0
        %2955 = vmatprep.subr.bf16.mxu0 0
        %2956 = vmatpush1.bf16.xpose.msra.mxu0 0
        %2957 = vmatprep.subr.bf16.mxu0 0
        %2958 = vmatpush1.bf16.xpose.msra.mxu0 0
        %2959 = vmatprep.mubr.bf16.mxu0 0
        %2960 = vmatmul.mubr.bf16.gmra.mrb[0].mxu0 %v2922
        %v2961 = vpop.f32.mrb[0].mxu0
        %v2962 = vadd.f32 0.0, %v2961
        %v2963 = vpop.f32.mrb[0].mxu0
        %v2964 = vpop.f32.mrb[0].mxu0
        %v2965 = vpop.f32.mrb[0].mxu0
        %2966 = vdwg.mxu0
        %2967 = vrot.lane.b32.xlu0 %v2258, 104
        %v2968 = vpop.permute.xlu0 %2967
        %2969 = vrot.lane.b32.xlu0 %v2260, 104
        %v2970 = vpop.permute.xlu0 %2969
        %v2972 = vsel %vm1097, %v2968, 0
        %v2975 = vsel %vm1097, %v2970, 0
        %2977 = vmatprep.subr.bf16.mxu0 0
        %2978 = vmatpush1.bf16.xpose.msra.mxu0 %v2975
        %2979 = vmatprep.subr.bf16.mxu0 0
        %2980 = vmatpush1.bf16.xpose.msra.mxu0 0
        %2981 = vmatprep.subr.bf16.mxu0 0
        %2982 = vmatpush1.bf16.xpose.msra.mxu0 0
        %2983 = vmatprep.subr.bf16.mxu0 0
        %2984 = vmatpush1.bf16.xpose.msra.mxu0 0
        %2985 = vmatprep.subr.bf16.mxu0 0
        %2986 = vmatpush1.bf16.xpose.msra.mxu0 0
        %2987 = vmatprep.subr.bf16.mxu0 0
        %2988 = vmatpush1.bf16.xpose.msra.mxu0 0
        %2989 = vmatprep.subr.bf16.mxu0 0
        %2990 = vmatpush1.bf16.xpose.msra.mxu0 0
        %2991 = vmatprep.subr.bf16.mxu0 0
        %2992 = vmatpush1.bf16.xpose.msra.mxu0 0
        %2993 = vmatprep.subr.bf16.mxu0 0
        %2994 = vmatpush1.bf16.xpose.msra.mxu0 0
        %2995 = vmatprep.subr.bf16.mxu0 0
        %2996 = vmatpush1.bf16.xpose.msra.mxu0 0
        %2997 = vmatprep.subr.bf16.mxu0 0
        %2998 = vmatpush1.bf16.xpose.msra.mxu0 0
        %2999 = vmatprep.subr.bf16.mxu0 0
        %3000 = vmatpush1.bf16.xpose.msra.mxu0 0
        %3001 = vmatprep.subr.bf16.mxu0 0
        %3002 = vmatpush1.bf16.xpose.msra.mxu0 0
        %3003 = vmatprep.subr.bf16.mxu0 0
        %3004 = vmatpush1.bf16.xpose.msra.mxu0 0
        %3005 = vmatprep.subr.bf16.mxu0 0
        %3006 = vmatpush1.bf16.xpose.msra.mxu0 0
        %3007 = vmatprep.subr.bf16.mxu0 0
        %3008 = vmatpush1.bf16.xpose.msra.mxu0 0
        %3009 = vmatprep.mubr.bf16.mxu0 0
        %3010 = vmatmul.mubr.bf16.gmra.mrb[0].mxu0 %v2972
        %v3011 = vpop.f32.mrb[0].mxu0
        %v3012 = vadd.f32 0.0, %v3011
        %v3013 = vpop.f32.mrb[0].mxu0
        %v3014 = vpop.f32.mrb[0].mxu0
        %v3015 = vpop.f32.mrb[0].mxu0
        %3016 = vdwg.mxu0
        %v3017 = vsel %vm1097, %v2962, -inf
        %3018 = vmax.xlane.f32.xlu0 %v3017
        %v3019 = vpop.xlane.xlu0 %3018
        %v3020 = vsel %vm1097, %v3012, -inf
        %3021 = vmax.xlane.f32.xlu0 %v3020
        %v3022 = vpop.xlane.xlu0 %3021
        %v3023 = vsub.f32 %v2962, %v3019
        %v3024 = vsub.f32 %v3012, %v3022
        %v3025 = vmul.f32 %v3023, 1.442695
        %v3026 = vpow.pop %v3025
        %v3027 = vmul.f32 %v3024, 1.442695
        %v3028 = vpow.pop %v3027
        %v3029 = vsel %vm1097, %v3026, 0.0
        %3030 = vadd.xlane.f32.xlu0 %v3029
        %v3031 = vpop.xlane.xlu0 %3030
        %v3032 = vsel %vm1097, %v3028, 0.0
        %3033 = vadd.xlane.f32.xlu0 %v3032
        %v3034 = vpop.xlane.xlu0 %3033
        %v3035 = vrcp.pop %v3031
        %v3036 = vrcp.pop %v3034
        %v3037 = vmul.f32 %v3026, %v3035
        %v3038 = vmul.f32 %v3028, %v3036
        %v3039 = vpack.c.bf16 %v3037, %v3037
        %v3040 = vpack.c.bf16 %v3038, %v3038
        %3041 = vrot.lane.b32.xlu0 %v2259, 72
        %v3042 = vpop.permute.xlu0 %3041
        %v3044 = vsel %vm1097, %v3039, 0
        %v3047 = vsel %vm1222, %v3042, 0
        %3049 = vmatprep.subr.bf16.mxu0 0
        %3050 = vmatpush1.bf16.msra.mxu0 %v3047
        %3051 = vmatprep.subr.bf16.mxu0 0
        %3052 = vmatpush1.bf16.msra.mxu0 0
        %3053 = vmatprep.subr.bf16.mxu0 0
        %3054 = vmatpush1.bf16.msra.mxu0 0
        %3055 = vmatprep.subr.bf16.mxu0 0
        %3056 = vmatpush1.bf16.msra.mxu0 0
        %3057 = vmatprep.subr.bf16.mxu0 0
        %3058 = vmatpush1.bf16.msra.mxu0 0
        %3059 = vmatprep.subr.bf16.mxu0 0
        %3060 = vmatpush1.bf16.msra.mxu0 0
        %3061 = vmatprep.subr.bf16.mxu0 0
        %3062 = vmatpush1.bf16.msra.mxu0 0
        %3063 = vmatprep.subr.bf16.mxu0 0
        %3064 = vmatpush1.bf16.msra.mxu0 0
        %3065 = vmatprep.subr.bf16.mxu0 0
        %3066 = vmatpush1.bf16.msra.mxu0 0
        %3067 = vmatprep.subr.bf16.mxu0 0
        %3068 = vmatpush1.bf16.msra.mxu0 0
        %3069 = vmatprep.subr.bf16.mxu0 0
        %3070 = vmatpush1.bf16.msra.mxu0 0
        %3071 = vmatprep.subr.bf16.mxu0 0
        %3072 = vmatpush1.bf16.msra.mxu0 0
        %3073 = vmatprep.subr.bf16.mxu0 0
        %3074 = vmatpush1.bf16.msra.mxu0 0
        %3075 = vmatprep.subr.bf16.mxu0 0
        %3076 = vmatpush1.bf16.msra.mxu0 0
        %3077 = vmatprep.subr.bf16.mxu0 0
        %3078 = vmatpush1.bf16.msra.mxu0 0
        %3079 = vmatprep.subr.bf16.mxu0 0
        %3080 = vmatpush1.bf16.msra.mxu0 0
        %3081 = vmatprep.mubr.bf16.mxu0 0
        %3082 = vmatmul.mubr.bf16.gmra.mrb[0].mxu0 %v3044
        %v3083 = vpop.f32.mrb[0].mxu0
        %v3084 = vadd.f32 0.0, %v3083
        %v3085 = vpop.f32.mrb[0].mxu0
        %v3086 = vpop.f32.mrb[0].mxu0
        %v3087 = vpop.f32.mrb[0].mxu0
        %3088 = vdwg.mxu0
        %3089 = vrot.lane.b32.xlu0 %v2260, 72
        %v3090 = vpop.permute.xlu0 %3089
        %v3092 = vsel %vm1097, %v3040, 0
        %v3095 = vsel %vm1222, %v3090, 0
        %3097 = vmatprep.subr.bf16.mxu0 0
        %3098 = vmatpush1.bf16.msra.mxu0 %v3095
        %3099 = vmatprep.subr.bf16.mxu0 0
        %3100 = vmatpush1.bf16.msra.mxu0 0
        %3101 = vmatprep.subr.bf16.mxu0 0
        %3102 = vmatpush1.bf16.msra.mxu0 0
        %3103 = vmatprep.subr.bf16.mxu0 0
        %3104 = vmatpush1.bf16.msra.mxu0 0
        %3105 = vmatprep.subr.bf16.mxu0 0
        %3106 = vmatpush1.bf16.msra.mxu0 0
        %3107 = vmatprep.subr.bf16.mxu0 0
        %3108 = vmatpush1.bf16.msra.mxu0 0
        %3109 = vmatprep.subr.bf16.mxu0 0
        %3110 = vmatpush1.bf16.msra.mxu0 0
        %3111 = vmatprep.subr.bf16.mxu0 0
        %3112 = vmatpush1.bf16.msra.mxu0 0
        %3113 = vmatprep.subr.bf16.mxu0 0
        %3114 = vmatpush1.bf16.msra.mxu0 0
        %3115 = vmatprep.subr.bf16.mxu0 0
        %3116 = vmatpush1.bf16.msra.mxu0 0
        %3117 = vmatprep.subr.bf16.mxu0 0
        %3118 = vmatpush1.bf16.msra.mxu0 0
        %3119 = vmatprep.subr.bf16.mxu0 0
        %3120 = vmatpush1.bf16.msra.mxu0 0
        %3121 = vmatprep.subr.bf16.mxu0 0
        %3122 = vmatpush1.bf16.msra.mxu0 0
        %3123 = vmatprep.subr.bf16.mxu0 0
        %3124 = vmatpush1.bf16.msra.mxu0 0
        %3125 = vmatprep.subr.bf16.mxu0 0
        %3126 = vmatpush1.bf16.msra.mxu0 0
        %3127 = vmatprep.subr.bf16.mxu0 0
        %3128 = vmatpush1.bf16.msra.mxu0 0
        %3129 = vmatprep.mubr.bf16.mxu0 0
        %3130 = vmatmul.mubr.bf16.gmra.mrb[0].mxu0 %v3092
        %v3131 = vpop.f32.mrb[0].mxu0
        %v3132 = vadd.f32 0.0, %v3131
        %v3133 = vpop.f32.mrb[0].mxu0
        %v3134 = vpop.f32.mrb[0].mxu0
        %v3135 = vpop.f32.mrb[0].mxu0
        %3136 = vdwg.mxu0
        %3139 = vrot.lane.b32.xlu0 %v2644, 8
        %v3140 = vpop.permute.xlu0 %3139
        %3141 = vrot.lane.b32.xlu0 %v2692, 8
        %v3142 = vpop.permute.xlu0 %3141
        %3147 = vrot.lane.b32.xlu0 %v2864, 16
        %v3148 = vpop.permute.xlu0 %3147
        %3149 = vrot.lane.b32.xlu0 %v2912, 16
        %v3150 = vpop.permute.xlu0 %3149
        %3155 = vrot.lane.b32.xlu0 %v3084, 24
        %v3156 = vpop.permute.xlu0 %3155
        %3157 = vrot.lane.b32.xlu0 %v3132, 24
        %v3158 = vpop.permute.xlu0 %3157
        %v3161 = vsel %vm1097, %v2421, %v3140
        %v3162 = vsel %vm1097, %v2470, %v3142
        %v3163 = vsel %vm2002, %v3161, %v3148
        %v3164 = vsel %vm2002, %v3162, %v3150
        %v3165 = vsel %vm2005, %v3163, %v3156
        %v3166 = vsel %vm2005, %v3164, %v3158
        %v3167 = vpack.c.bf16 %v3166, %v3165
        %v3169 = vlaneseq
        %v3170 = vshrl.u32 %v3169, 7
        %v3171 = vsub.s32 0, %v3170
        %v3172 = vrot.slane %v2254, %v3171
        %v3178 = vunpack.c.l.b16 %v2250
        %v3179 = vunpack.c.l.b16 %v2251
        %v3180 = vunpack.c.l.b16 %v2252
        %v3181 = vunpack.c.l.b16 %v2253
        %v3182 = vpack.c.b16 %v3179, %v3178
        %v3183 = vpack.c.b16 %v3181, %v3180
        %v3187 = vsel %vm1038, %v3167, 0
        %3189 = vmatprep.subr.bf16.mxu0 0
        %3190 = vmatpush1.bf16.msra.mxu0 %v3182
        %3191 = vmatprep.subr.bf16.mxu0 0
        %3192 = vmatpush1.bf16.msra.mxu0 %v3183
        %3193 = vmatprep.subr.bf16.mxu0 0
        %3194 = vmatpush1.bf16.msra.mxu0 0
        %3195 = vmatprep.subr.bf16.mxu0 0
        %3196 = vmatpush1.bf16.msra.mxu0 0
        %3197 = vmatprep.subr.bf16.mxu0 0
        %3198 = vmatpush1.bf16.msra.mxu0 0
        %3199 = vmatprep.subr.bf16.mxu0 0
        %3200 = vmatpush1.bf16.msra.mxu0 0
        %3201 = vmatprep.subr.bf16.mxu0 0
        %3202 = vmatpush1.bf16.msra.mxu0 0
        %3203 = vmatprep.subr.bf16.mxu0 0
        %3204 = vmatpush1.bf16.msra.mxu0 0
        %3205 = vmatprep.subr.bf16.mxu0 0
        %3206 = vmatpush1.bf16.msra.mxu0 0
        %3207 = vmatprep.subr.bf16.mxu0 0
        %3208 = vmatpush1.bf16.msra.mxu0 0
        %3209 = vmatprep.subr.bf16.mxu0 0
        %3210 = vmatpush1.bf16.msra.mxu0 0
        %3211 = vmatprep.subr.bf16.mxu0 0
        %3212 = vmatpush1.bf16.msra.mxu0 0
        %3213 = vmatprep.subr.bf16.mxu0 0
        %3214 = vmatpush1.bf16.msra.mxu0 0
        %3215 = vmatprep.subr.bf16.mxu0 0
        %3216 = vmatpush1.bf16.msra.mxu0 0
        %3217 = vmatprep.subr.bf16.mxu0 0
        %3218 = vmatpush1.bf16.msra.mxu0 0
        %3219 = vmatprep.subr.bf16.mxu0 0
        %3220 = vmatpush1.bf16.msra.mxu0 0
        %3221 = vmatprep.mubr.bf16.mxu0 0
        %3222 = vmatmul.mubr.bf16.gmra.mrb[0].mxu0 %v3187
        %v3223 = vpop.f32.mrb[0].mxu0
        %v3224 = vadd.f32 %v3172, %v3223
        %v3225 = vpop.f32.mrb[0].mxu0
        %v3226 = vpop.f32.mrb[0].mxu0
        %v3227 = vadd.f32 %v3172, %v3226
        %v3228 = vpop.f32.mrb[0].mxu0
        %3229 = vdwg.mxu0
        %v3230 = vadd.f32 %v2116, %v3224
        %v3231 = vadd.f32 %v2117, %v3227
        %v3232 = vld [vmem:[%s975] sm:$0x1]
        %v3233 = vld [vmem:[%s978] sm:$0x1]
        %v3234 = vsel %vm1038, %v3230, 0.0
        %3235 = vadd.xlane.f32.xlu0 %v3234
        %v3236 = vpop.xlane.xlu0 %3235
        %v3237 = vsel %vm1038, %v3231, 0.0
        %3238 = vadd.xlane.f32.xlu0 %v3237
        %v3239 = vpop.xlane.xlu0 %3238
        %v3240 = vmul.f32 %v3236, %v2081
        %v3241 = vmul.f32 %v3239, %v2081
        %v3242 = vsub.f32 %v3230, %v3240
        %v3243 = vsub.f32 %v3231, %v3241
        %v3244 = vmul.f32 %v3242, %v3242
        %v3245 = vmul.f32 %v3243, %v3243
        %v3246 = vsel %vm1038, %v3244, 0.0
        %3247 = vadd.xlane.f32.xlu0 %v3246
        %v3248 = vpop.xlane.xlu0 %3247
        %v3249 = vsel %vm1038, %v3245, 0.0
        %3250 = vadd.xlane.f32.xlu0 %v3249
        %v3251 = vpop.xlane.xlu0 %3250
        %v3252 = vmul.f32 %v3248, %v2081
        %v3253 = vmul.f32 %v3251, %v2081
        %v3254 = vadd.f32 %v3252, 1e-05
        %v3255 = vadd.f32 %v3253, 1e-05
        %v3256 = vrsqrt.pop %v3254
        %v3257 = vrsqrt.pop %v3255
        %v3258 = vmul.f32 %v3242, %v3256
        %v3259 = vmul.f32 %v3243, %v3257
        %v3261 = vlaneseq
        %v3262 = vshrl.u32 %v3261, 7
        %v3263 = vsub.s32 0, %v3262
        %v3264 = vrot.slane %v3232, %v3263
        %v3266 = vmul.f32 %v3258, %v3264
        %v3267 = vmul.f32 %v3259, %v3264
        %v3269 = vlaneseq
        %v3270 = vshrl.u32 %v3269, 7
        %v3271 = vsub.s32 0, %v3270
        %v3272 = vrot.slane %v3233, %v3271
        %v3274 = vadd.f32 %v3266, %v3272
        %v3275 = vadd.f32 %v3267, %v3272
        %v3276 = vld [vmem:[%s989] sm:$0xff]
        %v3277 = vld [vmem:[%s989 + $0x8] sm:$0xff]
        %v3278 = vld [vmem:[%s989 + $0x10] sm:$0xff]
        %v3279 = vld [vmem:[%s989 + $0x18] sm:$0xff]
        %v3280 = vld [vmem:[%s989 + $0x20] sm:$0xff]
        %v3281 = vld [vmem:[%s989 + $0x28] sm:$0xff]
        %v3282 = vld [vmem:[%s989 + $0x30] sm:$0xff]
        %v3283 = vld [vmem:[%s989 + $0x38] sm:$0xff]
        %v3284 = vld [vmem:[%s989 + $0x40] sm:$0xff]
        %v3285 = vld [vmem:[%s989 + $0x48] sm:$0xff]
        %v3286 = vld [vmem:[%s989 + $0x50] sm:$0xff]
        %v3287 = vld [vmem:[%s989 + $0x58] sm:$0xff]
        %v3288 = vld [vmem:[%s989 + $0x60] sm:$0xff]
        %v3289 = vld [vmem:[%s989 + $0x68] sm:$0xff]
        %v3290 = vld [vmem:[%s989 + $0x70] sm:$0xff]
        %v3291 = vld [vmem:[%s989 + $0x78] sm:$0xff]
        %v3292 = vld [vmem:[%s989 + $0x80] sm:$0xff]
        %v3293 = vld [vmem:[%s989 + $0x88] sm:$0xff]
        %v3294 = vld [vmem:[%s989 + $0x90] sm:$0xff]
        %v3295 = vld [vmem:[%s989 + $0x98] sm:$0xff]
        %v3296 = vld [vmem:[%s989 + $0xa0] sm:$0xff]
        %v3297 = vld [vmem:[%s989 + $0xa8] sm:$0xff]
        %v3298 = vld [vmem:[%s989 + $0xb0] sm:$0xff]
        %v3299 = vld [vmem:[%s989 + $0xb8] sm:$0xff]
        %v3300 = vld [vmem:[%s989 + $0xc0] sm:$0xff]
        %v3301 = vld [vmem:[%s989 + $0xc8] sm:$0xff]
        %v3302 = vld [vmem:[%s989 + $0xd0] sm:$0xff]
        %v3303 = vld [vmem:[%s989 + $0xd8] sm:$0xff]
        %v3304 = vld [vmem:[%s989 + $0xe0] sm:$0xff]
        %v3305 = vld [vmem:[%s989 + $0xe8] sm:$0xff]
        %v3306 = vld [vmem:[%s989 + $0xf0] sm:$0xff]
        %v3307 = vld [vmem:[%s989 + $0xf8] sm:$0xff]
        %v3308 = vpack.c.bf16 %v3275, %v3274
        %v3309 = vld [vmem:[%s993] sm:$0xff]
        %v3310 = vld [vmem:[%s993 + $0x8] sm:$0xff]
        %v3313 = vlaneseq
        %v3314 = vshrl.u32 %v3313, 7
        %v3315 = vsub.s32 0, %v3314
        %v3316 = vrot.slane %v3309, %v3315
        %v3317 = vlaneseq
        %v3318 = vshrl.u32 %v3317, 7
        %v3319 = vsub.s32 1, %v3318
        %v3320 = vrot.slane %v3309, %v3319
        %v3321 = vlaneseq
        %v3322 = vshrl.u32 %v3321, 7
        %v3323 = vsub.s32 2, %v3322
        %v3324 = vrot.slane %v3309, %v3323
        %v3325 = vlaneseq
        %v3326 = vshrl.u32 %v3325, 7
        %v3327 = vsub.s32 3, %v3326
        %v3328 = vrot.slane %v3309, %v3327
        %v3329 = vlaneseq
        %v3330 = vshrl.u32 %v3329, 7
        %v3331 = vsub.s32 4, %v3330
        %v3332 = vrot.slane %v3309, %v3331
        %v3333 = vlaneseq
        %v3334 = vshrl.u32 %v3333, 7
        %v3335 = vsub.s32 5, %v3334
        %v3336 = vrot.slane %v3309, %v3335
        %v3337 = vlaneseq
        %v3338 = vshrl.u32 %v3337, 7
        %v3339 = vsub.s32 6, %v3338
        %v3340 = vrot.slane %v3309, %v3339
        %v3341 = vlaneseq
        %v3342 = vshrl.u32 %v3341, 7
        %v3343 = vsub.s32 7, %v3342
        %v3344 = vrot.slane %v3309, %v3343
        %v3345 = vlaneseq
        %v3346 = vshrl.u32 %v3345, 7
        %v3347 = vsub.s32 0, %v3346
        %v3348 = vrot.slane %v3310, %v3347
        %v3349 = vlaneseq
        %v3350 = vshrl.u32 %v3349, 7
        %v3351 = vsub.s32 1, %v3350
        %v3352 = vrot.slane %v3310, %v3351
        %v3353 = vlaneseq
        %v3354 = vshrl.u32 %v3353, 7
        %v3355 = vsub.s32 2, %v3354
        %v3356 = vrot.slane %v3310, %v3355
        %v3357 = vlaneseq
        %v3358 = vshrl.u32 %v3357, 7
        %v3359 = vsub.s32 3, %v3358
        %v3360 = vrot.slane %v3310, %v3359
        %v3361 = vlaneseq
        %v3362 = vshrl.u32 %v3361, 7
        %v3363 = vsub.s32 4, %v3362
        %v3364 = vrot.slane %v3310, %v3363
        %v3365 = vlaneseq
        %v3366 = vshrl.u32 %v3365, 7
        %v3367 = vsub.s32 5, %v3366
        %v3368 = vrot.slane %v3310, %v3367
        %v3369 = vlaneseq
        %v3370 = vshrl.u32 %v3369, 7
        %v3371 = vsub.s32 6, %v3370
        %v3372 = vrot.slane %v3310, %v3371
        %v3373 = vlaneseq
        %v3374 = vshrl.u32 %v3373, 7
        %v3375 = vsub.s32 7, %v3374
        %v3376 = vrot.slane %v3310, %v3375
        %v3425 = vunpack.c.l.b16 %v3276
        %v3426 = vunpack.c.h.b16 %v3276
        %v3427 = vunpack.c.l.b16 %v3277
        %v3428 = vunpack.c.h.b16 %v3277
        %v3429 = vunpack.c.l.b16 %v3278
        %v3430 = vunpack.c.h.b16 %v3278
        %v3431 = vunpack.c.l.b16 %v3279
        %v3432 = vunpack.c.h.b16 %v3279
        %v3433 = vunpack.c.l.b16 %v3280
        %v3434 = vunpack.c.h.b16 %v3280
        %v3435 = vunpack.c.l.b16 %v3281
        %v3436 = vunpack.c.h.b16 %v3281
        %v3437 = vunpack.c.l.b16 %v3282
        %v3438 = vunpack.c.h.b16 %v3282
        %v3439 = vunpack.c.l.b16 %v3283
        %v3440 = vunpack.c.h.b16 %v3283
        %v3441 = vunpack.c.l.b16 %v3284
        %v3442 = vunpack.c.h.b16 %v3284
        %v3443 = vunpack.c.l.b16 %v3285
        %v3444 = vunpack.c.h.b16 %v3285
        %v3445 = vunpack.c.l.b16 %v3286
        %v3446 = vunpack.c.h.b16 %v3286
        %v3447 = vunpack.c.l.b16 %v3287
        %v3448 = vunpack.c.h.b16 %v3287
        %v3449 = vunpack.c.l.b16 %v3288
        %v3450 = vunpack.c.h.b16 %v3288
        %v3451 = vunpack.c.l.b16 %v3289
        %v3452 = vunpack.c.h.b16 %v3289
        %v3453 = vunpack.c.l.b16 %v3290
        %v3454 = vunpack.c.h.b16 %v3290
        %v3455 = vunpack.c.l.b16 %v3291
        %v3456 = vunpack.c.h.b16 %v3291
        %v3457 = vunpack.c.l.b16 %v3292
        %v3458 = vunpack.c.h.b16 %v3292
        %v3459 = vunpack.c.l.b16 %v3293
        %v3460 = vunpack.c.h.b16 %v3293
        %v3461 = vunpack.c.l.b16 %v3294
        %v3462 = vunpack.c.h.b16 %v3294
        %v3463 = vunpack.c.l.b16 %v3295
        %v3464 = vunpack.c.h.b16 %v3295
        %v3465 = vunpack.c.l.b16 %v3296
        %v3466 = vunpack.c.h.b16 %v3296
        %v3467 = vunpack.c.l.b16 %v3297
        %v3468 = vunpack.c.h.b16 %v3297
        %v3469 = vunpack.c.l.b16 %v3298
        %v3470 = vunpack.c.h.b16 %v3298
        %v3471 = vunpack.c.l.b16 %v3299
        %v3472 = vunpack.c.h.b16 %v3299
        %v3473 = vunpack.c.l.b16 %v3300
        %v3474 = vunpack.c.h.b16 %v3300
        %v3475 = vunpack.c.l.b16 %v3301
        %v3476 = vunpack.c.h.b16 %v3301
        %v3477 = vunpack.c.l.b16 %v3302
        %v3478 = vunpack.c.h.b16 %v3302
        %v3479 = vunpack.c.l.b16 %v3303
        %v3480 = vunpack.c.h.b16 %v3303
        %v3481 = vunpack.c.l.b16 %v3304
        %v3482 = vunpack.c.h.b16 %v3304
        %v3483 = vunpack.c.l.b16 %v3305
        %v3484 = vunpack.c.h.b16 %v3305
        %v3485 = vunpack.c.l.b16 %v3306
        %v3486 = vunpack.c.h.b16 %v3306
        %v3487 = vunpack.c.l.b16 %v3307
        %v3488 = vunpack.c.h.b16 %v3307
        %v3489 = vpack.c.b16 %v3441, %v3425
        %v3490 = vpack.c.b16 %v3442, %v3426
        %v3491 = vpack.c.b16 %v3443, %v3427
        %v3492 = vpack.c.b16 %v3444, %v3428
        %v3493 = vpack.c.b16 %v3445, %v3429
        %v3494 = vpack.c.b16 %v3446, %v3430
        %v3495 = vpack.c.b16 %v3447, %v3431
        %v3496 = vpack.c.b16 %v3448, %v3432
        %v3497 = vpack.c.b16 %v3449, %v3433
        %v3498 = vpack.c.b16 %v3450, %v3434
        %v3499 = vpack.c.b16 %v3451, %v3435
        %v3500 = vpack.c.b16 %v3452, %v3436
        %v3501 = vpack.c.b16 %v3453, %v3437
        %v3502 = vpack.c.b16 %v3454, %v3438
        %v3503 = vpack.c.b16 %v3455, %v3439
        %v3504 = vpack.c.b16 %v3456, %v3440
        %v3505 = vpack.c.b16 %v3473, %v3457
        %v3506 = vpack.c.b16 %v3474, %v3458
        %v3507 = vpack.c.b16 %v3475, %v3459
        %v3508 = vpack.c.b16 %v3476, %v3460
        %v3509 = vpack.c.b16 %v3477, %v3461
        %v3510 = vpack.c.b16 %v3478, %v3462
        %v3511 = vpack.c.b16 %v3479, %v3463
        %v3512 = vpack.c.b16 %v3480, %v3464
        %v3513 = vpack.c.b16 %v3481, %v3465
        %v3514 = vpack.c.b16 %v3482, %v3466
        %v3515 = vpack.c.b16 %v3483, %v3467
        %v3516 = vpack.c.b16 %v3484, %v3468
        %v3517 = vpack.c.b16 %v3485, %v3469
        %v3518 = vpack.c.b16 %v3486, %v3470
        %v3519 = vpack.c.b16 %v3487, %v3471
        %v3520 = vpack.c.b16 %v3488, %v3472
        %v3554 = vsel %vm1038, %v3308, 0
        %3556 = vmatprep.subr.bf16.mxu0 %v3490
        %3557 = vmatpush1.bf16.msra.mxu0 %v3489
        %3558 = vmatprep.subr.bf16.mxu0 %v3506
        %3559 = vmatpush1.bf16.msra.mxu0 %v3505
        %3560 = vmatprep.subr.bf16.mxu0 0
        %3561 = vmatpush1.bf16.msra.mxu0 0
        %3562 = vmatprep.subr.bf16.mxu0 0
        %3563 = vmatpush1.bf16.msra.mxu0 0
        %3564 = vmatprep.subr.bf16.mxu0 0
        %3565 = vmatpush1.bf16.msra.mxu0 0
        %3566 = vmatprep.subr.bf16.mxu0 0
        %3567 = vmatpush1.bf16.msra.mxu0 0
        %3568 = vmatprep.subr.bf16.mxu0 0
        %3569 = vmatpush1.bf16.msra.mxu0 0
        %3570 = vmatprep.subr.bf16.mxu0 0
        %3571 = vmatpush1.bf16.msra.mxu0 0
        %3572 = vmatprep.subr.bf16.mxu0 0
        %3573 = vmatpush1.bf16.msra.mxu0 0
        %3574 = vmatprep.subr.bf16.mxu0 0
        %3575 = vmatpush1.bf16.msra.mxu0 0
        %3576 = vmatprep.subr.bf16.mxu0 0
        %3577 = vmatpush1.bf16.msra.mxu0 0
        %3578 = vmatprep.subr.bf16.mxu0 0
        %3579 = vmatpush1.bf16.msra.mxu0 0
        %3580 = vmatprep.subr.bf16.mxu0 0
        %3581 = vmatpush1.bf16.msra.mxu0 0
        %3582 = vmatprep.subr.bf16.mxu0 0
        %3583 = vmatpush1.bf16.msra.mxu0 0
        %3584 = vmatprep.subr.bf16.mxu0 0
        %3585 = vmatpush1.bf16.msra.mxu0 0
        %3586 = vmatprep.subr.bf16.mxu0 0
        %3587 = vmatpush1.bf16.msra.mxu0 0
        %3588 = vmatprep.mubr.bf16.mxu0 0
        %3589 = vmatmul.mubr.bf16.gmra.mrb[0].mxu0 %v3554
        %v3590 = vpop.f32.mrb[0].mxu0
        %v3591 = vadd.f32 %v3316, %v3590
        %v3592 = vpop.f32.mrb[0].mxu0
        %v3593 = vadd.f32 %v3320, %v3592
        %v3594 = vpop.f32.mrb[0].mxu0
        %v3595 = vadd.f32 %v3316, %v3594
        %v3596 = vpop.f32.mrb[0].mxu0
        %v3597 = vadd.f32 %v3320, %v3596
        %3598 = vdwg.mxu0
        %3599 = vmatprep.subr.bf16.mxu0 %v3492
        %3600 = vmatpush1.bf16.msra.mxu0 %v3491
        %3601 = vmatprep.subr.bf16.mxu0 %v3508
        %3602 = vmatpush1.bf16.msra.mxu0 %v3507
        %3603 = vmatprep.subr.bf16.mxu0 0
        %3604 = vmatpush1.bf16.msra.mxu0 0
        %3605 = vmatprep.subr.bf16.mxu0 0
        %3606 = vmatpush1.bf16.msra.mxu0 0
        %3607 = vmatprep.subr.bf16.mxu0 0
        %3608 = vmatpush1.bf16.msra.mxu0 0
        %3609 = vmatprep.subr.bf16.mxu0 0
        %3610 = vmatpush1.bf16.msra.mxu0 0
        %3611 = vmatprep.subr.bf16.mxu0 0
        %3612 = vmatpush1.bf16.msra.mxu0 0
        %3613 = vmatprep.subr.bf16.mxu0 0
        %3614 = vmatpush1.bf16.msra.mxu0 0
        %3615 = vmatprep.subr.bf16.mxu0 0
        %3616 = vmatpush1.bf16.msra.mxu0 0
        %3617 = vmatprep.subr.bf16.mxu0 0
        %3618 = vmatpush1.bf16.msra.mxu0 0
        %3619 = vmatprep.subr.bf16.mxu0 0
        %3620 = vmatpush1.bf16.msra.mxu0 0
        %3621 = vmatprep.subr.bf16.mxu0 0
        %3622 = vmatpush1.bf16.msra.mxu0 0
        %3623 = vmatprep.subr.bf16.mxu0 0
        %3624 = vmatpush1.bf16.msra.mxu0 0
        %3625 = vmatprep.subr.bf16.mxu0 0
        %3626 = vmatpush1.bf16.msra.mxu0 0
        %3627 = vmatprep.subr.bf16.mxu0 0
        %3628 = vmatpush1.bf16.msra.mxu0 0
        %3629 = vmatprep.subr.bf16.mxu0 0
        %3630 = vmatpush1.bf16.msra.mxu0 0
        %3631 = vmatprep.mubr.bf16.mxu0 0
        %3632 = vmatmul.mubr.bf16.gmra.mrb[0].mxu0 %v3554
        %v3633 = vpop.f32.mrb[0].mxu0
        %v3634 = vadd.f32 %v3324, %v3633
        %v3635 = vpop.f32.mrb[0].mxu0
        %v3636 = vadd.f32 %v3328, %v3635
        %v3637 = vpop.f32.mrb[0].mxu0
        %v3638 = vadd.f32 %v3324, %v3637
        %v3639 = vpop.f32.mrb[0].mxu0
        %v3640 = vadd.f32 %v3328, %v3639
        %3641 = vdwg.mxu0
        %3642 = vmatprep.subr.bf16.mxu0 %v3494
        %3643 = vmatpush1.bf16.msra.mxu0 %v3493
        %3644 = vmatprep.subr.bf16.mxu0 %v3510
        %3645 = vmatpush1.bf16.msra.mxu0 %v3509
        %3646 = vmatprep.subr.bf16.mxu0 0
        %3647 = vmatpush1.bf16.msra.mxu0 0
        %3648 = vmatprep.subr.bf16.mxu0 0
        %3649 = vmatpush1.bf16.msra.mxu0 0
        %3650 = vmatprep.subr.bf16.mxu0 0
        %3651 = vmatpush1.bf16.msra.mxu0 0
        %3652 = vmatprep.subr.bf16.mxu0 0
        %3653 = vmatpush1.bf16.msra.mxu0 0
        %3654 = vmatprep.subr.bf16.mxu0 0
        %3655 = vmatpush1.bf16.msra.mxu0 0
        %3656 = vmatprep.subr.bf16.mxu0 0
        %3657 = vmatpush1.bf16.msra.mxu0 0
        %3658 = vmatprep.subr.bf16.mxu0 0
        %3659 = vmatpush1.bf16.msra.mxu0 0
        %3660 = vmatprep.subr.bf16.mxu0 0
        %3661 = vmatpush1.bf16.msra.mxu0 0
        %3662 = vmatprep.subr.bf16.mxu0 0
        %3663 = vmatpush1.bf16.msra.mxu0 0
        %3664 = vmatprep.subr.bf16.mxu0 0
        %3665 = vmatpush1.bf16.msra.mxu0 0
        %3666 = vmatprep.subr.bf16.mxu0 0
        %3667 = vmatpush1.bf16.msra.mxu0 0
        %3668 = vmatprep.subr.bf16.mxu0 0
        %3669 = vmatpush1.bf16.msra.mxu0 0
        %3670 = vmatprep.subr.bf16.mxu0 0
        %3671 = vmatpush1.bf16.msra.mxu0 0
        %3672 = vmatprep.subr.bf16.mxu0 0
        %3673 = vmatpush1.bf16.msra.mxu0 0
        %3674 = vmatprep.mubr.bf16.mxu0 0
        %3675 = vmatmul.mubr.bf16.gmra.mrb[0].mxu0 %v3554
        %v3676 = vpop.f32.mrb[0].mxu0
        %v3677 = vadd.f32 %v3332, %v3676
        %v3678 = vpop.f32.mrb[0].mxu0
        %v3679 = vadd.f32 %v3336, %v3678
        %v3680 = vpop.f32.mrb[0].mxu0
        %v3681 = vadd.f32 %v3332, %v3680
        %v3682 = vpop.f32.mrb[0].mxu0
        %v3683 = vadd.f32 %v3336, %v3682
        %3684 = vdwg.mxu0
        %3685 = vmatprep.subr.bf16.mxu0 %v3496
        %3686 = vmatpush1.bf16.msra.mxu0 %v3495
        %3687 = vmatprep.subr.bf16.mxu0 %v3512
        %3688 = vmatpush1.bf16.msra.mxu0 %v3511
        %3689 = vmatprep.subr.bf16.mxu0 0
        %3690 = vmatpush1.bf16.msra.mxu0 0
        %3691 = vmatprep.subr.bf16.mxu0 0
        %3692 = vmatpush1.bf16.msra.mxu0 0
        %3693 = vmatprep.subr.bf16.mxu0 0
        %3694 = vmatpush1.bf16.msra.mxu0 0
        %3695 = vmatprep.subr.bf16.mxu0 0
        %3696 = vmatpush1.bf16.msra.mxu0 0
        %3697 = vmatprep.subr.bf16.mxu0 0
        %3698 = vmatpush1.bf16.msra.mxu0 0
        %3699 = vmatprep.subr.bf16.mxu0 0
        %3700 = vmatpush1.bf16.msra.mxu0 0
        %3701 = vmatprep.subr.bf16.mxu0 0
        %3702 = vmatpush1.bf16.msra.mxu0 0
        %3703 = vmatprep.subr.bf16.mxu0 0
        %3704 = vmatpush1.bf16.msra.mxu0 0
        %3705 = vmatprep.subr.bf16.mxu0 0
        %3706 = vmatpush1.bf16.msra.mxu0 0
        %3707 = vmatprep.subr.bf16.mxu0 0
        %3708 = vmatpush1.bf16.msra.mxu0 0
        %3709 = vmatprep.subr.bf16.mxu0 0
        %3710 = vmatpush1.bf16.msra.mxu0 0
        %3711 = vmatprep.subr.bf16.mxu0 0
        %3712 = vmatpush1.bf16.msra.mxu0 0
        %3713 = vmatprep.subr.bf16.mxu0 0
        %3714 = vmatpush1.bf16.msra.mxu0 0
        %3715 = vmatprep.subr.bf16.mxu0 0
        %3716 = vmatpush1.bf16.msra.mxu0 0
        %3717 = vmatprep.mubr.bf16.mxu0 0
        %3718 = vmatmul.mubr.bf16.gmra.mrb[0].mxu0 %v3554
        %v3719 = vpop.f32.mrb[0].mxu0
        %v3720 = vadd.f32 %v3340, %v3719
        %v3721 = vpop.f32.mrb[0].mxu0
        %v3722 = vadd.f32 %v3344, %v3721
        %v3723 = vpop.f32.mrb[0].mxu0
        %v3724 = vadd.f32 %v3340, %v3723
        %v3725 = vpop.f32.mrb[0].mxu0
        %v3726 = vadd.f32 %v3344, %v3725
        %3727 = vdwg.mxu0
        %3728 = vmatprep.subr.bf16.mxu0 %v3498
        %3729 = vmatpush1.bf16.msra.mxu0 %v3497
        %3730 = vmatprep.subr.bf16.mxu0 %v3514
        %3731 = vmatpush1.bf16.msra.mxu0 %v3513
        %3732 = vmatprep.subr.bf16.mxu0 0
        %3733 = vmatpush1.bf16.msra.mxu0 0
        %3734 = vmatprep.subr.bf16.mxu0 0
        %3735 = vmatpush1.bf16.msra.mxu0 0
        %3736 = vmatprep.subr.bf16.mxu0 0
        %3737 = vmatpush1.bf16.msra.mxu0 0
        %3738 = vmatprep.subr.bf16.mxu0 0
        %3739 = vmatpush1.bf16.msra.mxu0 0
        %3740 = vmatprep.subr.bf16.mxu0 0
        %3741 = vmatpush1.bf16.msra.mxu0 0
        %3742 = vmatprep.subr.bf16.mxu0 0
        %3743 = vmatpush1.bf16.msra.mxu0 0
        %3744 = vmatprep.subr.bf16.mxu0 0
        %3745 = vmatpush1.bf16.msra.mxu0 0
        %3746 = vmatprep.subr.bf16.mxu0 0
        %3747 = vmatpush1.bf16.msra.mxu0 0
        %3748 = vmatprep.subr.bf16.mxu0 0
        %3749 = vmatpush1.bf16.msra.mxu0 0
        %3750 = vmatprep.subr.bf16.mxu0 0
        %3751 = vmatpush1.bf16.msra.mxu0 0
        %3752 = vmatprep.subr.bf16.mxu0 0
        %3753 = vmatpush1.bf16.msra.mxu0 0
        %3754 = vmatprep.subr.bf16.mxu0 0
        %3755 = vmatpush1.bf16.msra.mxu0 0
        %3756 = vmatprep.subr.bf16.mxu0 0
        %3757 = vmatpush1.bf16.msra.mxu0 0
        %3758 = vmatprep.subr.bf16.mxu0 0
        %3759 = vmatpush1.bf16.msra.mxu0 0
        %3760 = vmatprep.mubr.bf16.mxu0 0
        %3761 = vmatmul.mubr.bf16.gmra.mrb[0].mxu0 %v3554
        %v3762 = vpop.f32.mrb[0].mxu0
        %v3763 = vadd.f32 %v3348, %v3762
        %v3764 = vpop.f32.mrb[0].mxu0
        %v3765 = vadd.f32 %v3352, %v3764
        %v3766 = vpop.f32.mrb[0].mxu0
        %v3767 = vadd.f32 %v3348, %v3766
        %v3768 = vpop.f32.mrb[0].mxu0
        %v3769 = vadd.f32 %v3352, %v3768
        %3770 = vdwg.mxu0
        %3771 = vmatprep.subr.bf16.mxu0 %v3500
        %3772 = vmatpush1.bf16.msra.mxu0 %v3499
        %3773 = vmatprep.subr.bf16.mxu0 %v3516
        %3774 = vmatpush1.bf16.msra.mxu0 %v3515
        %3775 = vmatprep.subr.bf16.mxu0 0
        %3776 = vmatpush1.bf16.msra.mxu0 0
        %3777 = vmatprep.subr.bf16.mxu0 0
        %3778 = vmatpush1.bf16.msra.mxu0 0
        %3779 = vmatprep.subr.bf16.mxu0 0
        %3780 = vmatpush1.bf16.msra.mxu0 0
        %3781 = vmatprep.subr.bf16.mxu0 0
        %3782 = vmatpush1.bf16.msra.mxu0 0
        %3783 = vmatprep.subr.bf16.mxu0 0
        %3784 = vmatpush1.bf16.msra.mxu0 0
        %3785 = vmatprep.subr.bf16.mxu0 0
        %3786 = vmatpush1.bf16.msra.mxu0 0
        %3787 = vmatprep.subr.bf16.mxu0 0
        %3788 = vmatpush1.bf16.msra.mxu0 0
        %3789 = vmatprep.subr.bf16.mxu0 0
        %3790 = vmatpush1.bf16.msra.mxu0 0
        %3791 = vmatprep.subr.bf16.mxu0 0
        %3792 = vmatpush1.bf16.msra.mxu0 0
        %3793 = vmatprep.subr.bf16.mxu0 0
        %3794 = vmatpush1.bf16.msra.mxu0 0
        %3795 = vmatprep.subr.bf16.mxu0 0
        %3796 = vmatpush1.bf16.msra.mxu0 0
        %3797 = vmatprep.subr.bf16.mxu0 0
        %3798 = vmatpush1.bf16.msra.mxu0 0
        %3799 = vmatprep.subr.bf16.mxu0 0
        %3800 = vmatpush1.bf16.msra.mxu0 0
        %3801 = vmatprep.subr.bf16.mxu0 0
        %3802 = vmatpush1.bf16.msra.mxu0 0
        %3803 = vmatprep.mubr.bf16.mxu0 0
        %3804 = vmatmul.mubr.bf16.gmra.mrb[0].mxu0 %v3554
        %v3805 = vpop.f32.mrb[0].mxu0
        %v3806 = vadd.f32 %v3356, %v3805
        %v3807 = vpop.f32.mrb[0].mxu0
        %v3808 = vadd.f32 %v3360, %v3807
        %v3809 = vpop.f32.mrb[0].mxu0
        %v3810 = vadd.f32 %v3356, %v3809
        %v3811 = vpop.f32.mrb[0].mxu0
        %v3812 = vadd.f32 %v3360, %v3811
        %3813 = vdwg.mxu0
        %3814 = vmatprep.subr.bf16.mxu0 %v3502
        %3815 = vmatpush1.bf16.msra.mxu0 %v3501
        %3816 = vmatprep.subr.bf16.mxu0 %v3518
        %3817 = vmatpush1.bf16.msra.mxu0 %v3517
        %3818 = vmatprep.subr.bf16.mxu0 0
        %3819 = vmatpush1.bf16.msra.mxu0 0
        %3820 = vmatprep.subr.bf16.mxu0 0
        %3821 = vmatpush1.bf16.msra.mxu0 0
        %3822 = vmatprep.subr.bf16.mxu0 0
        %3823 = vmatpush1.bf16.msra.mxu0 0
        %3824 = vmatprep.subr.bf16.mxu0 0
        %3825 = vmatpush1.bf16.msra.mxu0 0
        %3826 = vmatprep.subr.bf16.mxu0 0
        %3827 = vmatpush1.bf16.msra.mxu0 0
        %3828 = vmatprep.subr.bf16.mxu0 0
        %3829 = vmatpush1.bf16.msra.mxu0 0
        %3830 = vmatprep.subr.bf16.mxu0 0
        %3831 = vmatpush1.bf16.msra.mxu0 0
        %3832 = vmatprep.subr.bf16.mxu0 0
        %3833 = vmatpush1.bf16.msra.mxu0 0
        %3834 = vmatprep.subr.bf16.mxu0 0
        %3835 = vmatpush1.bf16.msra.mxu0 0
        %3836 = vmatprep.subr.bf16.mxu0 0
        %3837 = vmatpush1.bf16.msra.mxu0 0
        %3838 = vmatprep.subr.bf16.mxu0 0
        %3839 = vmatpush1.bf16.msra.mxu0 0
        %3840 = vmatprep.subr.bf16.mxu0 0
        %3841 = vmatpush1.bf16.msra.mxu0 0
        %3842 = vmatprep.subr.bf16.mxu0 0
        %3843 = vmatpush1.bf16.msra.mxu0 0
        %3844 = vmatprep.subr.bf16.mxu0 0
        %3845 = vmatpush1.bf16.msra.mxu0 0
        %3846 = vmatprep.mubr.bf16.mxu0 0
        %3847 = vmatmul.mubr.bf16.gmra.mrb[0].mxu0 %v3554
        %v3848 = vpop.f32.mrb[0].mxu0
        %v3849 = vadd.f32 %v3364, %v3848
        %v3850 = vpop.f32.mrb[0].mxu0
        %v3851 = vadd.f32 %v3368, %v3850
        %v3852 = vpop.f32.mrb[0].mxu0
        %v3853 = vadd.f32 %v3364, %v3852
        %v3854 = vpop.f32.mrb[0].mxu0
        %v3855 = vadd.f32 %v3368, %v3854
        %3856 = vdwg.mxu0
        %3857 = vmatprep.subr.bf16.mxu0 %v3504
        %3858 = vmatpush1.bf16.msra.mxu0 %v3503
        %3859 = vmatprep.subr.bf16.mxu0 %v3520
        %3860 = vmatpush1.bf16.msra.mxu0 %v3519
        %3861 = vmatprep.subr.bf16.mxu0 0
        %3862 = vmatpush1.bf16.msra.mxu0 0
        %3863 = vmatprep.subr.bf16.mxu0 0
        %3864 = vmatpush1.bf16.msra.mxu0 0
        %3865 = vmatprep.subr.bf16.mxu0 0
        %3866 = vmatpush1.bf16.msra.mxu0 0
        %3867 = vmatprep.subr.bf16.mxu0 0
        %3868 = vmatpush1.bf16.msra.mxu0 0
        %3869 = vmatprep.subr.bf16.mxu0 0
        %3870 = vmatpush1.bf16.msra.mxu0 0
        %3871 = vmatprep.subr.bf16.mxu0 0
        %3872 = vmatpush1.bf16.msra.mxu0 0
        %3873 = vmatprep.subr.bf16.mxu0 0
        %3874 = vmatpush1.bf16.msra.mxu0 0
        %3875 = vmatprep.subr.bf16.mxu0 0
        %3876 = vmatpush1.bf16.msra.mxu0 0
        %3877 = vmatprep.subr.bf16.mxu0 0
        %3878 = vmatpush1.bf16.msra.mxu0 0
        %3879 = vmatprep.subr.bf16.mxu0 0
        %3880 = vmatpush1.bf16.msra.mxu0 0
        %3881 = vmatprep.subr.bf16.mxu0 0
        %3882 = vmatpush1.bf16.msra.mxu0 0
        %3883 = vmatprep.subr.bf16.mxu0 0
        %3884 = vmatpush1.bf16.msra.mxu0 0
        %3885 = vmatprep.subr.bf16.mxu0 0
        %3886 = vmatpush1.bf16.msra.mxu0 0
        %3887 = vmatprep.subr.bf16.mxu0 0
        %3888 = vmatpush1.bf16.msra.mxu0 0
        %3889 = vmatprep.mubr.bf16.mxu0 0
        %3890 = vmatmul.mubr.bf16.gmra.mrb[0].mxu0 %v3554
        %v3891 = vpop.f32.mrb[0].mxu0
        %v3892 = vadd.f32 %v3372, %v3891
        %v3893 = vpop.f32.mrb[0].mxu0
        %v3894 = vadd.f32 %v3376, %v3893
        %v3895 = vpop.f32.mrb[0].mxu0
        %v3896 = vadd.f32 %v3372, %v3895
        %v3897 = vpop.f32.mrb[0].mxu0
        %v3898 = vadd.f32 %v3376, %v3897
        %3899 = vdwg.mxu0
        %v3900 = vmax.f32 %v3591, 0.0
        %v3901 = vmax.f32 %v3593, 0.0
        %v3902 = vmax.f32 %v3634, 0.0
        %v3903 = vmax.f32 %v3636, 0.0
        %v3904 = vmax.f32 %v3677, 0.0
        %v3905 = vmax.f32 %v3679, 0.0
        %v3906 = vmax.f32 %v3720, 0.0
        %v3907 = vmax.f32 %v3722, 0.0
        %v3908 = vmax.f32 %v3763, 0.0
        %v3909 = vmax.f32 %v3765, 0.0
        %v3910 = vmax.f32 %v3806, 0.0
        %v3911 = vmax.f32 %v3808, 0.0
        %v3912 = vmax.f32 %v3849, 0.0
        %v3913 = vmax.f32 %v3851, 0.0
        %v3914 = vmax.f32 %v3892, 0.0
        %v3915 = vmax.f32 %v3894, 0.0
        %v3916 = vmax.f32 %v3595, 0.0
        %v3917 = vmax.f32 %v3597, 0.0
        %v3918 = vmax.f32 %v3638, 0.0
        %v3919 = vmax.f32 %v3640, 0.0
        %v3920 = vmax.f32 %v3681, 0.0
        %v3921 = vmax.f32 %v3683, 0.0
        %v3922 = vmax.f32 %v3724, 0.0
        %v3923 = vmax.f32 %v3726, 0.0
        %v3924 = vmax.f32 %v3767, 0.0
        %v3925 = vmax.f32 %v3769, 0.0
        %v3926 = vmax.f32 %v3810, 0.0
        %v3927 = vmax.f32 %v3812, 0.0
        %v3928 = vmax.f32 %v3853, 0.0
        %v3929 = vmax.f32 %v3855, 0.0
        %v3930 = vmax.f32 %v3896, 0.0
        %v3931 = vmax.f32 %v3898, 0.0
        %v3932 = vld [vmem:[%s998] sm:$0xf]
        %v3933 = vld [vmem:[%s998 + $0x4] sm:$0xf]
        %v3934 = vld [vmem:[%s998 + $0x8] sm:$0xf]
        %v3935 = vld [vmem:[%s998 + $0xc] sm:$0xf]
        %v3936 = vld [vmem:[%s998 + $0x10] sm:$0xf]
        %v3937 = vld [vmem:[%s998 + $0x14] sm:$0xf]
        %v3938 = vld [vmem:[%s998 + $0x18] sm:$0xf]
        %v3939 = vld [vmem:[%s998 + $0x1c] sm:$0xf]
        %v3940 = vld [vmem:[%s998 + $0x20] sm:$0xf]
        %v3941 = vld [vmem:[%s998 + $0x24] sm:$0xf]
        %v3942 = vld [vmem:[%s998 + $0x28] sm:$0xf]
        %v3943 = vld [vmem:[%s998 + $0x2c] sm:$0xf]
        %v3944 = vld [vmem:[%s998 + $0x30] sm:$0xf]
        %v3945 = vld [vmem:[%s998 + $0x34] sm:$0xf]
        %v3946 = vld [vmem:[%s998 + $0x38] sm:$0xf]
        %v3947 = vld [vmem:[%s998 + $0x3c] sm:$0xf]
        %v3948 = vld [vmem:[%s998 + $0x40] sm:$0xf]
        %v3949 = vld [vmem:[%s998 + $0x44] sm:$0xf]
        %v3950 = vld [vmem:[%s998 + $0x48] sm:$0xf]
        %v3951 = vld [vmem:[%s998 + $0x4c] sm:$0xf]
        %v3952 = vld [vmem:[%s998 + $0x50] sm:$0xf]
        %v3953 = vld [vmem:[%s998 + $0x54] sm:$0xf]
        %v3954 = vld [vmem:[%s998 + $0x58] sm:$0xf]
        %v3955 = vld [vmem:[%s998 + $0x5c] sm:$0xf]
        %v3956 = vld [vmem:[%s998 + $0x60] sm:$0xf]
        %v3957 = vld [vmem:[%s998 + $0x64] sm:$0xf]
        %v3958 = vld [vmem:[%s998 + $0x68] sm:$0xf]
        %v3959 = vld [vmem:[%s998 + $0x6c] sm:$0xf]
        %v3960 = vld [vmem:[%s998 + $0x70] sm:$0xf]
        %v3961 = vld [vmem:[%s998 + $0x74] sm:$0xf]
        %v3962 = vld [vmem:[%s998 + $0x78] sm:$0xf]
        %v3963 = vld [vmem:[%s998 + $0x7c] sm:$0xf]
        %v3964 = vld [vmem:[%s998 + $0x80] sm:$0xf]
        %v3965 = vld [vmem:[%s998 + $0x84] sm:$0xf]
        %v3966 = vld [vmem:[%s998 + $0x88] sm:$0xf]
        %v3967 = vld [vmem:[%s998 + $0x8c] sm:$0xf]
        %v3968 = vld [vmem:[%s998 + $0x90] sm:$0xf]
        %v3969 = vld [vmem:[%s998 + $0x94] sm:$0xf]
        %v3970 = vld [vmem:[%s998 + $0x98] sm:$0xf]
        %v3971 = vld [vmem:[%s998 + $0x9c] sm:$0xf]
        %v3972 = vld [vmem:[%s998 + $0xa0] sm:$0xf]
        %v3973 = vld [vmem:[%s998 + $0xa4] sm:$0xf]
        %v3974 = vld [vmem:[%s998 + $0xa8] sm:$0xf]
        %v3975 = vld [vmem:[%s998 + $0xac] sm:$0xf]
        %v3976 = vld [vmem:[%s998 + $0xb0] sm:$0xf]
        %v3977 = vld [vmem:[%s998 + $0xb4] sm:$0xf]
        %v3978 = vld [vmem:[%s998 + $0xb8] sm:$0xf]
        %v3979 = vld [vmem:[%s998 + $0xbc] sm:$0xf]
        %v3980 = vld [vmem:[%s998 + $0xc0] sm:$0xf]
        %v3981 = vld [vmem:[%s998 + $0xc4] sm:$0xf]
        %v3982 = vld [vmem:[%s998 + $0xc8] sm:$0xf]
        %v3983 = vld [vmem:[%s998 + $0xcc] sm:$0xf]
        %v3984 = vld [vmem:[%s998 + $0xd0] sm:$0xf]
        %v3985 = vld [vmem:[%s998 + $0xd4] sm:$0xf]
        %v3986 = vld [vmem:[%s998 + $0xd8] sm:$0xf]
        %v3987 = vld [vmem:[%s998 + $0xdc] sm:$0xf]
        %v3988 = vld [vmem:[%s998 + $0xe0] sm:$0xf]
        %v3989 = vld [vmem:[%s998 + $0xe4] sm:$0xf]
        %v3990 = vld [vmem:[%s998 + $0xe8] sm:$0xf]
        %v3991 = vld [vmem:[%s998 + $0xec] sm:$0xf]
        %v3992 = vld [vmem:[%s998 + $0xf0] sm:$0xf]
        %v3993 = vld [vmem:[%s998 + $0xf4] sm:$0xf]
        %v3994 = vld [vmem:[%s998 + $0xf8] sm:$0xf]
        %v3995 = vld [vmem:[%s998 + $0xfc] sm:$0xf]
        %v3996 = vld [vmem:[%s998 + $0x100] sm:$0xf]
        %v3997 = vld [vmem:[%s998 + $0x104] sm:$0xf]
        %v3998 = vld [vmem:[%s998 + $0x108] sm:$0xf]
        %v3999 = vld [vmem:[%s998 + $0x10c] sm:$0xf]
        %v4000 = vld [vmem:[%s998 + $0x110] sm:$0xf]
        %v4001 = vld [vmem:[%s998 + $0x114] sm:$0xf]
        %v4002 = vld [vmem:[%s998 + $0x118] sm:$0xf]
        %v4003 = vld [vmem:[%s998 + $0x11c] sm:$0xf]
        %v4004 = vld [vmem:[%s998 + $0x120] sm:$0xf]
        %v4005 = vld [vmem:[%s998 + $0x124] sm:$0xf]
        %v4006 = vld [vmem:[%s998 + $0x128] sm:$0xf]
        %v4007 = vld [vmem:[%s998 + $0x12c] sm:$0xf]
        %v4008 = vld [vmem:[%s998 + $0x130] sm:$0xf]
        %v4009 = vld [vmem:[%s998 + $0x134] sm:$0xf]
        %v4010 = vld [vmem:[%s998 + $0x138] sm:$0xf]
        %v4011 = vld [vmem:[%s998 + $0x13c] sm:$0xf]
        %v4012 = vld [vmem:[%s998 + $0x140] sm:$0xf]
        %v4013 = vld [vmem:[%s998 + $0x144] sm:$0xf]
        %v4014 = vld [vmem:[%s998 + $0x148] sm:$0xf]
        %v4015 = vld [vmem:[%s998 + $0x14c] sm:$0xf]
        %v4016 = vld [vmem:[%s998 + $0x150] sm:$0xf]
        %v4017 = vld [vmem:[%s998 + $0x154] sm:$0xf]
        %v4018 = vld [vmem:[%s998 + $0x158] sm:$0xf]
        %v4019 = vld [vmem:[%s998 + $0x15c] sm:$0xf]
        %v4020 = vld [vmem:[%s998 + $0x160] sm:$0xf]
        %v4021 = vld [vmem:[%s998 + $0x164] sm:$0xf]
        %v4022 = vld [vmem:[%s998 + $0x168] sm:$0xf]
        %v4023 = vld [vmem:[%s998 + $0x16c] sm:$0xf]
        %v4024 = vld [vmem:[%s998 + $0x170] sm:$0xf]
        %v4025 = vld [vmem:[%s998 + $0x174] sm:$0xf]
        %v4026 = vld [vmem:[%s998 + $0x178] sm:$0xf]
        %v4027 = vld [vmem:[%s998 + $0x17c] sm:$0xf]
        %v4028 = vld [vmem:[%s998 + $0x180] sm:$0xf]
        %v4029 = vld [vmem:[%s998 + $0x184] sm:$0xf]
        %v4030 = vld [vmem:[%s998 + $0x188] sm:$0xf]
        %v4031 = vld [vmem:[%s998 + $0x18c] sm:$0xf]
        %v4032 = vld [vmem:[%s998 + $0x190] sm:$0xf]
        %v4033 = vld [vmem:[%s998 + $0x194] sm:$0xf]
        %v4034 = vld [vmem:[%s998 + $0x198] sm:$0xf]
        %v4035 = vld [vmem:[%s998 + $0x19c] sm:$0xf]
        %v4036 = vld [vmem:[%s998 + $0x1a0] sm:$0xf]
        %v4037 = vld [vmem:[%s998 + $0x1a4] sm:$0xf]
        %v4038 = vld [vmem:[%s998 + $0x1a8] sm:$0xf]
        %v4039 = vld [vmem:[%s998 + $0x1ac] sm:$0xf]
        %v4040 = vld [vmem:[%s998 + $0x1b0] sm:$0xf]
        %v4041 = vld [vmem:[%s998 + $0x1b4] sm:$0xf]
        %v4042 = vld [vmem:[%s998 + $0x1b8] sm:$0xf]
        %v4043 = vld [vmem:[%s998 + $0x1bc] sm:$0xf]
        %v4044 = vld [vmem:[%s998 + $0x1c0] sm:$0xf]
        %v4045 = vld [vmem:[%s998 + $0x1c4] sm:$0xf]
        %v4046 = vld [vmem:[%s998 + $0x1c8] sm:$0xf]
        %v4047 = vld [vmem:[%s998 + $0x1cc] sm:$0xf]
        %v4048 = vld [vmem:[%s998 + $0x1d0] sm:$0xf]
        %v4049 = vld [vmem:[%s998 + $0x1d4] sm:$0xf]
        %v4050 = vld [vmem:[%s998 + $0x1d8] sm:$0xf]
        %v4051 = vld [vmem:[%s998 + $0x1dc] sm:$0xf]
        %v4052 = vld [vmem:[%s998 + $0x1e0] sm:$0xf]
        %v4053 = vld [vmem:[%s998 + $0x1e4] sm:$0xf]
        %v4054 = vld [vmem:[%s998 + $0x1e8] sm:$0xf]
        %v4055 = vld [vmem:[%s998 + $0x1ec] sm:$0xf]
        %v4056 = vld [vmem:[%s998 + $0x1f0] sm:$0xf]
        %v4057 = vld [vmem:[%s998 + $0x1f4] sm:$0xf]
        %v4058 = vld [vmem:[%s998 + $0x1f8] sm:$0xf]
        %v4059 = vld [vmem:[%s998 + $0x1fc] sm:$0xf]
        %v4060 = vld [vmem:[%s998 + $0x200] sm:$0xf]
        %v4061 = vld [vmem:[%s998 + $0x204] sm:$0xf]
        %v4062 = vld [vmem:[%s998 + $0x208] sm:$0xf]
        %v4063 = vld [vmem:[%s998 + $0x20c] sm:$0xf]
        %v4064 = vld [vmem:[%s998 + $0x210] sm:$0xf]
        %v4065 = vld [vmem:[%s998 + $0x214] sm:$0xf]
        %v4066 = vld [vmem:[%s998 + $0x218] sm:$0xf]
        %v4067 = vld [vmem:[%s998 + $0x21c] sm:$0xf]
        %v4068 = vld [vmem:[%s998 + $0x220] sm:$0xf]
        %v4069 = vld [vmem:[%s998 + $0x224] sm:$0xf]
        %v4070 = vld [vmem:[%s998 + $0x228] sm:$0xf]
        %v4071 = vld [vmem:[%s998 + $0x22c] sm:$0xf]
        %v4072 = vld [vmem:[%s998 + $0x230] sm:$0xf]
        %v4073 = vld [vmem:[%s998 + $0x234] sm:$0xf]
        %v4074 = vld [vmem:[%s998 + $0x238] sm:$0xf]
        %v4075 = vld [vmem:[%s998 + $0x23c] sm:$0xf]
        %v4076 = vld [vmem:[%s998 + $0x240] sm:$0xf]
        %v4077 = vld [vmem:[%s998 + $0x244] sm:$0xf]
        %v4078 = vld [vmem:[%s998 + $0x248] sm:$0xf]
        %v4079 = vld [vmem:[%s998 + $0x24c] sm:$0xf]
        %v4080 = vld [vmem:[%s998 + $0x250] sm:$0xf]
        %v4081 = vld [vmem:[%s998 + $0x254] sm:$0xf]
        %v4082 = vld [vmem:[%s998 + $0x258] sm:$0xf]
        %v4083 = vld [vmem:[%s998 + $0x25c] sm:$0xf]
        %v4084 = vld [vmem:[%s998 + $0x260] sm:$0xf]
        %v4085 = vld [vmem:[%s998 + $0x264] sm:$0xf]
        %v4086 = vld [vmem:[%s998 + $0x268] sm:$0xf]
        %v4087 = vld [vmem:[%s998 + $0x26c] sm:$0xf]
        %v4088 = vld [vmem:[%s998 + $0x270] sm:$0xf]
        %v4089 = vld [vmem:[%s998 + $0x274] sm:$0xf]
        %v4090 = vld [vmem:[%s998 + $0x278] sm:$0xf]
        %v4091 = vld [vmem:[%s998 + $0x27c] sm:$0xf]
        %v4092 = vld [vmem:[%s998 + $0x280] sm:$0xf]
        %v4093 = vld [vmem:[%s998 + $0x284] sm:$0xf]
        %v4094 = vld [vmem:[%s998 + $0x288] sm:$0xf]
        %v4095 = vld [vmem:[%s998 + $0x28c] sm:$0xf]
        %v4096 = vld [vmem:[%s998 + $0x290] sm:$0xf]
        %v4097 = vld [vmem:[%s998 + $0x294] sm:$0xf]
        %v4098 = vld [vmem:[%s998 + $0x298] sm:$0xf]
        %v4099 = vld [vmem:[%s998 + $0x29c] sm:$0xf]
        %v4100 = vld [vmem:[%s998 + $0x2a0] sm:$0xf]
        %v4101 = vld [vmem:[%s998 + $0x2a4] sm:$0xf]
        %v4102 = vld [vmem:[%s998 + $0x2a8] sm:$0xf]
        %v4103 = vld [vmem:[%s998 + $0x2ac] sm:$0xf]
        %v4104 = vld [vmem:[%s998 + $0x2b0] sm:$0xf]
        %v4105 = vld [vmem:[%s998 + $0x2b4] sm:$0xf]
        %v4106 = vld [vmem:[%s998 + $0x2b8] sm:$0xf]
        %v4107 = vld [vmem:[%s998 + $0x2bc] sm:$0xf]
        %v4108 = vld [vmem:[%s998 + $0x2c0] sm:$0xf]
        %v4109 = vld [vmem:[%s998 + $0x2c4] sm:$0xf]
        %v4110 = vld [vmem:[%s998 + $0x2c8] sm:$0xf]
        %v4111 = vld [vmem:[%s998 + $0x2cc] sm:$0xf]
        %v4112 = vld [vmem:[%s998 + $0x2d0] sm:$0xf]
        %v4113 = vld [vmem:[%s998 + $0x2d4] sm:$0xf]
        %v4114 = vld [vmem:[%s998 + $0x2d8] sm:$0xf]
        %v4115 = vld [vmem:[%s998 + $0x2dc] sm:$0xf]
        %v4116 = vld [vmem:[%s998 + $0x2e0] sm:$0xf]
        %v4117 = vld [vmem:[%s998 + $0x2e4] sm:$0xf]
        %v4118 = vld [vmem:[%s998 + $0x2e8] sm:$0xf]
        %v4119 = vld [vmem:[%s998 + $0x2ec] sm:$0xf]
        %v4120 = vld [vmem:[%s998 + $0x2f0] sm:$0xf]
        %v4121 = vld [vmem:[%s998 + $0x2f4] sm:$0xf]
        %v4122 = vld [vmem:[%s998 + $0x2f8] sm:$0xf]
        %v4123 = vld [vmem:[%s998 + $0x2fc] sm:$0xf]
        %v4124 = vld [vmem:[%s998 + $0x300] sm:$0xf]
        %v4125 = vld [vmem:[%s998 + $0x304] sm:$0xf]
        %v4126 = vld [vmem:[%s998 + $0x308] sm:$0xf]
        %v4127 = vld [vmem:[%s998 + $0x30c] sm:$0xf]
        %v4128 = vld [vmem:[%s998 + $0x310] sm:$0xf]
        %v4129 = vld [vmem:[%s998 + $0x314] sm:$0xf]
        %v4130 = vld [vmem:[%s998 + $0x318] sm:$0xf]
        %v4131 = vld [vmem:[%s998 + $0x31c] sm:$0xf]
        %v4132 = vld [vmem:[%s998 + $0x320] sm:$0xf]
        %v4133 = vld [vmem:[%s998 + $0x324] sm:$0xf]
        %v4134 = vld [vmem:[%s998 + $0x328] sm:$0xf]
        %v4135 = vld [vmem:[%s998 + $0x32c] sm:$0xf]
        %v4136 = vld [vmem:[%s998 + $0x330] sm:$0xf]
        %v4137 = vld [vmem:[%s998 + $0x334] sm:$0xf]
        %v4138 = vld [vmem:[%s998 + $0x338] sm:$0xf]
        %v4139 = vld [vmem:[%s998 + $0x33c] sm:$0xf]
        %v4140 = vld [vmem:[%s998 + $0x340] sm:$0xf]
        %v4141 = vld [vmem:[%s998 + $0x344] sm:$0xf]
        %v4142 = vld [vmem:[%s998 + $0x348] sm:$0xf]
        %v4143 = vld [vmem:[%s998 + $0x34c] sm:$0xf]
        %v4144 = vld [vmem:[%s998 + $0x350] sm:$0xf]
        %v4145 = vld [vmem:[%s998 + $0x354] sm:$0xf]
        %v4146 = vld [vmem:[%s998 + $0x358] sm:$0xf]
        %v4147 = vld [vmem:[%s998 + $0x35c] sm:$0xf]
        %v4148 = vld [vmem:[%s998 + $0x360] sm:$0xf]
        %v4149 = vld [vmem:[%s998 + $0x364] sm:$0xf]
        %v4150 = vld [vmem:[%s998 + $0x368] sm:$0xf]
        %v4151 = vld [vmem:[%s998 + $0x36c] sm:$0xf]
        %v4152 = vld [vmem:[%s998 + $0x370] sm:$0xf]
        %v4153 = vld [vmem:[%s998 + $0x374] sm:$0xf]
        %v4154 = vld [vmem:[%s998 + $0x378] sm:$0xf]
        %v4155 = vld [vmem:[%s998 + $0x37c] sm:$0xf]
        %v4156 = vld [vmem:[%s998 + $0x380] sm:$0xf]
        %v4157 = vld [vmem:[%s998 + $0x384] sm:$0xf]
        %v4158 = vld [vmem:[%s998 + $0x388] sm:$0xf]
        %v4159 = vld [vmem:[%s998 + $0x38c] sm:$0xf]
        %v4160 = vld [vmem:[%s998 + $0x390] sm:$0xf]
        %v4161 = vld [vmem:[%s998 + $0x394] sm:$0xf]
        %v4162 = vld [vmem:[%s998 + $0x398] sm:$0xf]
        %v4163 = vld [vmem:[%s998 + $0x39c] sm:$0xf]
        %v4164 = vld [vmem:[%s998 + $0x3a0] sm:$0xf]
        %v4165 = vld [vmem:[%s998 + $0x3a4] sm:$0xf]
        %v4166 = vld [vmem:[%s998 + $0x3a8] sm:$0xf]
        %v4167 = vld [vmem:[%s998 + $0x3ac] sm:$0xf]
        %v4168 = vld [vmem:[%s998 + $0x3b0] sm:$0xf]
        %v4169 = vld [vmem:[%s998 + $0x3b4] sm:$0xf]
        %v4170 = vld [vmem:[%s998 + $0x3b8] sm:$0xf]
        %v4171 = vld [vmem:[%s998 + $0x3bc] sm:$0xf]
        %v4172 = vld [vmem:[%s998 + $0x3c0] sm:$0xf]
        %v4173 = vld [vmem:[%s998 + $0x3c4] sm:$0xf]
        %v4174 = vld [vmem:[%s998 + $0x3c8] sm:$0xf]
        %v4175 = vld [vmem:[%s998 + $0x3cc] sm:$0xf]
        %v4176 = vld [vmem:[%s998 + $0x3d0] sm:$0xf]
        %v4177 = vld [vmem:[%s998 + $0x3d4] sm:$0xf]
        %v4178 = vld [vmem:[%s998 + $0x3d8] sm:$0xf]
        %v4179 = vld [vmem:[%s998 + $0x3dc] sm:$0xf]
        %v4180 = vld [vmem:[%s998 + $0x3e0] sm:$0xf]
        %v4181 = vld [vmem:[%s998 + $0x3e4] sm:$0xf]
        %v4182 = vld [vmem:[%s998 + $0x3e8] sm:$0xf]
        %v4183 = vld [vmem:[%s998 + $0x3ec] sm:$0xf]
        %v4184 = vld [vmem:[%s998 + $0x3f0] sm:$0xf]
        %v4185 = vld [vmem:[%s998 + $0x3f4] sm:$0xf]
        %v4186 = vld [vmem:[%s998 + $0x3f8] sm:$0xf]
        %v4187 = vld [vmem:[%s998 + $0x3fc] sm:$0xf]
        %v4188 = vpack.c.bf16 %v3916, %v3900
        %v4189 = vpack.c.bf16 %v3917, %v3901
        %v4190 = vpack.c.bf16 %v3918, %v3902
        %v4191 = vpack.c.bf16 %v3919, %v3903
        %v4192 = vpack.c.bf16 %v3920, %v3904
        %v4193 = vpack.c.bf16 %v3921, %v3905
        %v4194 = vpack.c.bf16 %v3922, %v3906
        %v4195 = vpack.c.bf16 %v3923, %v3907
        %v4196 = vpack.c.bf16 %v3924, %v3908
        %v4197 = vpack.c.bf16 %v3925, %v3909
        %v4198 = vpack.c.bf16 %v3926, %v3910
        %v4199 = vpack.c.bf16 %v3927, %v3911
        %v4200 = vpack.c.bf16 %v3928, %v3912
        %v4201 = vpack.c.bf16 %v3929, %v3913
        %v4202 = vpack.c.bf16 %v3930, %v3914
        %v4203 = vpack.c.bf16 %v3931, %v3915
        %v4204 = vld [vmem:[%s1001] sm:$0x1]
        %v4206 = vlaneseq
        %v4207 = vshrl.u32 %v4206, 7
        %v4208 = vsub.s32 0, %v4207
        %v4209 = vrot.slane %v4204, %v4208
        %v4467 = vunpack.c.l.b16 %v3932
        %v4468 = vunpack.c.l.b16 %v3933
        %v4469 = vunpack.c.l.b16 %v3934
        %v4470 = vunpack.c.l.b16 %v3935
        %v4471 = vunpack.c.l.b16 %v3936
        %v4472 = vunpack.c.l.b16 %v3937
        %v4473 = vunpack.c.l.b16 %v3938
        %v4474 = vunpack.c.l.b16 %v3939
        %v4475 = vunpack.c.l.b16 %v3940
        %v4476 = vunpack.c.l.b16 %v3941
        %v4477 = vunpack.c.l.b16 %v3942
        %v4478 = vunpack.c.l.b16 %v3943
        %v4479 = vunpack.c.l.b16 %v3944
        %v4480 = vunpack.c.l.b16 %v3945
        %v4481 = vunpack.c.l.b16 %v3946
        %v4482 = vunpack.c.l.b16 %v3947
        %v4483 = vunpack.c.l.b16 %v3948
        %v4484 = vunpack.c.l.b16 %v3949
        %v4485 = vunpack.c.l.b16 %v3950
        %v4486 = vunpack.c.l.b16 %v3951
        %v4487 = vunpack.c.l.b16 %v3952
        %v4488 = vunpack.c.l.b16 %v3953
        %v4489 = vunpack.c.l.b16 %v3954
        %v4490 = vunpack.c.l.b16 %v3955
        %v4491 = vunpack.c.l.b16 %v3956
        %v4492 = vunpack.c.l.b16 %v3957
        %v4493 = vunpack.c.l.b16 %v3958
        %v4494 = vunpack.c.l.b16 %v3959
        %v4495 = vunpack.c.l.b16 %v3960
        %v4496 = vunpack.c.l.b16 %v3961
        %v4497 = vunpack.c.l.b16 %v3962
        %v4498 = vunpack.c.l.b16 %v3963
        %v4499 = vunpack.c.l.b16 %v3964
        %v4500 = vunpack.c.l.b16 %v3965
        %v4501 = vunpack.c.l.b16 %v3966
        %v4502 = vunpack.c.l.b16 %v3967
        %v4503 = vunpack.c.l.b16 %v3968
        %v4504 = vunpack.c.l.b16 %v3969
        %v4505 = vunpack.c.l.b16 %v3970
        %v4506 = vunpack.c.l.b16 %v3971
        %v4507 = vunpack.c.l.b16 %v3972
        %v4508 = vunpack.c.l.b16 %v3973
        %v4509 = vunpack.c.l.b16 %v3974
        %v4510 = vunpack.c.l.b16 %v3975
        %v4511 = vunpack.c.l.b16 %v3976
        %v4512 = vunpack.c.l.b16 %v3977
        %v4513 = vunpack.c.l.b16 %v3978
        %v4514 = vunpack.c.l.b16 %v3979
        %v4515 = vunpack.c.l.b16 %v3980
        %v4516 = vunpack.c.l.b16 %v3981
        %v4517 = vunpack.c.l.b16 %v3982
        %v4518 = vunpack.c.l.b16 %v3983
        %v4519 = vunpack.c.l.b16 %v3984
        %v4520 = vunpack.c.l.b16 %v3985
        %v4521 = vunpack.c.l.b16 %v3986
        %v4522 = vunpack.c.l.b16 %v3987
        %v4523 = vunpack.c.l.b16 %v3988
        %v4524 = vunpack.c.l.b16 %v3989
        %v4525 = vunpack.c.l.b16 %v3990
        %v4526 = vunpack.c.l.b16 %v3991
        %v4527 = vunpack.c.l.b16 %v3992
        %v4528 = vunpack.c.l.b16 %v3993
        %v4529 = vunpack.c.l.b16 %v3994
        %v4530 = vunpack.c.l.b16 %v3995
        %v4531 = vunpack.c.l.b16 %v3996
        %v4532 = vunpack.c.l.b16 %v3997
        %v4533 = vunpack.c.l.b16 %v3998
        %v4534 = vunpack.c.l.b16 %v3999
        %v4535 = vunpack.c.l.b16 %v4000
        %v4536 = vunpack.c.l.b16 %v4001
        %v4537 = vunpack.c.l.b16 %v4002
        %v4538 = vunpack.c.l.b16 %v4003
        %v4539 = vunpack.c.l.b16 %v4004
        %v4540 = vunpack.c.l.b16 %v4005
        %v4541 = vunpack.c.l.b16 %v4006
        %v4542 = vunpack.c.l.b16 %v4007
        %v4543 = vunpack.c.l.b16 %v4008
        %v4544 = vunpack.c.l.b16 %v4009
        %v4545 = vunpack.c.l.b16 %v4010
        %v4546 = vunpack.c.l.b16 %v4011
        %v4547 = vunpack.c.l.b16 %v4012
        %v4548 = vunpack.c.l.b16 %v4013
        %v4549 = vunpack.c.l.b16 %v4014
        %v4550 = vunpack.c.l.b16 %v4015
        %v4551 = vunpack.c.l.b16 %v4016
        %v4552 = vunpack.c.l.b16 %v4017
        %v4553 = vunpack.c.l.b16 %v4018
        %v4554 = vunpack.c.l.b16 %v4019
        %v4555 = vunpack.c.l.b16 %v4020
        %v4556 = vunpack.c.l.b16 %v4021
        %v4557 = vunpack.c.l.b16 %v4022
        %v4558 = vunpack.c.l.b16 %v4023
        %v4559 = vunpack.c.l.b16 %v4024
        %v4560 = vunpack.c.l.b16 %v4025
        %v4561 = vunpack.c.l.b16 %v4026
        %v4562 = vunpack.c.l.b16 %v4027
        %v4563 = vunpack.c.l.b16 %v4028
        %v4564 = vunpack.c.l.b16 %v4029
        %v4565 = vunpack.c.l.b16 %v4030
        %v4566 = vunpack.c.l.b16 %v4031
        %v4567 = vunpack.c.l.b16 %v4032
        %v4568 = vunpack.c.l.b16 %v4033
        %v4569 = vunpack.c.l.b16 %v4034
        %v4570 = vunpack.c.l.b16 %v4035
        %v4571 = vunpack.c.l.b16 %v4036
        %v4572 = vunpack.c.l.b16 %v4037
        %v4573 = vunpack.c.l.b16 %v4038
        %v4574 = vunpack.c.l.b16 %v4039
        %v4575 = vunpack.c.l.b16 %v4040
        %v4576 = vunpack.c.l.b16 %v4041
        %v4577 = vunpack.c.l.b16 %v4042
        %v4578 = vunpack.c.l.b16 %v4043
        %v4579 = vunpack.c.l.b16 %v4044
        %v4580 = vunpack.c.l.b16 %v4045
        %v4581 = vunpack.c.l.b16 %v4046
        %v4582 = vunpack.c.l.b16 %v4047
        %v4583 = vunpack.c.l.b16 %v4048
        %v4584 = vunpack.c.l.b16 %v4049
        %v4585 = vunpack.c.l.b16 %v4050
        %v4586 = vunpack.c.l.b16 %v4051
        %v4587 = vunpack.c.l.b16 %v4052
        %v4588 = vunpack.c.l.b16 %v4053
        %v4589 = vunpack.c.l.b16 %v4054
        %v4590 = vunpack.c.l.b16 %v4055
        %v4591 = vunpack.c.l.b16 %v4056
        %v4592 = vunpack.c.l.b16 %v4057
        %v4593 = vunpack.c.l.b16 %v4058
        %v4594 = vunpack.c.l.b16 %v4059
        %v4595 = vunpack.c.l.b16 %v4060
        %v4596 = vunpack.c.l.b16 %v4061
        %v4597 = vunpack.c.l.b16 %v4062
        %v4598 = vunpack.c.l.b16 %v4063
        %v4599 = vunpack.c.l.b16 %v4064
        %v4600 = vunpack.c.l.b16 %v4065
        %v4601 = vunpack.c.l.b16 %v4066
        %v4602 = vunpack.c.l.b16 %v4067
        %v4603 = vunpack.c.l.b16 %v4068
        %v4604 = vunpack.c.l.b16 %v4069
        %v4605 = vunpack.c.l.b16 %v4070
        %v4606 = vunpack.c.l.b16 %v4071
        %v4607 = vunpack.c.l.b16 %v4072
        %v4608 = vunpack.c.l.b16 %v4073
        %v4609 = vunpack.c.l.b16 %v4074
        %v4610 = vunpack.c.l.b16 %v4075
        %v4611 = vunpack.c.l.b16 %v4076
        %v4612 = vunpack.c.l.b16 %v4077
        %v4613 = vunpack.c.l.b16 %v4078
        %v4614 = vunpack.c.l.b16 %v4079
        %v4615 = vunpack.c.l.b16 %v4080
        %v4616 = vunpack.c.l.b16 %v4081
        %v4617 = vunpack.c.l.b16 %v4082
        %v4618 = vunpack.c.l.b16 %v4083
        %v4619 = vunpack.c.l.b16 %v4084
        %v4620 = vunpack.c.l.b16 %v4085
        %v4621 = vunpack.c.l.b16 %v4086
        %v4622 = vunpack.c.l.b16 %v4087
        %v4623 = vunpack.c.l.b16 %v4088
        %v4624 = vunpack.c.l.b16 %v4089
        %v4625 = vunpack.c.l.b16 %v4090
        %v4626 = vunpack.c.l.b16 %v4091
        %v4627 = vunpack.c.l.b16 %v4092
        %v4628 = vunpack.c.l.b16 %v4093
        %v4629 = vunpack.c.l.b16 %v4094
        %v4630 = vunpack.c.l.b16 %v4095
        %v4631 = vunpack.c.l.b16 %v4096
        %v4632 = vunpack.c.l.b16 %v4097
        %v4633 = vunpack.c.l.b16 %v4098
        %v4634 = vunpack.c.l.b16 %v4099
        %v4635 = vunpack.c.l.b16 %v4100
        %v4636 = vunpack.c.l.b16 %v4101
        %v4637 = vunpack.c.l.b16 %v4102
        %v4638 = vunpack.c.l.b16 %v4103
        %v4639 = vunpack.c.l.b16 %v4104
        %v4640 = vunpack.c.l.b16 %v4105
        %v4641 = vunpack.c.l.b16 %v4106
        %v4642 = vunpack.c.l.b16 %v4107
        %v4643 = vunpack.c.l.b16 %v4108
        %v4644 = vunpack.c.l.b16 %v4109
        %v4645 = vunpack.c.l.b16 %v4110
        %v4646 = vunpack.c.l.b16 %v4111
        %v4647 = vunpack.c.l.b16 %v4112
        %v4648 = vunpack.c.l.b16 %v4113
        %v4649 = vunpack.c.l.b16 %v4114
        %v4650 = vunpack.c.l.b16 %v4115
        %v4651 = vunpack.c.l.b16 %v4116
        %v4652 = vunpack.c.l.b16 %v4117
        %v4653 = vunpack.c.l.b16 %v4118
        %v4654 = vunpack.c.l.b16 %v4119
        %v4655 = vunpack.c.l.b16 %v4120
        %v4656 = vunpack.c.l.b16 %v4121
        %v4657 = vunpack.c.l.b16 %v4122
        %v4658 = vunpack.c.l.b16 %v4123
        %v4659 = vunpack.c.l.b16 %v4124
        %v4660 = vunpack.c.l.b16 %v4125
        %v4661 = vunpack.c.l.b16 %v4126
        %v4662 = vunpack.c.l.b16 %v4127
        %v4663 = vunpack.c.l.b16 %v4128
        %v4664 = vunpack.c.l.b16 %v4129
        %v4665 = vunpack.c.l.b16 %v4130
        %v4666 = vunpack.c.l.b16 %v4131
        %v4667 = vunpack.c.l.b16 %v4132
        %v4668 = vunpack.c.l.b16 %v4133
        %v4669 = vunpack.c.l.b16 %v4134
        %v4670 = vunpack.c.l.b16 %v4135
        %v4671 = vunpack.c.l.b16 %v4136
        %v4672 = vunpack.c.l.b16 %v4137
        %v4673 = vunpack.c.l.b16 %v4138
        %v4674 = vunpack.c.l.b16 %v4139
        %v4675 = vunpack.c.l.b16 %v4140
        %v4676 = vunpack.c.l.b16 %v4141
        %v4677 = vunpack.c.l.b16 %v4142
        %v4678 = vunpack.c.l.b16 %v4143
        %v4679 = vunpack.c.l.b16 %v4144
        %v4680 = vunpack.c.l.b16 %v4145
        %v4681 = vunpack.c.l.b16 %v4146
        %v4682 = vunpack.c.l.b16 %v4147
        %v4683 = vunpack.c.l.b16 %v4148
        %v4684 = vunpack.c.l.b16 %v4149
        %v4685 = vunpack.c.l.b16 %v4150
        %v4686 = vunpack.c.l.b16 %v4151
        %v4687 = vunpack.c.l.b16 %v4152
        %v4688 = vunpack.c.l.b16 %v4153
        %v4689 = vunpack.c.l.b16 %v4154
        %v4690 = vunpack.c.l.b16 %v4155
        %v4691 = vunpack.c.l.b16 %v4156
        %v4692 = vunpack.c.l.b16 %v4157
        %v4693 = vunpack.c.l.b16 %v4158
        %v4694 = vunpack.c.l.b16 %v4159
        %v4695 = vunpack.c.l.b16 %v4160
        %v4696 = vunpack.c.l.b16 %v4161
        %v4697 = vunpack.c.l.b16 %v4162
        %v4698 = vunpack.c.l.b16 %v4163
        %v4699 = vunpack.c.l.b16 %v4164
        %v4700 = vunpack.c.l.b16 %v4165
        %v4701 = vunpack.c.l.b16 %v4166
        %v4702 = vunpack.c.l.b16 %v4167
        %v4703 = vunpack.c.l.b16 %v4168
        %v4704 = vunpack.c.l.b16 %v4169
        %v4705 = vunpack.c.l.b16 %v4170
        %v4706 = vunpack.c.l.b16 %v4171
        %v4707 = vunpack.c.l.b16 %v4172
        %v4708 = vunpack.c.l.b16 %v4173
        %v4709 = vunpack.c.l.b16 %v4174
        %v4710 = vunpack.c.l.b16 %v4175
        %v4711 = vunpack.c.l.b16 %v4176
        %v4712 = vunpack.c.l.b16 %v4177
        %v4713 = vunpack.c.l.b16 %v4178
        %v4714 = vunpack.c.l.b16 %v4179
        %v4715 = vunpack.c.l.b16 %v4180
        %v4716 = vunpack.c.l.b16 %v4181
        %v4717 = vunpack.c.l.b16 %v4182
        %v4718 = vunpack.c.l.b16 %v4183
        %v4719 = vunpack.c.l.b16 %v4184
        %v4720 = vunpack.c.l.b16 %v4185
        %v4721 = vunpack.c.l.b16 %v4186
        %v4722 = vunpack.c.l.b16 %v4187
        %v4723 = vpack.c.b16 %v4468, %v4467
        %v4724 = vpack.c.b16 %v4470, %v4469
        %v4725 = vpack.c.b16 %v4472, %v4471
        %v4726 = vpack.c.b16 %v4474, %v4473
        %v4727 = vpack.c.b16 %v4476, %v4475
        %v4728 = vpack.c.b16 %v4478, %v4477
        %v4729 = vpack.c.b16 %v4480, %v4479
        %v4730 = vpack.c.b16 %v4482, %v4481
        %v4731 = vpack.c.b16 %v4484, %v4483
        %v4732 = vpack.c.b16 %v4486, %v4485
        %v4733 = vpack.c.b16 %v4488, %v4487
        %v4734 = vpack.c.b16 %v4490, %v4489
        %v4735 = vpack.c.b16 %v4492, %v4491
        %v4736 = vpack.c.b16 %v4494, %v4493
        %v4737 = vpack.c.b16 %v4496, %v4495
        %v4738 = vpack.c.b16 %v4498, %v4497
        %v4739 = vpack.c.b16 %v4500, %v4499
        %v4740 = vpack.c.b16 %v4502, %v4501
        %v4741 = vpack.c.b16 %v4504, %v4503
        %v4742 = vpack.c.b16 %v4506, %v4505
        %v4743 = vpack.c.b16 %v4508, %v4507
        %v4744 = vpack.c.b16 %v4510, %v4509
        %v4745 = vpack.c.b16 %v4512, %v4511
        %v4746 = vpack.c.b16 %v4514, %v4513
        %v4747 = vpack.c.b16 %v4516, %v4515
        %v4748 = vpack.c.b16 %v4518, %v4517
        %v4749 = vpack.c.b16 %v4520, %v4519
        %v4750 = vpack.c.b16 %v4522, %v4521
        %v4751 = vpack.c.b16 %v4524, %v4523
        %v4752 = vpack.c.b16 %v4526, %v4525
        %v4753 = vpack.c.b16 %v4528, %v4527
        %v4754 = vpack.c.b16 %v4530, %v4529
        %v4755 = vpack.c.b16 %v4532, %v4531
        %v4756 = vpack.c.b16 %v4534, %v4533
        %v4757 = vpack.c.b16 %v4536, %v4535
        %v4758 = vpack.c.b16 %v4538, %v4537
        %v4759 = vpack.c.b16 %v4540, %v4539
        %v4760 = vpack.c.b16 %v4542, %v4541
        %v4761 = vpack.c.b16 %v4544, %v4543
        %v4762 = vpack.c.b16 %v4546, %v4545
        %v4763 = vpack.c.b16 %v4548, %v4547
        %v4764 = vpack.c.b16 %v4550, %v4549
        %v4765 = vpack.c.b16 %v4552, %v4551
        %v4766 = vpack.c.b16 %v4554, %v4553
        %v4767 = vpack.c.b16 %v4556, %v4555
        %v4768 = vpack.c.b16 %v4558, %v4557
        %v4769 = vpack.c.b16 %v4560, %v4559
        %v4770 = vpack.c.b16 %v4562, %v4561
        %v4771 = vpack.c.b16 %v4564, %v4563
        %v4772 = vpack.c.b16 %v4566, %v4565
        %v4773 = vpack.c.b16 %v4568, %v4567
        %v4774 = vpack.c.b16 %v4570, %v4569
        %v4775 = vpack.c.b16 %v4572, %v4571
        %v4776 = vpack.c.b16 %v4574, %v4573
        %v4777 = vpack.c.b16 %v4576, %v4575
        %v4778 = vpack.c.b16 %v4578, %v4577
        %v4779 = vpack.c.b16 %v4580, %v4579
        %v4780 = vpack.c.b16 %v4582, %v4581
        %v4781 = vpack.c.b16 %v4584, %v4583
        %v4782 = vpack.c.b16 %v4586, %v4585
        %v4783 = vpack.c.b16 %v4588, %v4587
        %v4784 = vpack.c.b16 %v4590, %v4589
        %v4785 = vpack.c.b16 %v4592, %v4591
        %v4786 = vpack.c.b16 %v4594, %v4593
        %v4787 = vpack.c.b16 %v4596, %v4595
        %v4788 = vpack.c.b16 %v4598, %v4597
        %v4789 = vpack.c.b16 %v4600, %v4599
        %v4790 = vpack.c.b16 %v4602, %v4601
        %v4791 = vpack.c.b16 %v4604, %v4603
        %v4792 = vpack.c.b16 %v4606, %v4605
        %v4793 = vpack.c.b16 %v4608, %v4607
        %v4794 = vpack.c.b16 %v4610, %v4609
        %v4795 = vpack.c.b16 %v4612, %v4611
        %v4796 = vpack.c.b16 %v4614, %v4613
        %v4797 = vpack.c.b16 %v4616, %v4615
        %v4798 = vpack.c.b16 %v4618, %v4617
        %v4799 = vpack.c.b16 %v4620, %v4619
        %v4800 = vpack.c.b16 %v4622, %v4621
        %v4801 = vpack.c.b16 %v4624, %v4623
        %v4802 = vpack.c.b16 %v4626, %v4625
        %v4803 = vpack.c.b16 %v4628, %v4627
        %v4804 = vpack.c.b16 %v4630, %v4629
        %v4805 = vpack.c.b16 %v4632, %v4631
        %v4806 = vpack.c.b16 %v4634, %v4633
        %v4807 = vpack.c.b16 %v4636, %v4635
        %v4808 = vpack.c.b16 %v4638, %v4637
        %v4809 = vpack.c.b16 %v4640, %v4639
        %v4810 = vpack.c.b16 %v4642, %v4641
        %v4811 = vpack.c.b16 %v4644, %v4643
        %v4812 = vpack.c.b16 %v4646, %v4645
        %v4813 = vpack.c.b16 %v4648, %v4647
        %v4814 = vpack.c.b16 %v4650, %v4649
        %v4815 = vpack.c.b16 %v4652, %v4651
        %v4816 = vpack.c.b16 %v4654, %v4653
        %v4817 = vpack.c.b16 %v4656, %v4655
        %v4818 = vpack.c.b16 %v4658, %v4657
        %v4819 = vpack.c.b16 %v4660, %v4659
        %v4820 = vpack.c.b16 %v4662, %v4661
        %v4821 = vpack.c.b16 %v4664, %v4663
        %v4822 = vpack.c.b16 %v4666, %v4665
        %v4823 = vpack.c.b16 %v4668, %v4667
        %v4824 = vpack.c.b16 %v4670, %v4669
        %v4825 = vpack.c.b16 %v4672, %v4671
        %v4826 = vpack.c.b16 %v4674, %v4673
        %v4827 = vpack.c.b16 %v4676, %v4675
        %v4828 = vpack.c.b16 %v4678, %v4677
        %v4829 = vpack.c.b16 %v4680, %v4679
        %v4830 = vpack.c.b16 %v4682, %v4681
        %v4831 = vpack.c.b16 %v4684, %v4683
        %v4832 = vpack.c.b16 %v4686, %v4685
        %v4833 = vpack.c.b16 %v4688, %v4687
        %v4834 = vpack.c.b16 %v4690, %v4689
        %v4835 = vpack.c.b16 %v4692, %v4691
        %v4836 = vpack.c.b16 %v4694, %v4693
        %v4837 = vpack.c.b16 %v4696, %v4695
        %v4838 = vpack.c.b16 %v4698, %v4697
        %v4839 = vpack.c.b16 %v4700, %v4699
        %v4840 = vpack.c.b16 %v4702, %v4701
        %v4841 = vpack.c.b16 %v4704, %v4703
        %v4842 = vpack.c.b16 %v4706, %v4705
        %v4843 = vpack.c.b16 %v4708, %v4707
        %v4844 = vpack.c.b16 %v4710, %v4709
        %v4845 = vpack.c.b16 %v4712, %v4711
        %v4846 = vpack.c.b16 %v4714, %v4713
        %v4847 = vpack.c.b16 %v4716, %v4715
        %v4848 = vpack.c.b16 %v4718, %v4717
        %v4849 = vpack.c.b16 %v4720, %v4719
        %v4850 = vpack.c.b16 %v4722, %v4721
        %4979 = vmatprep.subr.bf16.mxu0 0
        %4980 = vmatpush1.bf16.msra.mxu0 %v4723
        %4981 = vmatprep.subr.bf16.mxu0 0
        %4982 = vmatpush1.bf16.msra.mxu0 %v4724
        %4983 = vmatprep.subr.bf16.mxu0 0
        %4984 = vmatpush1.bf16.msra.mxu0 %v4725
        %4985 = vmatprep.subr.bf16.mxu0 0
        %4986 = vmatpush1.bf16.msra.mxu0 %v4726
        %4987 = vmatprep.subr.bf16.mxu0 0
        %4988 = vmatpush1.bf16.msra.mxu0 %v4727
        %4989 = vmatprep.subr.bf16.mxu0 0
        %4990 = vmatpush1.bf16.msra.mxu0 %v4728
        %4991 = vmatprep.subr.bf16.mxu0 0
        %4992 = vmatpush1.bf16.msra.mxu0 %v4729
        %4993 = vmatprep.subr.bf16.mxu0 0
        %4994 = vmatpush1.bf16.msra.mxu0 %v4730
        %4995 = vmatprep.subr.bf16.mxu0 0
        %4996 = vmatpush1.bf16.msra.mxu0 %v4731
        %4997 = vmatprep.subr.bf16.mxu0 0
        %4998 = vmatpush1.bf16.msra.mxu0 %v4732
        %4999 = vmatprep.subr.bf16.mxu0 0
        %5000 = vmatpush1.bf16.msra.mxu0 %v4733
        %5001 = vmatprep.subr.bf16.mxu0 0
        %5002 = vmatpush1.bf16.msra.mxu0 %v4734
        %5003 = vmatprep.subr.bf16.mxu0 0
        %5004 = vmatpush1.bf16.msra.mxu0 %v4735
        %5005 = vmatprep.subr.bf16.mxu0 0
        %5006 = vmatpush1.bf16.msra.mxu0 %v4736
        %5007 = vmatprep.subr.bf16.mxu0 0
        %5008 = vmatpush1.bf16.msra.mxu0 %v4737
        %5009 = vmatprep.subr.bf16.mxu0 0
        %5010 = vmatpush1.bf16.msra.mxu0 %v4738
        %5011 = vmatprep.mubr.bf16.mxu0 %v4189
        %5012 = vmatmul.mubr.bf16.gmra.mrb[0].mxu0 %v4188
        %v5013 = vpop.f32.mrb[0].mxu0
        %v5014 = vadd.f32 %v4209, %v5013
        %v5015 = vpop.f32.mrb[0].mxu0
        %v5016 = vpop.f32.mrb[0].mxu0
        %v5017 = vadd.f32 %v4209, %v5016
        %v5018 = vpop.f32.mrb[0].mxu0
        %5019 = vdwg.mxu0
        %5020 = vmatprep.subr.bf16.mxu0 0
        %5021 = vmatpush1.bf16.msra.mxu0 %v4739
        %5022 = vmatprep.subr.bf16.mxu0 0
        %5023 = vmatpush1.bf16.msra.mxu0 %v4740
        %5024 = vmatprep.subr.bf16.mxu0 0
        %5025 = vmatpush1.bf16.msra.mxu0 %v4741
        %5026 = vmatprep.subr.bf16.mxu0 0
        %5027 = vmatpush1.bf16.msra.mxu0 %v4742
        %5028 = vmatprep.subr.bf16.mxu0 0
        %5029 = vmatpush1.bf16.msra.mxu0 %v4743
        %5030 = vmatprep.subr.bf16.mxu0 0
        %5031 = vmatpush1.bf16.msra.mxu0 %v4744
        %5032 = vmatprep.subr.bf16.mxu0 0
        %5033 = vmatpush1.bf16.msra.mxu0 %v4745
        %5034 = vmatprep.subr.bf16.mxu0 0
        %5035 = vmatpush1.bf16.msra.mxu0 %v4746
        %5036 = vmatprep.subr.bf16.mxu0 0
        %5037 = vmatpush1.bf16.msra.mxu0 %v4747
        %5038 = vmatprep.subr.bf16.mxu0 0
        %5039 = vmatpush1.bf16.msra.mxu0 %v4748
        %5040 = vmatprep.subr.bf16.mxu0 0
        %5041 = vmatpush1.bf16.msra.mxu0 %v4749
        %5042 = vmatprep.subr.bf16.mxu0 0
        %5043 = vmatpush1.bf16.msra.mxu0 %v4750
        %5044 = vmatprep.subr.bf16.mxu0 0
        %5045 = vmatpush1.bf16.msra.mxu0 %v4751
        %5046 = vmatprep.subr.bf16.mxu0 0
        %5047 = vmatpush1.bf16.msra.mxu0 %v4752
        %5048 = vmatprep.subr.bf16.mxu0 0
        %5049 = vmatpush1.bf16.msra.mxu0 %v4753
        %5050 = vmatprep.subr.bf16.mxu0 0
        %5051 = vmatpush1.bf16.msra.mxu0 %v4754
        %5052 = vmatprep.mubr.bf16.mxu0 %v4191
        %5053 = vmatmul.mubr.bf16.gmra.mrb[0].mxu0 %v4190
        %v5054 = vpop.f32.mrb[0].mxu0
        %v5055 = vadd.f32 %v5014, %v5054
        %v5056 = vpop.f32.mrb[0].mxu0
        %v5057 = vpop.f32.mrb[0].mxu0
        %v5058 = vadd.f32 %v5017, %v5057
        %v5059 = vpop.f32.mrb[0].mxu0
        %5060 = vdwg.mxu0
        %5061 = vmatprep.subr.bf16.mxu0 0
        %5062 = vmatpush1.bf16.msra.mxu0 %v4755
        %5063 = vmatprep.subr.bf16.mxu0 0
        %5064 = vmatpush1.bf16.msra.mxu0 %v4756
        %5065 = vmatprep.subr.bf16.mxu0 0
        %5066 = vmatpush1.bf16.msra.mxu0 %v4757
        %5067 = vmatprep.subr.bf16.mxu0 0
        %5068 = vmatpush1.bf16.msra.mxu0 %v4758
        %5069 = vmatprep.subr.bf16.mxu0 0
        %5070 = vmatpush1.bf16.msra.mxu0 %v4759
        %5071 = vmatprep.subr.bf16.mxu0 0
        %5072 = vmatpush1.bf16.msra.mxu0 %v4760
        %5073 = vmatprep.subr.bf16.mxu0 0
        %5074 = vmatpush1.bf16.msra.mxu0 %v4761
        %5075 = vmatprep.subr.bf16.mxu0 0
        %5076 = vmatpush1.bf16.msra.mxu0 %v4762
        %5077 = vmatprep.subr.bf16.mxu0 0
        %5078 = vmatpush1.bf16.msra.mxu0 %v4763
        %5079 = vmatprep.subr.bf16.mxu0 0
        %5080 = vmatpush1.bf16.msra.mxu0 %v4764
        %5081 = vmatprep.subr.bf16.mxu0 0
        %5082 = vmatpush1.bf16.msra.mxu0 %v4765
        %5083 = vmatprep.subr.bf16.mxu0 0
        %5084 = vmatpush1.bf16.msra.mxu0 %v4766
        %5085 = vmatprep.subr.bf16.mxu0 0
        %5086 = vmatpush1.bf16.msra.mxu0 %v4767
        %5087 = vmatprep.subr.bf16.mxu0 0
        %5088 = vmatpush1.bf16.msra.mxu0 %v4768
        %5089 = vmatprep.subr.bf16.mxu0 0
        %5090 = vmatpush1.bf16.msra.mxu0 %v4769
        %5091 = vmatprep.subr.bf16.mxu0 0
        %5092 = vmatpush1.bf16.msra.mxu0 %v4770
        %5093 = vmatprep.mubr.bf16.mxu0 %v4193
        %5094 = vmatmul.mubr.bf16.gmra.mrb[0].mxu0 %v4192
        %v5095 = vpop.f32.mrb[0].mxu0
        %v5096 = vadd.f32 %v5055, %v5095
        %v5097 = vpop.f32.mrb[0].mxu0
        %v5098 = vpop.f32.mrb[0].mxu0
        %v5099 = vadd.f32 %v5058, %v5098
        %v5100 = vpop.f32.mrb[0].mxu0
        %5101 = vdwg.mxu0
        %5102 = vmatprep.subr.bf16.mxu0 0
        %5103 = vmatpush1.bf16.msra.mxu0 %v4771
        %5104 = vmatprep.subr.bf16.mxu0 0
        %5105 = vmatpush1.bf16.msra.mxu0 %v4772
        %5106 = vmatprep.subr.bf16.mxu0 0
        %5107 = vmatpush1.bf16.msra.mxu0 %v4773
        %5108 = vmatprep.subr.bf16.mxu0 0
        %5109 = vmatpush1.bf16.msra.mxu0 %v4774
        %5110 = vmatprep.subr.bf16.mxu0 0
        %5111 = vmatpush1.bf16.msra.mxu0 %v4775
        %5112 = vmatprep.subr.bf16.mxu0 0
        %5113 = vmatpush1.bf16.msra.mxu0 %v4776
        %5114 = vmatprep.subr.bf16.mxu0 0
        %5115 = vmatpush1.bf16.msra.mxu0 %v4777
        %5116 = vmatprep.subr.bf16.mxu0 0
        %5117 = vmatpush1.bf16.msra.mxu0 %v4778
        %5118 = vmatprep.subr.bf16.mxu0 0
        %5119 = vmatpush1.bf16.msra.mxu0 %v4779
        %5120 = vmatprep.subr.bf16.mxu0 0
        %5121 = vmatpush1.bf16.msra.mxu0 %v4780
        %5122 = vmatprep.subr.bf16.mxu0 0
        %5123 = vmatpush1.bf16.msra.mxu0 %v4781
        %5124 = vmatprep.subr.bf16.mxu0 0
        %5125 = vmatpush1.bf16.msra.mxu0 %v4782
        %5126 = vmatprep.subr.bf16.mxu0 0
        %5127 = vmatpush1.bf16.msra.mxu0 %v4783
        %5128 = vmatprep.subr.bf16.mxu0 0
        %5129 = vmatpush1.bf16.msra.mxu0 %v4784
        %5130 = vmatprep.subr.bf16.mxu0 0
        %5131 = vmatpush1.bf16.msra.mxu0 %v4785
        %5132 = vmatprep.subr.bf16.mxu0 0
        %5133 = vmatpush1.bf16.msra.mxu0 %v4786
        %5134 = vmatprep.mubr.bf16.mxu0 %v4195
        %5135 = vmatmul.mubr.bf16.gmra.mrb[0].mxu0 %v4194
        %v5136 = vpop.f32.mrb[0].mxu0
        %v5137 = vadd.f32 %v5096, %v5136
        %v5138 = vpop.f32.mrb[0].mxu0
        %v5139 = vpop.f32.mrb[0].mxu0
        %v5140 = vadd.f32 %v5099, %v5139
        %v5141 = vpop.f32.mrb[0].mxu0
        %5142 = vdwg.mxu0
        %5143 = vmatprep.subr.bf16.mxu0 0
        %5144 = vmatpush1.bf16.msra.mxu0 %v4787
        %5145 = vmatprep.subr.bf16.mxu0 0
        %5146 = vmatpush1.bf16.msra.mxu0 %v4788
        %5147 = vmatprep.subr.bf16.mxu0 0
        %5148 = vmatpush1.bf16.msra.mxu0 %v4789
        %5149 = vmatprep.subr.bf16.mxu0 0
        %5150 = vmatpush1.bf16.msra.mxu0 %v4790
        %5151 = vmatprep.subr.bf16.mxu0 0
        %5152 = vmatpush1.bf16.msra.mxu0 %v4791
        %5153 = vmatprep.subr.bf16.mxu0 0
        %5154 = vmatpush1.bf16.msra.mxu0 %v4792
        %5155 = vmatprep.subr.bf16.mxu0 0
        %5156 = vmatpush1.bf16.msra.mxu0 %v4793
        %5157 = vmatprep.subr.bf16.mxu0 0
        %5158 = vmatpush1.bf16.msra.mxu0 %v4794
        %5159 = vmatprep.subr.bf16.mxu0 0
        %5160 = vmatpush1.bf16.msra.mxu0 %v4795
        %5161 = vmatprep.subr.bf16.mxu0 0
        %5162 = vmatpush1.bf16.msra.mxu0 %v4796
        %5163 = vmatprep.subr.bf16.mxu0 0
        %5164 = vmatpush1.bf16.msra.mxu0 %v4797
        %5165 = vmatprep.subr.bf16.mxu0 0
        %5166 = vmatpush1.bf16.msra.mxu0 %v4798
        %5167 = vmatprep.subr.bf16.mxu0 0
        %5168 = vmatpush1.bf16.msra.mxu0 %v4799
        %5169 = vmatprep.subr.bf16.mxu0 0
        %5170 = vmatpush1.bf16.msra.mxu0 %v4800
        %5171 = vmatprep.subr.bf16.mxu0 0
        %5172 = vmatpush1.bf16.msra.mxu0 %v4801
        %5173 = vmatprep.subr.bf16.mxu0 0
        %5174 = vmatpush1.bf16.msra.mxu0 %v4802
        %5175 = vmatprep.mubr.bf16.mxu0 %v4197
        %5176 = vmatmul.mubr.bf16.gmra.mrb[0].mxu0 %v4196
        %v5177 = vpop.f32.mrb[0].mxu0
        %v5178 = vadd.f32 %v5137, %v5177
        %v5179 = vpop.f32.mrb[0].mxu0
        %v5180 = vpop.f32.mrb[0].mxu0
        %v5181 = vadd.f32 %v5140, %v5180
        %v5182 = vpop.f32.mrb[0].mxu0
        %5183 = vdwg.mxu0
        %5184 = vmatprep.subr.bf16.mxu0 0
        %5185 = vmatpush1.bf16.msra.mxu0 %v4803
        %5186 = vmatprep.subr.bf16.mxu0 0
        %5187 = vmatpush1.bf16.msra.mxu0 %v4804
        %5188 = vmatprep.subr.bf16.mxu0 0
        %5189 = vmatpush1.bf16.msra.mxu0 %v4805
        %5190 = vmatprep.subr.bf16.mxu0 0
        %5191 = vmatpush1.bf16.msra.mxu0 %v4806
        %5192 = vmatprep.subr.bf16.mxu0 0
        %5193 = vmatpush1.bf16.msra.mxu0 %v4807
        %5194 = vmatprep.subr.bf16.mxu0 0
        %5195 = vmatpush1.bf16.msra.mxu0 %v4808
        %5196 = vmatprep.subr.bf16.mxu0 0
        %5197 = vmatpush1.bf16.msra.mxu0 %v4809
        %5198 = vmatprep.subr.bf16.mxu0 0
        %5199 = vmatpush1.bf16.msra.mxu0 %v4810
        %5200 = vmatprep.subr.bf16.mxu0 0
        %5201 = vmatpush1.bf16.msra.mxu0 %v4811
        %5202 = vmatprep.subr.bf16.mxu0 0
        %5203 = vmatpush1.bf16.msra.mxu0 %v4812
        %5204 = vmatprep.subr.bf16.mxu0 0
        %5205 = vmatpush1.bf16.msra.mxu0 %v4813
        %5206 = vmatprep.subr.bf16.mxu0 0
        %5207 = vmatpush1.bf16.msra.mxu0 %v4814
        %5208 = vmatprep.subr.bf16.mxu0 0
        %5209 = vmatpush1.bf16.msra.mxu0 %v4815
        %5210 = vmatprep.subr.bf16.mxu0 0
        %5211 = vmatpush1.bf16.msra.mxu0 %v4816
        %5212 = vmatprep.subr.bf16.mxu0 0
        %5213 = vmatpush1.bf16.msra.mxu0 %v4817
        %5214 = vmatprep.subr.bf16.mxu0 0
        %5215 = vmatpush1.bf16.msra.mxu0 %v4818
        %5216 = vmatprep.mubr.bf16.mxu0 %v4199
        %5217 = vmatmul.mubr.bf16.gmra.mrb[0].mxu0 %v4198
        %v5218 = vpop.f32.mrb[0].mxu0
        %v5219 = vadd.f32 %v5178, %v5218
        %v5220 = vpop.f32.mrb[0].mxu0
        %v5221 = vpop.f32.mrb[0].mxu0
        %v5222 = vadd.f32 %v5181, %v5221
        %v5223 = vpop.f32.mrb[0].mxu0
        %5224 = vdwg.mxu0
        %5225 = vmatprep.subr.bf16.mxu0 0
        %5226 = vmatpush1.bf16.msra.mxu0 %v4819
        %5227 = vmatprep.subr.bf16.mxu0 0
        %5228 = vmatpush1.bf16.msra.mxu0 %v4820
        %5229 = vmatprep.subr.bf16.mxu0 0
        %5230 = vmatpush1.bf16.msra.mxu0 %v4821
        %5231 = vmatprep.subr.bf16.mxu0 0
        %5232 = vmatpush1.bf16.msra.mxu0 %v4822
        %5233 = vmatprep.subr.bf16.mxu0 0
        %5234 = vmatpush1.bf16.msra.mxu0 %v4823
        %5235 = vmatprep.subr.bf16.mxu0 0
        %5236 = vmatpush1.bf16.msra.mxu0 %v4824
        %5237 = vmatprep.subr.bf16.mxu0 0
        %5238 = vmatpush1.bf16.msra.mxu0 %v4825
        %5239 = vmatprep.subr.bf16.mxu0 0
        %5240 = vmatpush1.bf16.msra.mxu0 %v4826
        %5241 = vmatprep.subr.bf16.mxu0 0
        %5242 = vmatpush1.bf16.msra.mxu0 %v4827
        %5243 = vmatprep.subr.bf16.mxu0 0
        %5244 = vmatpush1.bf16.msra.mxu0 %v4828
        %5245 = vmatprep.subr.bf16.mxu0 0
        %5246 = vmatpush1.bf16.msra.mxu0 %v4829
        %5247 = vmatprep.subr.bf16.mxu0 0
        %5248 = vmatpush1.bf16.msra.mxu0 %v4830
        %5249 = vmatprep.subr.bf16.mxu0 0
        %5250 = vmatpush1.bf16.msra.mxu0 %v4831
        %5251 = vmatprep.subr.bf16.mxu0 0
        %5252 = vmatpush1.bf16.msra.mxu0 %v4832
        %5253 = vmatprep.subr.bf16.mxu0 0
        %5254 = vmatpush1.bf16.msra.mxu0 %v4833
        %5255 = vmatprep.subr.bf16.mxu0 0
        %5256 = vmatpush1.bf16.msra.mxu0 %v4834
        %5257 = vmatprep.mubr.bf16.mxu0 %v4201
        %5258 = vmatmul.mubr.bf16.gmra.mrb[0].mxu0 %v4200
        %v5259 = vpop.f32.mrb[0].mxu0
        %v5260 = vadd.f32 %v5219, %v5259
        %v5261 = vpop.f32.mrb[0].mxu0
        %v5262 = vpop.f32.mrb[0].mxu0
        %v5263 = vadd.f32 %v5222, %v5262
        %v5264 = vpop.f32.mrb[0].mxu0
        %5265 = vdwg.mxu0
        %5266 = vmatprep.subr.bf16.mxu0 0
        %5267 = vmatpush1.bf16.msra.mxu0 %v4835
        %5268 = vmatprep.subr.bf16.mxu0 0
        %5269 = vmatpush1.bf16.msra.mxu0 %v4836
        %5270 = vmatprep.subr.bf16.mxu0 0
        %5271 = vmatpush1.bf16.msra.mxu0 %v4837
        %5272 = vmatprep.subr.bf16.mxu0 0
        %5273 = vmatpush1.bf16.msra.mxu0 %v4838
        %5274 = vmatprep.subr.bf16.mxu0 0
        %5275 = vmatpush1.bf16.msra.mxu0 %v4839
        %5276 = vmatprep.subr.bf16.mxu0 0
        %5277 = vmatpush1.bf16.msra.mxu0 %v4840
        %5278 = vmatprep.subr.bf16.mxu0 0
        %5279 = vmatpush1.bf16.msra.mxu0 %v4841
        %5280 = vmatprep.subr.bf16.mxu0 0
        %5281 = vmatpush1.bf16.msra.mxu0 %v4842
        %5282 = vmatprep.subr.bf16.mxu0 0
        %5283 = vmatpush1.bf16.msra.mxu0 %v4843
        %5284 = vmatprep.subr.bf16.mxu0 0
        %5285 = vmatpush1.bf16.msra.mxu0 %v4844
        %5286 = vmatprep.subr.bf16.mxu0 0
        %5287 = vmatpush1.bf16.msra.mxu0 %v4845
        %5288 = vmatprep.subr.bf16.mxu0 0
        %5289 = vmatpush1.bf16.msra.mxu0 %v4846
        %5290 = vmatprep.subr.bf16.mxu0 0
        %5291 = vmatpush1.bf16.msra.mxu0 %v4847
        %5292 = vmatprep.subr.bf16.mxu0 0
        %5293 = vmatpush1.bf16.msra.mxu0 %v4848
        %5294 = vmatprep.subr.bf16.mxu0 0
        %5295 = vmatpush1.bf16.msra.mxu0 %v4849
        %5296 = vmatprep.subr.bf16.mxu0 0
        %5297 = vmatpush1.bf16.msra.mxu0 %v4850
        %5298 = vmatprep.mubr.bf16.mxu0 %v4203
        %5299 = vmatmul.mubr.bf16.gmra.mrb[0].mxu0 %v4202
        %v5300 = vpop.f32.mrb[0].mxu0
        %v5301 = vadd.f32 %v5260, %v5300
        %v5302 = vpop.f32.mrb[0].mxu0
        %v5303 = vpop.f32.mrb[0].mxu0
        %v5304 = vadd.f32 %v5263, %v5303
        %v5305 = vpop.f32.mrb[0].mxu0
        %5306 = vdwg.mxu0
        %v5307 = vadd.f32 %v3274, %v5301
        %v5308 = vadd.f32 %v3275, %v5304
        %v5309 = vld [vmem:[%s981] sm:$0x1]
        %v5310 = vld [vmem:[%s984] sm:$0x1]
        %v5311 = vsel %vm1038, %v5307, 0.0
        %5312 = vadd.xlane.f32.xlu0 %v5311
        %v5313 = vpop.xlane.xlu0 %5312
        %v5314 = vsel %vm1038, %v5308, 0.0
        %5315 = vadd.xlane.f32.xlu0 %v5314
        %v5316 = vpop.xlane.xlu0 %5315
        %v5317 = vmul.f32 %v5313, %v2081
        %v5318 = vmul.f32 %v5316, %v2081
        %v5319 = vsub.f32 %v5307, %v5317
        %v5320 = vsub.f32 %v5308, %v5318
        %v5321 = vmul.f32 %v5319, %v5319
        %v5322 = vmul.f32 %v5320, %v5320
        %v5323 = vsel %vm1038, %v5321, 0.0
        %5324 = vadd.xlane.f32.xlu0 %v5323
        %v5325 = vpop.xlane.xlu0 %5324
        %v5326 = vsel %vm1038, %v5322, 0.0
        %5327 = vadd.xlane.f32.xlu0 %v5326
        %v5328 = vpop.xlane.xlu0 %5327
        %v5329 = vmul.f32 %v5325, %v2081
        %v5330 = vmul.f32 %v5328, %v2081
        %v5331 = vadd.f32 %v5329, 1e-05
        %v5332 = vadd.f32 %v5330, 1e-05
        %v5333 = vrsqrt.pop %v5331
        %v5334 = vrsqrt.pop %v5332
        %v5335 = vmul.f32 %v5319, %v5333
        %v5336 = vmul.f32 %v5320, %v5334
        %v5338 = vlaneseq
        %v5339 = vshrl.u32 %v5338, 7
        %v5340 = vsub.s32 0, %v5339
        %v5341 = vrot.slane %v5309, %v5340
        %v5343 = vmul.f32 %v5335, %v5341
        %v5344 = vmul.f32 %v5336, %v5341
        %v5346 = vlaneseq
        %v5347 = vshrl.u32 %v5346, 7
        %v5348 = vsub.s32 0, %v5347
        %v5349 = vrot.slane %v5310, %v5348
        %v5351 = vadd.f32 %v5343, %v5349
        %v5352 = vadd.f32 %v5344, %v5349
        %5353 = vst.msk [vmem:[#allocation2] sm:$0xff] %vm1038, %v5351
        %5354 = vst.msk [vmem:[#allocation2 + $0x8] sm:$0xff] %vm1038, %v5352
        %p5355 = scmp.eq.s32.totalorder %s35, 1
        // Predicated region
        $region117: #{tpu_custom_call.1} parent=111 // pred_check
          %p5356 = pneg %p5355
        $region118: #{tpu_custom_call.1} parent=111 // pred_check_branch
          %5358 = sbr.rel (%p5356) target = $region120
        $region119: #{tpu_custom_call.1} parent=111 // pred_region
          %v5359 = vld [vmem:[%s21] sm:$0x1]
          %v5360 = vld [vmem:[%s22] sm:$0x1]
          %v5361 = vsel %vm1038, %v5351, 0.0
          %5362 = vadd.xlane.f32.xlu0 %v5361
          %v5363 = vpop.xlane.xlu0 %5362
          %v5364 = vsel %vm1038, %v5352, 0.0
          %5365 = vadd.xlane.f32.xlu0 %v5364
          %v5366 = vpop.xlane.xlu0 %5365
          %v5367 = vmul.f32 %v5363, %v2081
          %v5368 = vmul.f32 %v5366, %v2081
          %v5369 = vsub.f32 %v5351, %v5367
          %v5370 = vsub.f32 %v5352, %v5368
          %v5371 = vmul.f32 %v5369, %v5369
          %v5372 = vmul.f32 %v5370, %v5370
          %v5373 = vsel %vm1038, %v5371, 0.0
          %5374 = vadd.xlane.f32.xlu0 %v5373
          %v5375 = vpop.xlane.xlu0 %5374
          %v5376 = vsel %vm1038, %v5372, 0.0
          %5377 = vadd.xlane.f32.xlu0 %v5376
          %v5378 = vpop.xlane.xlu0 %5377
          %v5379 = vmul.f32 %v5375, %v2081
          %v5380 = vmul.f32 %v5378, %v2081
          %v5381 = vadd.f32 %v5379, 1e-05
          %v5382 = vadd.f32 %v5380, 1e-05
          %v5383 = vrsqrt.pop %v5381
          %v5384 = vrsqrt.pop %v5382
          %v5385 = vmul.f32 %v5369, %v5383
          %v5386 = vmul.f32 %v5370, %v5384
          %v5388 = vlaneseq
          %v5389 = vshrl.u32 %v5388, 7
          %v5390 = vsub.s32 0, %v5389
          %v5391 = vrot.slane %v5359, %v5390
          %v5393 = vmul.f32 %v5385, %v5391
          %v5394 = vmul.f32 %v5386, %v5391
          %v5396 = vlaneseq
          %v5397 = vshrl.u32 %v5396, 7
          %v5398 = vsub.s32 0, %v5397
          %v5399 = vrot.slane %v5360, %v5398
          %v5401 = vadd.f32 %v5393, %v5399
          %v5402 = vadd.f32 %v5394, %v5399
          %5403 = vst.msk [vmem:[#allocation3] sm:$0xff] %vm1038, %v5401
          %5404 = vst.msk [vmem:[#allocation3 + $0x8] sm:$0xff] %vm1038, %v5402
        $region120: #{tpu_custom_call.1} parent=111 // pred_fallthru
          _
        // Predicated region
        $region121: #{tpu_custom_call.1} parent=111 // pred_check
          %p5405 = pneg %p631
        $region122: #{tpu_custom_call.1} parent=111 // pred_check_branch
          %5407 = sbr.rel (%p5405) target = $region124
        $region123: #{tpu_custom_call.1} parent=111 // pred_region
          %s5409 = ssub.s32 256, 256
          %5410 = vsyncadd [#allocation4], %s5409
          %s5411 = sshll.u32 [#allocation3], 4
          %s5412 = int_to_ptr.vmem [resolvable:$true] %s5411
          %5417 = dma.vmem_to_hbm [thread:$0]  %s5412, 256, %s23, [#allocation4], 128, 128, 8
        $region124: #{tpu_custom_call.1} parent=111 // pred_fallthru
          _
        // Predicated region
        $region125: #{tpu_custom_call.1} parent=111 // pred_check
          %p5418 = pneg %p631
        $region126: #{tpu_custom_call.1} parent=111 // pred_check_branch
          %5420 = sbr.rel (%p5418) target = $region128
        $region127: #{tpu_custom_call.1} parent=111 // pred_region
          %5421 = dma.done [#allocation4], 256
        $region128: #{tpu_custom_call.1} parent=111 // pred_fallthru
          _
      $region112: #{tpu_custom_call.1} parent=5 // pred_fallthru
        _
      %p5422 = scmp.le.s32.totalorder 2, %s30
      // Predicated region
      $region129: #{tpu_custom_call.1} parent=5 // pred_check
        %p5423 = pneg %p5422
      $region130: #{tpu_custom_call.1} parent=5 // pred_check_branch
        %5425 = sbr.rel (%p5423) target = $region132
      $region131: #{tpu_custom_call.1} parent=5 // pred_region
        %s5426 = ssub.s32 %s30, 2
      $region132: #{tpu_custom_call.1} parent=5 // pred_fallthru
        _
    $region6: #{tpu_custom_call.1} parent=1 // loop_footer
      %s34 = sadd.s32 1, %s30
    $region7: #{tpu_custom_call.1} parent=1 // loop_footer_branch
      %29 = sbr.rel target = $region3
    $region8: #{tpu_custom_call.1} parent=1 // loop_exit
      _
    %5427 = vsyncpa [#allocation4], 1
    %s5428 = scalar_lea.sflag [#allocation4], 1
    %5429 = vsyncpa %s5428, 1

</llo_original>
